<compile_context>
chip_gen: v6e
topology: v6e:2x2x1
jax: 0.10.0
libtpu: 0.0.40
codegen_flags: <defaults>
</compile_context>

<pallas_src>
import math

import jax
import jax.numpy as jnp
from jax.experimental import pallas as pl
from jax.experimental.pallas import tpu as pltpu


# ----------------------------- Pallas kernel -----------------------------

def _make_sine_kernel(n_parts):
    """Kernel: for each part i, out_i = sin(x_i @ S_i), cast only at the store."""

    def kernel(*refs):
        x_refs = refs[:n_parts]
        s_refs = refs[n_parts:2 * n_parts]
        out_refs = refs[2 * n_parts:]
        for x_r, s_r, o_r in zip(x_refs, s_refs, out_refs):
            # x_r: [TN, Jp]  coords (+ constant-1 phase column, + zero pad)
            # s_r: [Jp, OUTp] block-diagonal scale matrix with the phase row folded in
            angle = jax.lax.dot_general(
                x_r[...], s_r[...],
                dimension_numbers=(((1,), (0,)), ((), ())),
                preferred_element_type=jnp.float32,
                precision=jax.lax.Precision.HIGHEST,  # near-exact f32 angle on the MXU
            )
            # EUP sin in f32; cast only at the (lane-dense, unmasked) store.
            o_r[...] = jnp.sin(angle).astype(o_r.dtype)

    return kernel


def _round_up(v, m):
    return -(-v // m) * m


def _make_part_scale(J, P, temperature, Jp, out_pad):
    """S[Jp, out_pad]: block-diagonal 2*pi/dim_t scale + phase row at column index J.

    Column layout of the real J*P outputs per coordinate j: first P/2 lanes are cos
    (phase pi/2), second P/2 lanes are sin (phase 0), matching torch's
    concat([cos(freq[...,0::2]), sin(freq[...,1::2])], 3).flatten(1) ordering.
    Padded output columns (>= J*P) are all-zero rows/cols -> sin(0)=0, sliced away.
    """
    half = P // 2
    k = jnp.arange(half, dtype=jnp.float32)
    s = (2.0 * math.pi) / (temperature ** (2.0 * k / P))                 # [half]
    block_scale = jnp.concatenate([s, s])                                # [P]
    diag = (jnp.eye(J, dtype=jnp.float32)[:, :, None]
            * block_scale[None, None, :]).reshape(J, J * P)              # block diagonal
    phase_block = jnp.concatenate([jnp.full((half,), math.pi / 2.0, jnp.float32),
                                   jnp.zeros((half,), jnp.float32)])
    phase = jnp.tile(phase_block, J)[None, :]                            # [1, J*P]
    S = jnp.zeros((Jp, out_pad), jnp.float32)
    S = S.at[:J, :J * P].set(diag)
    S = S.at[J:J + 1, :J * P].set(phase)   # multiplied by the constant-1 column of x
    return S


def _sine_encode_multi(parts, num_pos_feats, temperature=10000.0,
                       out_dtype=jnp.float32, tile_n=512):
    """Fused SineEncodingTracklet for one or more [N, F_i, C_i] trails sharing N.

    Returns a tuple of lane-dense embeddings [N, F_i*C_i*num_pos_feats], one per part,
    each matching torch's flatten(1) ordering.
    """
    P = int(num_pos_feats)
    if P % 2 != 0:
        raise ValueError("num_pos_feats must be even (torch reference splits cos/sin in half)")

    N = int(parts[0].shape[0])
    flats = [jnp.asarray(p, jnp.float32).reshape(N, -1) for p in parts]   # cheap reshape
    js = [int(f.shape[1]) for f in flats]
    outs_real = [j * P for j in js]
    outs_pad = [_round_up(c, 128) for c in outs_real]     # unmasked full-vreg stores
    jps = [_round_up(j + 1, 8) for j in js]               # +1 = constant-1 phase column

    # Row tiling: sublane alignment depends on the *output* dtype (8 for f32, 16 bf16).
    itemsize = jnp.dtype(out_dtype).itemsize
    align = 8 if itemsize >= 4 else (16 if itemsize == 2 else 32)
    half_rows = _round_up(-(-max(N, 1) // 2), align)       # >=2 grid steps when possible
    tn = max(align, min(int(tile_n), half_rows))
    tn = (tn // align) * align
    Np = _round_up(max(N, 1), tn)

    # One tiny pad per part; pad value 1.0 supplies the constant-1 phase column (extra
    # pad columns hit zero rows of S, padded rows are sliced away after the call).
    x_parts = [jnp.pad(f, ((0, Np - N), (0, jp - j)), constant_values=1.0)
               for f, j, jp in zip(flats, js, jps)]
    s_parts = [_make_part_scale(j, P, temperature, jp, op)
               for j, jp, op in zip(js, jps, outs_pad)]

    kernel = _make_sine_kernel(len(parts))
    in_specs = ([pl.BlockSpec((tn, jp), lambda i: (i, 0)) for jp in jps] +
                [pl.BlockSpec((jp, op), lambda i: (0, 0))          # constants: fetched once
                 for jp, op in zip(jps, outs_pad)])
    out_specs = tuple(pl.BlockSpec((tn, op), lambda i: (i, 0)) for op in outs_pad)
    out_shape = tuple(jax.ShapeDtypeStruct((Np, op), out_dtype) for op in outs_pad)

    flops = sum(2 * Np * jp * op for jp, op in zip(jps, outs_pad))
    transcendentals = Np * sum(outs_pad)
    bytes_accessed = (sum(Np * jp * 4 for jp in jps)
                      + sum(jp * op * 4 for jp, op in zip(jps, outs_pad))
                      + sum(Np * op * itemsize for op in outs_pad))

    outs = pl.pallas_call(
        kernel,
        out_shape=out_shape,
        grid=(Np // tn,),
        in_specs=in_specs,
        out_specs=out_specs,
        compiler_params=pltpu.CompilerParams(dimension_semantics=("parallel",)),
        cost_estimate=pl.CostEstimate(flops=flops,
                                      transcendentals=transcendentals,
                                      bytes_accessed=bytes_accessed),
    )(*x_parts, *s_parts)

    if not isinstance(outs, (tuple, list)):
        outs = (outs,)
    return tuple(o[:N, :c] for o, c in zip(outs, outs_real))


def sine_encoding_tracklet(x, num_pos_feats, temperature=10000.0,
                           out_dtype=jnp.float32, tile_n=512):
    """Pallas version of SineEncodingTracklet.__call__ ; x:[N, F, C] -> [N, F*C*P]."""
    (out,) = _sine_encode_multi([x], num_pos_feats, temperature, out_dtype, tile_n)
    return out


# --------------------------- Module (JAX glue) ----------------------------

class KinetTrackingBase2Pallas:
    """JAX/Pallas port of the KinetTrackingBase2 forward pass.

    The forward pass consists of add_track_queries_to_targets2 (tracklet-query
    construction + sine positional embedding of the trails) followed by the DETR
    parent forward.  The embedding hot path runs in one fused Pallas kernel.
    """

    def __init__(self, frame_range=5, num_pos_feats=32, dim_metadata=1,
                 ratio_add_tracklets=1.0, width_max=0.4, height_max=0.4,
                 max_confidence_false_positives=0.5, num_queries=8,
                 embed_dtype=jnp.float32):
        self._frame_range = frame_range
        self._num_pos_feats = num_pos_feats
        self.dim_metadata = dim_metadata
        self._ratio_add_tracklets = ratio_add_tracklets
        self.width_height_max = jnp.array([width_max, height_max], jnp.float32)
        self.max_confidence_false_positives = max_confidence_false_positives
        self.num_queries = num_queries  # attribute provided by the DETR parent in torch
        # Set to jnp.bfloat16 when the downstream transformer is bf16: halves the
        # store/HBM-writeback traffic (the binding path on v5e/v6e); sin stays f32.
        self.embed_dtype = embed_dtype
        self.dim_tracklets_det = 4 * num_pos_feats * frame_range
        self.dim_tracklets_meta = dim_metadata * num_pos_feats * frame_range

    # ---- encoders (Pallas) ----
    def _embed_tracklets_det(self, trail):          # [N, F, 4]
        return sine_encoding_tracklet(trail, self._num_pos_feats, out_dtype=self.embed_dtype)

    def _embed_tracklets_meta(self, trail_meta):    # [N, F, dim_metadata]
        return sine_encoding_tracklet(trail_meta, self._num_pos_feats, out_dtype=self.embed_dtype)

    def _embed_tracklets_fused(self, trail_pos, trail_meta):
        # One kernel launch producing both embeddings (det + meta), lane-dense outputs.
        return _sine_encode_multi([trail_pos, trail_meta], self._num_pos_feats,
                                  out_dtype=self.embed_dtype)

    # ---- helpers ----
    def generate_pseudo_tracklets(self, detections):
        return jnp.tile(detections[:, None, :4], (1, self._frame_range, 1))

    def generate_random_tracklets(self, n_tracks, key):
        k1, k2, k3 = jax.random.split(key, 3)
        wh = jax.random.uniform(k1, (n_tracks, 2)) * self.width_height_max[None] + 0.05
        cxcy = jax.random.uniform(k2, (n_tracks, 2)) * (1.0 - wh) + wh / 2.0
        final_positions = jnp.concatenate([cxcy, wh], axis=1)
        tracklets = self.generate_pseudo_tracklets(final_positions)
        movement = (jnp.tile(jax.random.uniform(k3, (n_tracks, 2))
                             * self.width_height_max[None] / 5.0, (1, 2))[:, None, :]
                    * jnp.arange(self._frame_range, dtype=jnp.float32)[None, :, None])
        return tracklets + movement

    def add_positive_detections_to_tracklets2(self, detections, metadata, trail,
                                              tracks_indices, det_ind, key):
        trail = trail.at[tracks_indices, -1, :].set(detections[det_ind, :4])
        metadata_history = (jax.random.normal(
            key, (trail.shape[0], trail.shape[1], self.dim_metadata), jnp.float32) * 0.1 + 0.9)
        metadata_history = metadata_history.at[tracks_indices, -1, :].set(metadata[det_ind, :])
        return trail, metadata_history

    def _matcher(self, detections, target):
        # TODO(synk): HungarianMatcher is an external dependency; replaced with a
        # deterministic identity match of the first min(n_tracks, n_det) indices.
        m = min(int(target['labels'].shape[0]), int(detections.shape[0]))
        idx = jnp.arange(m, dtype=jnp.int32)
        return idx, idx

    def generate_empty_tracklets(self, targets):
        for t in targets:
            t['track_query_hs_embeds_det'] = jnp.zeros((0, self.dim_tracklets_det), self.embed_dtype)
            t['track_query_hs_embeds_meta'] = jnp.zeros((0, self.dim_tracklets_meta), self.embed_dtype)
            t['track_queries_mask'] = jnp.zeros((self.num_queries,), bool)
            t['track_queries_fal_pos_mask'] = jnp.zeros((self.num_queries,), bool)
            t['track_query_match_ids'] = jnp.zeros((0,), jnp.int32)

    # ---- main tracking-query preparation ----
    def add_track_queries_to_targets2(self, targets, key):
        num_add = int(self._ratio_add_tracklets * max(int(t['labels'].shape[0]) for t in targets))
        if num_add <= 0:
            self.generate_empty_tracklets(targets)
            return targets

        trail_pos_all, trail_meta_all = [], []
        for t in targets:
            key, k_meta, k_perm, k_rand, k_conf = jax.random.split(key, 5)
            trail = jnp.transpose(t['tracklets'], (1, 0, 2))        # [N_labels, F, 4]
            detections = t['detections']
            metadata = t['detections_metadata']
            tr_idx, det_idx = self._matcher(detections[:, :4], t)
            trail, metadata_history = self.add_positive_detections_to_tracklets2(
                detections, metadata, trail, tr_idx, det_idx, k_meta)

            n_labels = int(t['labels'].shape[0])
            if n_labels >= num_add:
                sel = jax.random.permutation(k_perm, n_labels)[:num_add]
                trail_pos = trail[sel]
                trail_metadata = metadata_history[sel]
                positives = jnp.ones((num_add,), bool)
                fps = jnp.zeros((num_add,), bool)
                t['track_query_match_ids'] = sel.astype(jnp.int32)
            else:
                n_extra = num_add - n_labels
                rand_trail = self.generate_random_tracklets(n_extra, k_rand)
                trail_pos = jnp.concatenate([trail, rand_trail], axis=0)
                extra_meta = jnp.zeros((n_extra, self._frame_range, self.dim_metadata), jnp.float32)
                extra_meta = extra_meta.at[:, :, :1].set(
                    jax.random.uniform(k_conf, (n_extra, self._frame_range, 1))
                    * self.max_confidence_false_positives)
                trail_metadata = jnp.concatenate([metadata_history, extra_meta], axis=0)
                positives = jnp.concatenate([jnp.ones((n_labels,), bool),
                                             jnp.zeros((n_extra,), bool)])
                fps = jnp.concatenate([jnp.zeros((n_labels,), bool),
                                       jnp.ones((n_extra,), bool)])
                t['track_query_match_ids'] = jnp.arange(n_labels, dtype=jnp.int32)

            pad_false = jnp.zeros((self.num_queries,), bool)
            t['track_queries_mask'] = jnp.concatenate([positives, pad_false])
            t['track_queries_fal_pos_mask'] = jnp.concatenate([fps, pad_false])
            trail_pos_all.append(trail_pos)
            trail_meta_all.append(trail_metadata)

        # NOTE: the torch source calls _embed_tracklets_det(trail_pos.flatten(1, 2)),
        # which yields a 2-D tensor that SineEncodingTracklet cannot index; the
        # dimensionally consistent input (dim_tracklets_det = 4*P*frame_range) is the
        # un-flattened [N, frame_range, C] trail, which is what we encode here.
        # All targets contribute exactly num_add rows, so the whole batch (det + meta)
        # is embedded in a single fused Pallas call and split back per target.
        pos_all = jnp.concatenate(trail_pos_all, axis=0)    # [B*num_add, F, 4]
        meta_all = jnp.concatenate(trail_meta_all, axis=0)  # [B*num_add, F, dim_metadata]
        emb_det_all, emb_meta_all = self._embed_tracklets_fused(pos_all, meta_all)
        for i, t in enumerate(targets):
            t['track_query_hs_embeds_det'] = emb_det_all[i * num_add:(i + 1) * num_add]
            t['track_query_hs_embeds_meta'] = emb_meta_all[i * num_add:(i + 1) * num_add]
        return targets

    def forward(self, samples, targets=None, key=None, tracking=False):
        if targets is not None and not tracking:
            targets = self.add_track_queries_to_targets2(targets, key)
        # TODO(synk): super().forward() (DETR backbone + transformer) is defined in the
        # parent class, not in this module; pass samples through untouched.
        out, features, memory, hs = None, None, None, None
        return out, targets, features, memory, hs


# --------------------------------- main -----------------------------------

if __name__ == "__main__":
    key = jax.random.PRNGKey(0)
    frame_range, num_pos_feats, dim_metadata = 5, 32, 1
    num_queries = 8

    def make_target(k, n_tracks, n_det):
        k1, k2, k3, k4 = jax.random.split(k, 4)
        return {
            'boxes': jax.random.uniform(k1, (n_tracks, 4), dtype=jnp.float32),
            'labels': jnp.zeros((n_tracks,), jnp.int32),
            # torch stores tracklets as [frame_range, n_tracks, 4] (transposed in forward)
            'tracklets': jax.random.uniform(k2, (frame_range, n_tracks, 4), dtype=jnp.float32),
            'detections': jax.random.uniform(k3, (n_det, 5), dtype=jnp.float32),
            'detections_metadata': jax.random.uniform(k4, (n_det, dim_metadata), dtype=jnp.float32),
        }

    ka, kb, kfwd = jax.random.split(key, 3)
    targets = [make_target(ka, n_tracks=6, n_det=6),   # permutation branch
               make_target(kb, n_tracks=4, n_det=5)]   # random-tracklet (false-positive) branch
    samples = jnp.zeros((2, 4, 16, 16), jnp.float32)   # NCHW dummy image batch

    model = KinetTrackingBase2Pallas(frame_range=frame_range, num_pos_feats=num_pos_feats,
                                     dim_metadata=dim_metadata, num_queries=num_queries)
    out, targets, features, memory, hs = model.forward(samples, targets, key=kfwd)

    num_add = 6  # max n_labels across targets
    for t in targets:
        emb_det = jax.block_until_ready(t['track_query_hs_embeds_det'])
        emb_meta = jax.block_until_ready(t['track_query_hs_embeds_meta'])
        mask = jax.block_until_ready(t['track_queries_mask'])
        assert emb_det.shape == (num_add, model.dim_tracklets_det), emb_det.shape
        assert emb_meta.shape == (num_add, model.dim_tracklets_meta), emb_meta.shape
        assert mask.shape == (num_add + num_queries,), mask.shape
    assert int(targets[1]['track_queries_fal_pos_mask'].sum()) == 2  # 6 - 4 false positives

    # Numerical check of the Pallas kernel vs a plain-JAX SineEncodingTracklet reference.
    def ref_encode(x, P, temperature=10000.0):
        i = jnp.arange(P, dtype=jnp.float32)
        dim_t = temperature ** (2.0 * jnp.floor(i / 2.0) / P)
        freq = x[:, :, :, None] * (2.0 * math.pi) / dim_t
        emb = jnp.concatenate([jnp.cos(freq[..., 0::2]), jnp.sin(freq[..., 1::2])], axis=3)
        return emb.reshape(emb.shape[0], -1)

    x_test = jax.random.uniform(jax.random.PRNGKey(1), (6, frame_range, 4), dtype=jnp.float32)
    got = jax.block_until_ready(sine_encoding_tracklet(x_test, num_pos_feats))
    want = ref_encode(x_test, num_pos_feats)
    assert jnp.allclose(got, want, atol=1e-4), float(jnp.max(jnp.abs(got - want)))

    # Fused (det + meta) path check — exercises the multi-output / padded-lane split.
    xd = jax.random.uniform(jax.random.PRNGKey(2), (5, frame_range, 4), dtype=jnp.float32)
    xm = jax.random.uniform(jax.random.PRNGKey(3), (5, frame_range, dim_metadata), dtype=jnp.float32)
    gd, gm = _sine_encode_multi([xd, xm], num_pos_feats)
    gd = jax.block_until_ready(gd)
    gm = jax.block_until_ready(gm)
    assert jnp.allclose(gd, ref_encode(xd, num_pos_feats), atol=1e-4)
    assert jnp.allclose(gm, ref_encode(xm, num_pos_feats), atol=1e-4)

    # bf16 store path (v5e/v6e writeback lever): f32 sin, cast only at the store.
    gb = jax.block_until_ready(sine_encoding_tracklet(x_test, num_pos_feats,
                                                      out_dtype=jnp.bfloat16))
    assert jnp.allclose(gb.astype(jnp.float32), want, atol=2e-2)

    print("KERNEL_OK")
</pallas_src>

<mosaic_0001>
module attributes {stable_mosaic.version = 11 : i64} {
  func.func @kernel(%arg0: i32, %arg1: memref<8x24xf32, #tpu.memory_space<vmem>>, %arg2: memref<8x8xf32, #tpu.memory_space<vmem>>, %arg3: memref<24x640xf32, #tpu.memory_space<vmem>>, %arg4: memref<8x256xf32, #tpu.memory_space<vmem>>, %arg5: memref<8x640xf32, #tpu.memory_space<vmem>>, %arg6: memref<8x256xf32, #tpu.memory_space<vmem>>) attributes {dimension_semantics = [#tpu.dimension_semantics<parallel>], iteration_bounds = array<i64: 2>, scalar_prefetch = 0 : i64, scratch_operands = 0 : i64, tpu.core_type = #tpu.core_type<tc>, window_params = [{transform_indices = @transform_0, window_bounds = array<i64: 8, 24>}, {transform_indices = @transform_1, window_bounds = array<i64: 8, 8>}, {pipeline_mode = #tpu.pipeline_mode<synchronous>, transform_indices = @transform_2, window_bounds = array<i64: 24, 640>}, {pipeline_mode = #tpu.pipeline_mode<synchronous>, transform_indices = @transform_3, window_bounds = array<i64: 8, 256>}, {transform_indices = @transform_4, window_bounds = array<i64: 8, 640>}, {transform_indices = @transform_5, window_bounds = array<i64: 8, 256>}]} {
    %c0 = arith.constant 0 : index
    %c0_0 = arith.constant 0 : index
    %0 = vector.load %arg1[%c0, %c0_0] : memref<8x24xf32, #tpu.memory_space<vmem>>, vector<8x24xf32>
    %c0_1 = arith.constant 0 : index
    %c0_2 = arith.constant 0 : index
    %1 = vector.load %arg3[%c0_1, %c0_2] : memref<24x640xf32, #tpu.memory_space<vmem>>, vector<24x640xf32>
    %cst = arith.constant dense<0.000000e+00> : vector<8x640xf32>
    %2 = tpu.matmul %0, %1, %cst {dimension_numbers = #tpu.dot_dimension_numbers<[1], [0], [0], [1], [0, 0, 1, 1], [], []>, precision = #tpu.contract_precision<fp32>} : vector<8x24xf32>, vector<24x640xf32>, vector<8x640xf32> -> vector<8x640xf32>
    %3 = math.sin %2 : vector<8x640xf32>
    %c0_3 = arith.constant 0 : index
    %c0_4 = arith.constant 0 : index
    %4 = vector.load %arg5[%c0_3, %c0_4] : memref<8x640xf32, #tpu.memory_space<vmem>>, vector<8x640xf32>
    tpu.vector_store %arg5[%c0_3, %c0_4], %3 {strides = array<i32>} : memref<8x640xf32, #tpu.memory_space<vmem>>, vector<8x640xf32>,
    %c0_5 = arith.constant 0 : index
    %c0_6 = arith.constant 0 : index
    %5 = vector.load %arg2[%c0_5, %c0_6] : memref<8x8xf32, #tpu.memory_space<vmem>>, vector<8x8xf32>
    %c0_7 = arith.constant 0 : index
    %c0_8 = arith.constant 0 : index
    %6 = vector.load %arg4[%c0_7, %c0_8] : memref<8x256xf32, #tpu.memory_space<vmem>>, vector<8x256xf32>
    %cst_9 = arith.constant dense<0.000000e+00> : vector<8x256xf32>
    %7 = tpu.matmul %5, %6, %cst_9 {dimension_numbers = #tpu.dot_dimension_numbers<[1], [0], [0], [1], [0, 0, 1, 1], [], []>, precision = #tpu.contract_precision<fp32>} : vector<8x8xf32>, vector<8x256xf32>, vector<8x256xf32> -> vector<8x256xf32>
    %8 = math.sin %7 : vector<8x256xf32>
    %c0_10 = arith.constant 0 : index
    %c0_11 = arith.constant 0 : index
    %9 = vector.load %arg6[%c0_10, %c0_11] : memref<8x256xf32, #tpu.memory_space<vmem>>, vector<8x256xf32>
    tpu.vector_store %arg6[%c0_10, %c0_11], %8 {strides = array<i32>} : memref<8x256xf32, #tpu.memory_space<vmem>>, vector<8x256xf32>,
    return
  }
  func.func @transform_0(%arg0: i32) -> (i32, i32) {
    %c0_i32 = arith.constant 0 : i32
    %c0_i32_0 = arith.constant 0 : i32
    return %arg0, %c0_i32 : i32, i32
  }
  func.func @transform_1(%arg0: i32) -> (i32, i32) {
    %c0_i32 = arith.constant 0 : i32
    %c0_i32_0 = arith.constant 0 : i32
    return %arg0, %c0_i32 : i32, i32
  }
  func.func @transform_2(%arg0: i32) -> (i32, i32) {
    %c0_i32 = arith.constant 0 : i32
    %c0_i32_0 = arith.constant 0 : i32
    %c0_i32_1 = arith.constant 0 : i32
    return %c0_i32, %c0_i32_0 : i32, i32
  }
  func.func @transform_3(%arg0: i32) -> (i32, i32) {
    %c0_i32 = arith.constant 0 : i32
    %c0_i32_0 = arith.constant 0 : i32
    %c0_i32_1 = arith.constant 0 : i32
    return %c0_i32, %c0_i32_0 : i32, i32
  }
  func.func @transform_4(%arg0: i32) -> (i32, i32) {
    %c0_i32 = arith.constant 0 : i32
    %c0_i32_0 = arith.constant 0 : i32
    return %arg0, %c0_i32 : i32, i32
  }
  func.func @transform_5(%arg0: i32) -> (i32, i32) {
    %c0_i32 = arith.constant 0 : i32
    %c0_i32_0 = arith.constant 0 : i32
    return %arg0, %c0_i32 : i32, i32
  }
}

</mosaic_0001>

<llo_original>
// kernel: tpu_custom_call.1
$region0: #{tpu_custom_call.1}
  #allocation0 [shape = 'u32[]', space=smem, size = 0x4, offset = 0x4, fixed_abs, tag = 'smem constant byte address 0x4 - core index']
  #allocation1 [shape = 'u32[144,128]{1,0:T(1,128)}', space=vmem, size = 0x12000, scoped, tag = 'internal scratch']
  %s0 = inlined_call_operand.vmem [shape: f32[16,24], index: 0, kind: input, shape index: {}]
  %s1 = inlined_call_operand.vmem [shape: f32[16,8], index: 1, kind: input, shape index: {}]
  %s2 = inlined_call_operand.hbm [shape: f32[24,640], index: 2, kind: input, shape index: {}]
  %s3 = inlined_call_operand.hbm [shape: f32[8,256], index: 3, kind: input, shape index: {}]
  %s4 = inlined_call_operand.hbm [shape: f32[16,640], index: 4, kind: output, shape index: {0}]
  %s5 = inlined_call_operand.hbm [shape: f32[16,256], index: 5, kind: output, shape index: {1}]
  %6 = xla_tuple %s4, %s5
  %s7 = sld [smem:[#allocation0]]
  $region65: #{tpu_custom_call.1} parent=0
    _
  %s9 = ssub.s32 1, %s7
  %s10 = scalar_select 0, %s9, %s7
  $region1: #{tpu_custom_call.1} parent=0
    #allocation2 [shape = 'u8[61440]{0}', space=vmem, size = 0xf000, scoped, tag = 'input window, operand 2, single buffered']
    #allocation3 [shape = 's32[2]{0}', space=sflag, size = 0x8, scoped, tag = 'scoped memory for tpu_custom_call.1']
    #allocation4 [shape = 's32[2]{0}', space=sflag, size = 0x8, scoped, tag = 'scoped memory for tpu_custom_call.1']
    #allocation5 [shape = 'u8[8192]{0}', space=vmem, size = 0x2000, scoped, tag = 'input window, operand 3, single buffered']
    #allocation6 [shape = 's32[1]{0}', space=sflag, size = 0x4, scoped, tag = 'scoped memory for tpu_custom_call.1']
    #allocation7 [shape = 'u8[40960]{0}', space=vmem, size = 0xa000, scoped, tag = 'output window, operand 0']
    #allocation8 [shape = 'u8[16384]{0}', space=vmem, size = 0x4000, scoped, tag = 'output window, operand 1']
    #allocation9 [shape = 's32[2]{0}', space=sflag, size = 0x8, scoped, tag = 'scoped memory for tpu_custom_call.1']
    %11 = vsyncpa [#allocation3], 0
    %12 = vsyncpa [#allocation6], 0
    %13 = vsyncpa [#allocation4], 0
    %s14 = scalar_lea.sflag [#allocation4], 1
    %15 = vsyncpa %s14, 0
    %16 = vsyncpa [#allocation9], 0
    %s17 = scalar_lea.sflag [#allocation9], 1
    %18 = vsyncpa %s17, 0
    loop: start=0, step=1, limit=4
    $region2: #{tpu_custom_call.1} parent=1 // loop_pre_header
      _
    $region3: #{tpu_custom_call.1} parent=1 // loop_header
      %s20 = sphi 0, %s24
      %p21 = scmp.ge.s32.totalorder %s20, 4
      %s30 = sphi 0, %s32
      %s33 = sphi 0, %s30
      %s34 = sphi 0, %s33
      %s50 = sphi 0, %s34
      %s56 = sphi 0, %s58
      %s59 = sphi 0, %s56
      %s60 = sphi 0, %s59
      %s76 = sphi 0, %s60
      %s80 = sphi 0, %s80
      %s82 = sphi 0, %s80
      %s83 = sphi 0, %s82
      %s97 = sphi 0, %s83
      %s101 = sphi 0, %s101
      %s103 = sphi 0, %s101
      %s104 = sphi 0, %s103
      %s118 = sphi 0, %s104
      %s124 = sphi 0, %s126
      %s127 = sphi 0, %s124
      %s128 = sphi 0, %s127
      %s144 = sphi 0, %s128
      %s150 = sphi 0, %s152
      %s153 = sphi 0, %s150
      %s154 = sphi 0, %s153
      %s170 = sphi 0, %s154
    $region4: #{tpu_custom_call.1} parent=1 // loop_header_branch
      %23 = sbr.rel (%p21) target = $region8
    $region5: #{tpu_custom_call.1} parent=1 // loop_body
      %s25 = ssub.s32 %s20, 1
      %s26 = ssub.s32 %s20, 2
      %s27 = sadd.s32 %s20, 1
      %s28 = ssub.s32 %s20, %s27
      %p29 = scmp.eq.s32.totalorder %s28, 0
      %s31 = sadd.s32 %s30, 1
      %s32 = scalar_select %p29, %s30, %s31
      %p35 = pneg %p29
      %p36 = scmp.eq.s32.totalorder %s20, 1
      %p37 = por %p35, %p36
      %p38 = scmp.ne.s32.totalorder %s30, %s33
      %p39 = scmp.eq.s32.totalorder %s20, 0
      %p40 = por %p38, %p39
      %p41 = scmp.ne.s32.totalorder %s30, %s33
      %p42 = scmp.eq.s32.totalorder %s25, 1
      %p43 = por %p41, %p42
      %p44 = scmp.ne.s32.totalorder %s33, %s34
      %p45 = scmp.eq.s32.totalorder %s25, 0
      %p46 = por %p44, %p45
      %p47 = scmp.ne.s32.totalorder %s33, %s34
      %p48 = scmp.eq.s32.totalorder %s26, 1
      %p49 = por %p47, %p48
      %p51 = scmp.ne.s32.totalorder %s34, %s50
      %p52 = scmp.eq.s32.totalorder %s26, 0
      %p53 = por %p51, %p52
      %s54 = ssub.s32 %s20, %s27
      %p55 = scmp.eq.s32.totalorder %s54, 0
      %s57 = sadd.s32 %s56, 1
      %s58 = scalar_select %p55, %s56, %s57
      %p61 = pneg %p55
      %p62 = scmp.eq.s32.totalorder %s20, 1
      %p63 = por %p61, %p62
      %p64 = scmp.ne.s32.totalorder %s56, %s59
      %p65 = scmp.eq.s32.totalorder %s20, 0
      %p66 = por %p64, %p65
      %p67 = scmp.ne.s32.totalorder %s56, %s59
      %p68 = scmp.eq.s32.totalorder %s25, 1
      %p69 = por %p67, %p68
      %p70 = scmp.ne.s32.totalorder %s59, %s60
      %p71 = scmp.eq.s32.totalorder %s25, 0
      %p72 = por %p70, %p71
      %p73 = scmp.ne.s32.totalorder %s59, %s60
      %p74 = scmp.eq.s32.totalorder %s26, 1
      %p75 = por %p73, %p74
      %p77 = scmp.ne.s32.totalorder %s60, %s76
      %p78 = scmp.eq.s32.totalorder %s26, 0
      %p79 = por %p77, %p78
      %s81 = sadd.s32 %s80, 1
      %p84 = scmp.eq.s32.totalorder %s20, 1
      %p85 = scmp.ne.s32.totalorder %s80, %s82
      %p86 = scmp.eq.s32.totalorder %s20, 0
      %p87 = por %p85, %p86
      %p88 = scmp.ne.s32.totalorder %s80, %s82
      %p89 = scmp.eq.s32.totalorder %s25, 1
      %p90 = por %p88, %p89
      %p91 = scmp.ne.s32.totalorder %s82, %s83
      %p92 = scmp.eq.s32.totalorder %s25, 0
      %p93 = por %p91, %p92
      %p94 = scmp.ne.s32.totalorder %s82, %s83
      %p95 = scmp.eq.s32.totalorder %s26, 1
      %p96 = por %p94, %p95
      %p98 = scmp.ne.s32.totalorder %s83, %s97
      %p99 = scmp.eq.s32.totalorder %s26, 0
      %p100 = por %p98, %p99
      %s102 = sadd.s32 %s101, 1
      %p105 = scmp.eq.s32.totalorder %s20, 1
      %p106 = scmp.ne.s32.totalorder %s101, %s103
      %p107 = scmp.eq.s32.totalorder %s20, 0
      %p108 = por %p106, %p107
      %p109 = scmp.ne.s32.totalorder %s101, %s103
      %p110 = scmp.eq.s32.totalorder %s25, 1
      %p111 = por %p109, %p110
      %p112 = scmp.ne.s32.totalorder %s103, %s104
      %p113 = scmp.eq.s32.totalorder %s25, 0
      %p114 = por %p112, %p113
      %p115 = scmp.ne.s32.totalorder %s103, %s104
      %p116 = scmp.eq.s32.totalorder %s26, 1
      %p117 = por %p115, %p116
      %p119 = scmp.ne.s32.totalorder %s104, %s118
      %p120 = scmp.eq.s32.totalorder %s26, 0
      %p121 = por %p119, %p120
      %s122 = ssub.s32 %s20, %s27
      %p123 = scmp.eq.s32.totalorder %s122, 0
      %s125 = sadd.s32 %s124, 1
      %s126 = scalar_select %p123, %s124, %s125
      %p129 = pneg %p123
      %p130 = scmp.eq.s32.totalorder %s20, 1
      %p131 = por %p129, %p130
      %p132 = scmp.ne.s32.totalorder %s124, %s127
      %p133 = scmp.eq.s32.totalorder %s20, 0
      %p134 = por %p132, %p133
      %p135 = scmp.ne.s32.totalorder %s124, %s127
      %p136 = scmp.eq.s32.totalorder %s25, 1
      %p137 = por %p135, %p136
      %p138 = scmp.ne.s32.totalorder %s127, %s128
      %p139 = scmp.eq.s32.totalorder %s25, 0
      %p140 = por %p138, %p139
      %p141 = scmp.ne.s32.totalorder %s127, %s128
      %p142 = scmp.eq.s32.totalorder %s26, 1
      %p143 = por %p141, %p142
      %p145 = scmp.ne.s32.totalorder %s128, %s144
      %p146 = scmp.eq.s32.totalorder %s26, 0
      %p147 = por %p145, %p146
      %s148 = ssub.s32 %s20, %s27
      %p149 = scmp.eq.s32.totalorder %s148, 0
      %s151 = sadd.s32 %s150, 1
      %s152 = scalar_select %p149, %s150, %s151
      %p155 = pneg %p149
      %p156 = scmp.eq.s32.totalorder %s20, 1
      %p157 = por %p155, %p156
      %p158 = scmp.ne.s32.totalorder %s150, %s153
      %p159 = scmp.eq.s32.totalorder %s20, 0
      %p160 = por %p158, %p159
      %p161 = scmp.ne.s32.totalorder %s150, %s153
      %p162 = scmp.eq.s32.totalorder %s25, 1
      %p163 = por %p161, %p162
      %p164 = scmp.ne.s32.totalorder %s153, %s154
      %p165 = scmp.eq.s32.totalorder %s25, 0
      %p166 = por %p164, %p165
      %p167 = scmp.ne.s32.totalorder %s153, %s154
      %p168 = scmp.eq.s32.totalorder %s26, 1
      %p169 = por %p167, %p168
      %p171 = scmp.ne.s32.totalorder %s154, %s170
      %p172 = scmp.eq.s32.totalorder %s26, 0
      %p173 = por %p171, %p172
      %p174 = scmp.le.s32.totalorder 1, %s20
      %p175 = scmp.lt.s32.totalorder %s20, 3
      %p176 = pnand %p174, %p175
      %p177 = pneg %p176
      // Predicated region
      $region9: #{tpu_custom_call.1} parent=5 // pred_check
        _
      $region10: #{tpu_custom_call.1} parent=5 // pred_check_branch
        %179 = sbr.rel (%p176) target = $region12
      $region11: #{tpu_custom_call.1} parent=5 // pred_region
        %s180 = ssub.s32 %s20, 1
        // Predicated region
        $region13: #{tpu_custom_call.1} parent=11 // pred_check
          %p181 = pneg %p93
        $region14: #{tpu_custom_call.1} parent=11 // pred_check_branch
          %183 = sbr.rel (%p181) target = $region16
        $region15: #{tpu_custom_call.1} parent=11 // pred_region
          %s185 = ssub.s32 1920, 1920
          %186 = vsyncadd [#allocation3], %s185
          %s187 = sshll.u32 [#allocation2], 4
          %s188 = int_to_ptr.vmem [resolvable:$true] %s187
          %193 = dma.hbm_to_vmem [thread:$0]  %s2, 1920, %s188, [#allocation3], 640, 640, 40
        $region16: #{tpu_custom_call.1} parent=11 // pred_fallthru
          _
        // Predicated region
        $region17: #{tpu_custom_call.1} parent=11 // pred_check
          %p194 = pneg %p114
        $region18: #{tpu_custom_call.1} parent=11 // pred_check_branch
          %196 = sbr.rel (%p194) target = $region20
        $region19: #{tpu_custom_call.1} parent=11 // pred_region
          %s198 = ssub.s32 256, 256
          %199 = vsyncadd [#allocation6], %s198
          %s201 = sshll.u32 [#allocation5], 4
          %s202 = int_to_ptr.vmem [resolvable:$true] %s201
          %204 = dma.hbm_to_vmem [thread:$0]  %s3, 256, %s202, [#allocation6]
        $region20: #{tpu_custom_call.1} parent=11 // pred_fallthru
          _
      $region12: #{tpu_custom_call.1} parent=5 // pred_fallthru
        _
      %p205 = scmp.lt.s32.totalorder %s20, 2
      // Predicated region
      $region21: #{tpu_custom_call.1} parent=5 // pred_check
        %p206 = pneg %p205
      $region22: #{tpu_custom_call.1} parent=5 // pred_check_branch
        %208 = sbr.rel (%p206) target = $region24
      $region23: #{tpu_custom_call.1} parent=5 // pred_region
        // Predicated region
        $region25: #{tpu_custom_call.1} parent=23 // pred_check
          %p209 = pneg %p40
        $region26: #{tpu_custom_call.1} parent=23 // pred_check_branch
          %211 = sbr.rel (%p209) target = $region28
        $region27: #{tpu_custom_call.1} parent=23 // pred_region
          %p212 = scmp.lt.s32.totalorder %s20, 1
          %s213 = scalar_select %p212, %s20, 1
          %s214 = smul.addr %s213, 8
          %s215 = scalar_lea.vmem %s0, %s214
        $region28: #{tpu_custom_call.1} parent=23 // pred_fallthru
          _
        // Predicated region
        $region29: #{tpu_custom_call.1} parent=23 // pred_check
          %p216 = pneg %p66
        $region30: #{tpu_custom_call.1} parent=23 // pred_check_branch
          %218 = sbr.rel (%p216) target = $region32
        $region31: #{tpu_custom_call.1} parent=23 // pred_region
          %p219 = scmp.lt.s32.totalorder %s20, 1
          %s220 = scalar_select %p219, %s20, 1
          %s221 = smul.addr %s220, 8
          %s222 = scalar_lea.vmem %s1, %s221
        $region32: #{tpu_custom_call.1} parent=23 // pred_fallthru
          _
      $region24: #{tpu_custom_call.1} parent=5 // pred_fallthru
        _
      %p223 = scmp.le.s32.totalorder 1, %s20
      %p224 = scmp.lt.s32.totalorder %s20, 3
      %p225 = pnand %p223, %p224
      %p226 = pneg %p225
      // Predicated region
      $region33: #{tpu_custom_call.1} parent=5 // pred_check
        _
      $region34: #{tpu_custom_call.1} parent=5 // pred_check_branch
        %228 = sbr.rel (%p225) target = $region36
      $region35: #{tpu_custom_call.1} parent=5 // pred_region
        %s229 = ssub.s32 %s20, 1
        // Predicated region
        $region37: #{tpu_custom_call.1} parent=35 // pred_check
          %p230 = pneg %p93
        $region38: #{tpu_custom_call.1} parent=35 // pred_check_branch
          %232 = sbr.rel (%p230) target = $region40
        $region39: #{tpu_custom_call.1} parent=35 // pred_region
          %233 = dma.done [#allocation3], 1920
        $region40: #{tpu_custom_call.1} parent=35 // pred_fallthru
          _
        // Predicated region
        $region41: #{tpu_custom_call.1} parent=35 // pred_check
          %p234 = pneg %p114
        $region42: #{tpu_custom_call.1} parent=35 // pred_check_branch
          %236 = sbr.rel (%p234) target = $region44
        $region43: #{tpu_custom_call.1} parent=35 // pred_region
          %237 = dma.done [#allocation6], 256
        $region44: #{tpu_custom_call.1} parent=35 // pred_fallthru
          _
        %p238 = scmp.lt.s32.totalorder %s25, 1
        %s239 = scalar_select %p238, %s25, 1
        %s240 = smul.addr %s239, 8
        %s241 = scalar_lea.vmem %s0, %s240
        %p242 = pneg %p46
        %p243 = pneg %p43
        %p244 = scmp.lt.s32.totalorder %s25, 1
        %s245 = scalar_select %p244, %s25, 1
        %s246 = smul.addr %s245, 8
        %s247 = scalar_lea.vmem %s1, %s246
        %p248 = pneg %p72
        %p249 = pneg %p69
        %p250 = pneg %p93
        %p251 = pneg %p90
        %p252 = pneg %p114
        %p253 = pneg %p111
        %p254 = pneg %p140
        %p255 = pneg %p137
        %s256 = sand.u32 %s127, 1
        %s257 = scalar_lea.sflag [#allocation4], %s256
        %s258 = sand.u32 %s127, 1
        %s259 = smul.addr %s258, 40
        %s260 = scalar_lea.vmem [#allocation7], %s259
        %p261 = pneg %p166
        %p262 = pneg %p163
        %s263 = sand.u32 %s153, 1
        %s264 = scalar_lea.sflag [#allocation9], %s263
        %s265 = sand.u32 %s153, 1
        %s266 = smul.addr %s265, 16
        %s267 = scalar_lea.vmem [#allocation8], %s266
        %p268 = scmp.lt.s32.totalorder %s25, 1
        %s269 = scalar_select %p268, %s25, 1
        %s270 = smul.addr %s269, 8
        %s271 = scalar_lea.vmem %s0, %s270
        %p272 = scmp.lt.s32.totalorder %s25, 1
        %s273 = scalar_select %p272, %s25, 1
        %s274 = smul.addr %s273, 8
        %s275 = scalar_lea.vmem %s1, %s274
        %v276 = vld [vmem:[%s271] sm:$0xff]
        %v277 = vld [vmem:[#allocation2] sm:$0xff]
        %v278 = vld [vmem:[#allocation2 + $0x8] sm:$0xff]
        %v279 = vld [vmem:[#allocation2 + $0x10] sm:$0xff]
        %v280 = vld [vmem:[#allocation2 + $0x18] sm:$0xff]
        %v281 = vld [vmem:[#allocation2 + $0x20] sm:$0xff]
        %v282 = vld [vmem:[#allocation2 + $0x28] sm:$0xff]
        %v283 = vld [vmem:[#allocation2 + $0x30] sm:$0xff]
        %v284 = vld [vmem:[#allocation2 + $0x38] sm:$0xff]
        %v285 = vld [vmem:[#allocation2 + $0x40] sm:$0xff]
        %v286 = vld [vmem:[#allocation2 + $0x48] sm:$0xff]
        %v287 = vld [vmem:[#allocation2 + $0x50] sm:$0xff]
        %v288 = vld [vmem:[#allocation2 + $0x58] sm:$0xff]
        %v289 = vld [vmem:[#allocation2 + $0x60] sm:$0xff]
        %v290 = vld [vmem:[#allocation2 + $0x68] sm:$0xff]
        %v291 = vld [vmem:[#allocation2 + $0x70] sm:$0xff]
        %vm292 = vcmask 195584
        %v294 = vsel %vm292, %v276, 0
        %296 = vmatprep.subr.mxu0 0.0
        %297 = vmatpush1.msra.mxu0 0.0
        %298 = vmatprep.subr.mxu0 0.0
        %299 = vmatpush1.msra.mxu0 0.0
        %300 = vmatprep.subr.mxu0 0.0
        %301 = vmatpush1.msra.mxu0 0.0
        %302 = vmatprep.subr.mxu0 0.0
        %303 = vmatpush1.msra.mxu0 0.0
        %304 = vmatprep.subr.mxu0 0.0
        %305 = vmatpush1.msra.mxu0 0.0
        %306 = vmatprep.subr.mxu0 0.0
        %307 = vmatpush1.msra.mxu0 0.0
        %308 = vmatprep.subr.mxu0 0.0
        %309 = vmatpush1.msra.mxu0 0.0
        %310 = vmatprep.subr.mxu0 0.0
        %311 = vmatpush1.msra.mxu0 0.0
        %312 = vmatprep.subr.mxu0 0.0
        %313 = vmatpush1.msra.mxu0 0.0
        %314 = vmatprep.subr.mxu0 0.0
        %315 = vmatpush1.msra.mxu0 0.0
        %316 = vmatprep.subr.mxu0 0.0
        %317 = vmatpush1.msra.mxu0 0.0
        %318 = vmatprep.subr.mxu0 0.0
        %319 = vmatpush1.msra.mxu0 0.0
        %320 = vmatprep.subr.mxu0 0.0
        %321 = vmatpush1.msra.mxu0 0.0
        %v322 = vand.u32 %v288, 4294901760
        %323 = vmatprep.subr.mxu0 %v322
        %v324 = vand.u32 %v287, 4294901760
        %325 = vmatpush1.msra.mxu0 %v324
        %v326 = vand.u32 %v283, 4294901760
        %327 = vmatprep.subr.mxu0 %v326
        %v328 = vand.u32 %v282, 4294901760
        %329 = vmatpush1.msra.mxu0 %v328
        %v330 = vand.u32 %v278, 4294901760
        %331 = vmatprep.subr.mxu0 %v330
        %v332 = vand.u32 %v277, 4294901760
        %333 = vmatpush1.msra.mxu0 %v332
        %334 = vmatprep.subr.mxu0 0.0
        %335 = vmatpush2.msra.mxu0 0.0
        %336 = vmatprep.subr.mxu0 0.0
        %337 = vmatpush2.msra.mxu0 0.0
        %338 = vmatprep.subr.mxu0 0.0
        %339 = vmatpush2.msra.mxu0 0.0
        %340 = vmatprep.subr.mxu0 0.0
        %341 = vmatpush2.msra.mxu0 0.0
        %342 = vmatprep.subr.mxu0 0.0
        %343 = vmatpush2.msra.mxu0 0.0
        %344 = vmatprep.subr.mxu0 0.0
        %345 = vmatpush2.msra.mxu0 0.0
        %346 = vmatprep.subr.mxu0 0.0
        %347 = vmatpush2.msra.mxu0 0.0
        %348 = vmatprep.subr.mxu0 0.0
        %349 = vmatpush2.msra.mxu0 0.0
        %350 = vmatprep.subr.mxu0 0.0
        %351 = vmatpush2.msra.mxu0 0.0
        %352 = vmatprep.subr.mxu0 0.0
        %353 = vmatpush2.msra.mxu0 0.0
        %354 = vmatprep.subr.mxu0 0.0
        %355 = vmatpush2.msra.mxu0 0.0
        %356 = vmatprep.subr.mxu0 0.0
        %357 = vmatpush2.msra.mxu0 0.0
        %358 = vmatprep.subr.mxu0 0.0
        %359 = vmatpush2.msra.mxu0 0.0
        %360 = vmatprep.subr.mxu0 0.0
        %361 = vmatpush2.msra.mxu0 0.0
        %362 = vmatprep.subr.mxu0 0.0
        %363 = vmatpush2.msra.mxu0 0.0
        %364 = vmatprep.subr.mxu0 0.0
        %365 = vmatpush2.msra.mxu0 0.0
        %366 = vmatprep.mubr.f32.mxu0 0.0
        %v367 = vand.u32 %v294, 4294901760
        %v368 = vsub.f32 %v294, %v367
        %v369 = vand.u32 %v368, 4294901760
        %v370 = vsub.f32 %v368, %v369
        %v371 = vand.u32 %v370, 4294901760
        %372 = vmatmul.mubr.f32.gmra.mxu0 %v371
        %v373 = vpop.f32.mrf.mxu0
        %v374 = vadd.f32 0.0, %v373
        %v375 = vpop.f32.mrf.mxu0
        %v376 = vadd.f32 0.0, %v375
        %377 = vdwg.mxu0
        %378 = vmatprep.subr.mxu0 0.0
        %379 = vmatpush1.msra.mxu0 0.0
        %380 = vmatprep.subr.mxu0 0.0
        %381 = vmatpush1.msra.mxu0 0.0
        %382 = vmatprep.subr.mxu0 0.0
        %383 = vmatpush1.msra.mxu0 0.0
        %384 = vmatprep.subr.mxu0 0.0
        %385 = vmatpush1.msra.mxu0 0.0
        %386 = vmatprep.subr.mxu0 0.0
        %387 = vmatpush1.msra.mxu0 0.0
        %388 = vmatprep.subr.mxu0 0.0
        %389 = vmatpush1.msra.mxu0 0.0
        %390 = vmatprep.subr.mxu0 0.0
        %391 = vmatpush1.msra.mxu0 0.0
        %392 = vmatprep.subr.mxu0 0.0
        %393 = vmatpush1.msra.mxu0 0.0
        %394 = vmatprep.subr.mxu0 0.0
        %395 = vmatpush1.msra.mxu0 0.0
        %396 = vmatprep.subr.mxu0 0.0
        %397 = vmatpush1.msra.mxu0 0.0
        %398 = vmatprep.subr.mxu0 0.0
        %399 = vmatpush1.msra.mxu0 0.0
        %400 = vmatprep.subr.mxu0 0.0
        %401 = vmatpush1.msra.mxu0 0.0
        %402 = vmatprep.subr.mxu0 0.0
        %403 = vmatpush1.msra.mxu0 0.0
        %v404 = vand.u32 %v288, 4294901760
        %v405 = vsub.f32 %v288, %v404
        %v406 = vand.u32 %v405, 4294901760
        %v407 = vsub.f32 %v405, %v406
        %v408 = vand.u32 %v407, 4294901760
        %409 = vmatprep.subr.mxu0 %v408
        %v410 = vand.u32 %v287, 4294901760
        %v411 = vsub.f32 %v287, %v410
        %v412 = vand.u32 %v411, 4294901760
        %v413 = vsub.f32 %v411, %v412
        %v414 = vand.u32 %v413, 4294901760
        %415 = vmatpush1.msra.mxu0 %v414
        %v416 = vand.u32 %v283, 4294901760
        %v417 = vsub.f32 %v283, %v416
        %v418 = vand.u32 %v417, 4294901760
        %v419 = vsub.f32 %v417, %v418
        %v420 = vand.u32 %v419, 4294901760
        %421 = vmatprep.subr.mxu0 %v420
        %v422 = vand.u32 %v282, 4294901760
        %v423 = vsub.f32 %v282, %v422
        %v424 = vand.u32 %v423, 4294901760
        %v425 = vsub.f32 %v423, %v424
        %v426 = vand.u32 %v425, 4294901760
        %427 = vmatpush1.msra.mxu0 %v426
        %v428 = vand.u32 %v278, 4294901760
        %v429 = vsub.f32 %v278, %v428
        %v430 = vand.u32 %v429, 4294901760
        %v431 = vsub.f32 %v429, %v430
        %v432 = vand.u32 %v431, 4294901760
        %433 = vmatprep.subr.mxu0 %v432
        %v434 = vand.u32 %v277, 4294901760
        %v435 = vsub.f32 %v277, %v434
        %v436 = vand.u32 %v435, 4294901760
        %v437 = vsub.f32 %v435, %v436
        %v438 = vand.u32 %v437, 4294901760
        %439 = vmatpush1.msra.mxu0 %v438
        %440 = vmatprep.subr.mxu0 0.0
        %441 = vmatpush2.msra.mxu0 0.0
        %442 = vmatprep.subr.mxu0 0.0
        %443 = vmatpush2.msra.mxu0 0.0
        %444 = vmatprep.subr.mxu0 0.0
        %445 = vmatpush2.msra.mxu0 0.0
        %446 = vmatprep.subr.mxu0 0.0
        %447 = vmatpush2.msra.mxu0 0.0
        %448 = vmatprep.subr.mxu0 0.0
        %449 = vmatpush2.msra.mxu0 0.0
        %450 = vmatprep.subr.mxu0 0.0
        %451 = vmatpush2.msra.mxu0 0.0
        %452 = vmatprep.subr.mxu0 0.0
        %453 = vmatpush2.msra.mxu0 0.0
        %454 = vmatprep.subr.mxu0 0.0
        %455 = vmatpush2.msra.mxu0 0.0
        %456 = vmatprep.subr.mxu0 0.0
        %457 = vmatpush2.msra.mxu0 0.0
        %458 = vmatprep.subr.mxu0 0.0
        %459 = vmatpush2.msra.mxu0 0.0
        %460 = vmatprep.subr.mxu0 0.0
        %461 = vmatpush2.msra.mxu0 0.0
        %462 = vmatprep.subr.mxu0 0.0
        %463 = vmatpush2.msra.mxu0 0.0
        %464 = vmatprep.subr.mxu0 0.0
        %465 = vmatpush2.msra.mxu0 0.0
        %466 = vmatprep.subr.mxu0 0.0
        %467 = vmatpush2.msra.mxu0 0.0
        %468 = vmatprep.subr.mxu0 0.0
        %469 = vmatpush2.msra.mxu0 0.0
        %470 = vmatprep.subr.mxu0 0.0
        %471 = vmatpush2.msra.mxu0 0.0
        %472 = vmatprep.mubr.f32.mxu0 0.0
        %v473 = vand.u32 %v294, 4294901760
        %474 = vmatmul.mubr.f32.gmra.mxu0 %v473
        %v475 = vpop.f32.mrf.mxu0
        %v476 = vadd.f32 %v374, %v475
        %v477 = vpop.f32.mrf.mxu0
        %v478 = vadd.f32 %v376, %v477
        %479 = vdwg.mxu0
        %480 = vmatprep.subr.mxu0 0.0
        %481 = vmatpush1.msra.mxu0 0.0
        %482 = vmatprep.subr.mxu0 0.0
        %483 = vmatpush1.msra.mxu0 0.0
        %484 = vmatprep.subr.mxu0 0.0
        %485 = vmatpush1.msra.mxu0 0.0
        %486 = vmatprep.subr.mxu0 0.0
        %487 = vmatpush1.msra.mxu0 0.0
        %488 = vmatprep.subr.mxu0 0.0
        %489 = vmatpush1.msra.mxu0 0.0
        %490 = vmatprep.subr.mxu0 0.0
        %491 = vmatpush1.msra.mxu0 0.0
        %492 = vmatprep.subr.mxu0 0.0
        %493 = vmatpush1.msra.mxu0 0.0
        %494 = vmatprep.subr.mxu0 0.0
        %495 = vmatpush1.msra.mxu0 0.0
        %496 = vmatprep.subr.mxu0 0.0
        %497 = vmatpush1.msra.mxu0 0.0
        %498 = vmatprep.subr.mxu0 0.0
        %499 = vmatpush1.msra.mxu0 0.0
        %500 = vmatprep.subr.mxu0 0.0
        %501 = vmatpush1.msra.mxu0 0.0
        %502 = vmatprep.subr.mxu0 0.0
        %503 = vmatpush1.msra.mxu0 0.0
        %504 = vmatprep.subr.mxu0 0.0
        %505 = vmatpush1.msra.mxu0 0.0
        %v506 = vand.u32 %v288, 4294901760
        %v507 = vsub.f32 %v288, %v506
        %508 = vmatprep.subr.mxu0 %v507
        %v509 = vand.u32 %v287, 4294901760
        %v510 = vsub.f32 %v287, %v509
        %511 = vmatpush1.msra.mxu0 %v510
        %v512 = vand.u32 %v283, 4294901760
        %v513 = vsub.f32 %v283, %v512
        %514 = vmatprep.subr.mxu0 %v513
        %v515 = vand.u32 %v282, 4294901760
        %v516 = vsub.f32 %v282, %v515
        %517 = vmatpush1.msra.mxu0 %v516
        %v518 = vand.u32 %v278, 4294901760
        %v519 = vsub.f32 %v278, %v518
        %520 = vmatprep.subr.mxu0 %v519
        %v521 = vand.u32 %v277, 4294901760
        %v522 = vsub.f32 %v277, %v521
        %523 = vmatpush1.msra.mxu0 %v522
        %524 = vmatprep.subr.mxu0 0.0
        %525 = vmatpush2.msra.mxu0 0.0
        %526 = vmatprep.subr.mxu0 0.0
        %527 = vmatpush2.msra.mxu0 0.0
        %528 = vmatprep.subr.mxu0 0.0
        %529 = vmatpush2.msra.mxu0 0.0
        %530 = vmatprep.subr.mxu0 0.0
        %531 = vmatpush2.msra.mxu0 0.0
        %532 = vmatprep.subr.mxu0 0.0
        %533 = vmatpush2.msra.mxu0 0.0
        %534 = vmatprep.subr.mxu0 0.0
        %535 = vmatpush2.msra.mxu0 0.0
        %536 = vmatprep.subr.mxu0 0.0
        %537 = vmatpush2.msra.mxu0 0.0
        %538 = vmatprep.subr.mxu0 0.0
        %539 = vmatpush2.msra.mxu0 0.0
        %540 = vmatprep.subr.mxu0 0.0
        %541 = vmatpush2.msra.mxu0 0.0
        %542 = vmatprep.subr.mxu0 0.0
        %543 = vmatpush2.msra.mxu0 0.0
        %544 = vmatprep.subr.mxu0 0.0
        %545 = vmatpush2.msra.mxu0 0.0
        %546 = vmatprep.subr.mxu0 0.0
        %547 = vmatpush2.msra.mxu0 0.0
        %548 = vmatprep.subr.mxu0 0.0
        %549 = vmatpush2.msra.mxu0 0.0
        %550 = vmatprep.subr.mxu0 0.0
        %551 = vmatpush2.msra.mxu0 0.0
        %552 = vmatprep.subr.mxu0 0.0
        %553 = vmatpush2.msra.mxu0 0.0
        %554 = vmatprep.subr.mxu0 0.0
        %555 = vmatpush2.msra.mxu0 0.0
        %556 = vmatprep.mubr.f32.mxu0 0.0
        %v557 = vand.u32 %v294, 4294901760
        %v558 = vsub.f32 %v294, %v557
        %559 = vmatmul.mubr.f32.gmra.mxu0 %v558
        %v560 = vpop.f32.mrf.mxu0
        %v561 = vadd.f32 %v476, %v560
        %v562 = vpop.f32.mrf.mxu0
        %v563 = vadd.f32 %v478, %v562
        %564 = vdwg.mxu0
        %565 = vmatprep.subr.mxu0 0.0
        %566 = vmatpush1.msra.mxu0 0.0
        %567 = vmatprep.subr.mxu0 0.0
        %568 = vmatpush1.msra.mxu0 0.0
        %569 = vmatprep.subr.mxu0 0.0
        %570 = vmatpush1.msra.mxu0 0.0
        %571 = vmatprep.subr.mxu0 0.0
        %572 = vmatpush1.msra.mxu0 0.0
        %573 = vmatprep.subr.mxu0 0.0
        %574 = vmatpush1.msra.mxu0 0.0
        %575 = vmatprep.subr.mxu0 0.0
        %576 = vmatpush1.msra.mxu0 0.0
        %577 = vmatprep.subr.mxu0 0.0
        %578 = vmatpush1.msra.mxu0 0.0
        %579 = vmatprep.subr.mxu0 0.0
        %580 = vmatpush1.msra.mxu0 0.0
        %581 = vmatprep.subr.mxu0 0.0
        %582 = vmatpush1.msra.mxu0 0.0
        %583 = vmatprep.subr.mxu0 0.0
        %584 = vmatpush1.msra.mxu0 0.0
        %585 = vmatprep.subr.mxu0 0.0
        %586 = vmatpush1.msra.mxu0 0.0
        %587 = vmatprep.subr.mxu0 0.0
        %588 = vmatpush1.msra.mxu0 0.0
        %589 = vmatprep.subr.mxu0 0.0
        %590 = vmatpush1.msra.mxu0 0.0
        %v591 = vand.u32 %v288, 4294901760
        %592 = vmatprep.subr.mxu0 %v591
        %v593 = vand.u32 %v287, 4294901760
        %594 = vmatpush1.msra.mxu0 %v593
        %v595 = vand.u32 %v283, 4294901760
        %596 = vmatprep.subr.mxu0 %v595
        %v597 = vand.u32 %v282, 4294901760
        %598 = vmatpush1.msra.mxu0 %v597
        %v599 = vand.u32 %v278, 4294901760
        %600 = vmatprep.subr.mxu0 %v599
        %v601 = vand.u32 %v277, 4294901760
        %602 = vmatpush1.msra.mxu0 %v601
        %603 = vmatprep.subr.mxu0 0.0
        %604 = vmatpush2.msra.mxu0 0.0
        %605 = vmatprep.subr.mxu0 0.0
        %606 = vmatpush2.msra.mxu0 0.0
        %607 = vmatprep.subr.mxu0 0.0
        %608 = vmatpush2.msra.mxu0 0.0
        %609 = vmatprep.subr.mxu0 0.0
        %610 = vmatpush2.msra.mxu0 0.0
        %611 = vmatprep.subr.mxu0 0.0
        %612 = vmatpush2.msra.mxu0 0.0
        %613 = vmatprep.subr.mxu0 0.0
        %614 = vmatpush2.msra.mxu0 0.0
        %615 = vmatprep.subr.mxu0 0.0
        %616 = vmatpush2.msra.mxu0 0.0
        %617 = vmatprep.subr.mxu0 0.0
        %618 = vmatpush2.msra.mxu0 0.0
        %619 = vmatprep.subr.mxu0 0.0
        %620 = vmatpush2.msra.mxu0 0.0
        %621 = vmatprep.subr.mxu0 0.0
        %622 = vmatpush2.msra.mxu0 0.0
        %623 = vmatprep.subr.mxu0 0.0
        %624 = vmatpush2.msra.mxu0 0.0
        %625 = vmatprep.subr.mxu0 0.0
        %626 = vmatpush2.msra.mxu0 0.0
        %627 = vmatprep.subr.mxu0 0.0
        %628 = vmatpush2.msra.mxu0 0.0
        %629 = vmatprep.subr.mxu0 0.0
        %630 = vmatpush2.msra.mxu0 0.0
        %631 = vmatprep.subr.mxu0 0.0
        %632 = vmatpush2.msra.mxu0 0.0
        %633 = vmatprep.subr.mxu0 0.0
        %634 = vmatpush2.msra.mxu0 0.0
        %635 = vmatprep.mubr.f32.mxu0 0.0
        %v636 = vand.u32 %v294, 4294901760
        %v637 = vsub.f32 %v294, %v636
        %v638 = vand.u32 %v637, 4294901760
        %639 = vmatmul.mubr.f32.gmra.mxu0 %v638
        %v640 = vpop.f32.mrf.mxu0
        %v641 = vadd.f32 %v561, %v640
        %v642 = vpop.f32.mrf.mxu0
        %v643 = vadd.f32 %v563, %v642
        %644 = vdwg.mxu0
        %645 = vmatprep.subr.mxu0 0.0
        %646 = vmatpush1.msra.mxu0 0.0
        %647 = vmatprep.subr.mxu0 0.0
        %648 = vmatpush1.msra.mxu0 0.0
        %649 = vmatprep.subr.mxu0 0.0
        %650 = vmatpush1.msra.mxu0 0.0
        %651 = vmatprep.subr.mxu0 0.0
        %652 = vmatpush1.msra.mxu0 0.0
        %653 = vmatprep.subr.mxu0 0.0
        %654 = vmatpush1.msra.mxu0 0.0
        %655 = vmatprep.subr.mxu0 0.0
        %656 = vmatpush1.msra.mxu0 0.0
        %657 = vmatprep.subr.mxu0 0.0
        %658 = vmatpush1.msra.mxu0 0.0
        %659 = vmatprep.subr.mxu0 0.0
        %660 = vmatpush1.msra.mxu0 0.0
        %661 = vmatprep.subr.mxu0 0.0
        %662 = vmatpush1.msra.mxu0 0.0
        %663 = vmatprep.subr.mxu0 0.0
        %664 = vmatpush1.msra.mxu0 0.0
        %665 = vmatprep.subr.mxu0 0.0
        %666 = vmatpush1.msra.mxu0 0.0
        %667 = vmatprep.subr.mxu0 0.0
        %668 = vmatpush1.msra.mxu0 0.0
        %669 = vmatprep.subr.mxu0 0.0
        %670 = vmatpush1.msra.mxu0 0.0
        %v671 = vand.u32 %v288, 4294901760
        %v672 = vsub.f32 %v288, %v671
        %v673 = vand.u32 %v672, 4294901760
        %674 = vmatprep.subr.mxu0 %v673
        %v675 = vand.u32 %v287, 4294901760
        %v676 = vsub.f32 %v287, %v675
        %v677 = vand.u32 %v676, 4294901760
        %678 = vmatpush1.msra.mxu0 %v677
        %v679 = vand.u32 %v283, 4294901760
        %v680 = vsub.f32 %v283, %v679
        %v681 = vand.u32 %v680, 4294901760
        %682 = vmatprep.subr.mxu0 %v681
        %v683 = vand.u32 %v282, 4294901760
        %v684 = vsub.f32 %v282, %v683
        %v685 = vand.u32 %v684, 4294901760
        %686 = vmatpush1.msra.mxu0 %v685
        %v687 = vand.u32 %v278, 4294901760
        %v688 = vsub.f32 %v278, %v687
        %v689 = vand.u32 %v688, 4294901760
        %690 = vmatprep.subr.mxu0 %v689
        %v691 = vand.u32 %v277, 4294901760
        %v692 = vsub.f32 %v277, %v691
        %v693 = vand.u32 %v692, 4294901760
        %694 = vmatpush1.msra.mxu0 %v693
        %695 = vmatprep.subr.mxu0 0.0
        %696 = vmatpush2.msra.mxu0 0.0
        %697 = vmatprep.subr.mxu0 0.0
        %698 = vmatpush2.msra.mxu0 0.0
        %699 = vmatprep.subr.mxu0 0.0
        %700 = vmatpush2.msra.mxu0 0.0
        %701 = vmatprep.subr.mxu0 0.0
        %702 = vmatpush2.msra.mxu0 0.0
        %703 = vmatprep.subr.mxu0 0.0
        %704 = vmatpush2.msra.mxu0 0.0
        %705 = vmatprep.subr.mxu0 0.0
        %706 = vmatpush2.msra.mxu0 0.0
        %707 = vmatprep.subr.mxu0 0.0
        %708 = vmatpush2.msra.mxu0 0.0
        %709 = vmatprep.subr.mxu0 0.0
        %710 = vmatpush2.msra.mxu0 0.0
        %711 = vmatprep.subr.mxu0 0.0
        %712 = vmatpush2.msra.mxu0 0.0
        %713 = vmatprep.subr.mxu0 0.0
        %714 = vmatpush2.msra.mxu0 0.0
        %715 = vmatprep.subr.mxu0 0.0
        %716 = vmatpush2.msra.mxu0 0.0
        %717 = vmatprep.subr.mxu0 0.0
        %718 = vmatpush2.msra.mxu0 0.0
        %719 = vmatprep.subr.mxu0 0.0
        %720 = vmatpush2.msra.mxu0 0.0
        %721 = vmatprep.subr.mxu0 0.0
        %722 = vmatpush2.msra.mxu0 0.0
        %723 = vmatprep.subr.mxu0 0.0
        %724 = vmatpush2.msra.mxu0 0.0
        %725 = vmatprep.subr.mxu0 0.0
        %726 = vmatpush2.msra.mxu0 0.0
        %727 = vmatprep.mubr.f32.mxu0 0.0
        %v728 = vand.u32 %v294, 4294901760
        %729 = vmatmul.mubr.f32.gmra.mxu0 %v728
        %v730 = vpop.f32.mrf.mxu0
        %v731 = vadd.f32 %v641, %v730
        %v732 = vpop.f32.mrf.mxu0
        %v733 = vadd.f32 %v643, %v732
        %734 = vdwg.mxu0
        %735 = vmatprep.subr.mxu0 0.0
        %736 = vmatpush1.msra.mxu0 0.0
        %737 = vmatprep.subr.mxu0 0.0
        %738 = vmatpush1.msra.mxu0 0.0
        %739 = vmatprep.subr.mxu0 0.0
        %740 = vmatpush1.msra.mxu0 0.0
        %741 = vmatprep.subr.mxu0 0.0
        %742 = vmatpush1.msra.mxu0 0.0
        %743 = vmatprep.subr.mxu0 0.0
        %744 = vmatpush1.msra.mxu0 0.0
        %745 = vmatprep.subr.mxu0 0.0
        %746 = vmatpush1.msra.mxu0 0.0
        %747 = vmatprep.subr.mxu0 0.0
        %748 = vmatpush1.msra.mxu0 0.0
        %749 = vmatprep.subr.mxu0 0.0
        %750 = vmatpush1.msra.mxu0 0.0
        %751 = vmatprep.subr.mxu0 0.0
        %752 = vmatpush1.msra.mxu0 0.0
        %753 = vmatprep.subr.mxu0 0.0
        %754 = vmatpush1.msra.mxu0 0.0
        %755 = vmatprep.subr.mxu0 0.0
        %756 = vmatpush1.msra.mxu0 0.0
        %757 = vmatprep.subr.mxu0 0.0
        %758 = vmatpush1.msra.mxu0 0.0
        %759 = vmatprep.subr.mxu0 0.0
        %760 = vmatpush1.msra.mxu0 0.0
        %v761 = vand.u32 %v288, 4294901760
        %762 = vmatprep.subr.mxu0 %v761
        %v763 = vand.u32 %v287, 4294901760
        %764 = vmatpush1.msra.mxu0 %v763
        %v765 = vand.u32 %v283, 4294901760
        %766 = vmatprep.subr.mxu0 %v765
        %v767 = vand.u32 %v282, 4294901760
        %768 = vmatpush1.msra.mxu0 %v767
        %v769 = vand.u32 %v278, 4294901760
        %770 = vmatprep.subr.mxu0 %v769
        %v771 = vand.u32 %v277, 4294901760
        %772 = vmatpush1.msra.mxu0 %v771
        %773 = vmatprep.subr.mxu0 0.0
        %774 = vmatpush2.msra.mxu0 0.0
        %775 = vmatprep.subr.mxu0 0.0
        %776 = vmatpush2.msra.mxu0 0.0
        %777 = vmatprep.subr.mxu0 0.0
        %778 = vmatpush2.msra.mxu0 0.0
        %779 = vmatprep.subr.mxu0 0.0
        %780 = vmatpush2.msra.mxu0 0.0
        %781 = vmatprep.subr.mxu0 0.0
        %782 = vmatpush2.msra.mxu0 0.0
        %783 = vmatprep.subr.mxu0 0.0
        %784 = vmatpush2.msra.mxu0 0.0
        %785 = vmatprep.subr.mxu0 0.0
        %786 = vmatpush2.msra.mxu0 0.0
        %787 = vmatprep.subr.mxu0 0.0
        %788 = vmatpush2.msra.mxu0 0.0
        %789 = vmatprep.subr.mxu0 0.0
        %790 = vmatpush2.msra.mxu0 0.0
        %791 = vmatprep.subr.mxu0 0.0
        %792 = vmatpush2.msra.mxu0 0.0
        %793 = vmatprep.subr.mxu0 0.0
        %794 = vmatpush2.msra.mxu0 0.0
        %795 = vmatprep.subr.mxu0 0.0
        %796 = vmatpush2.msra.mxu0 0.0
        %797 = vmatprep.subr.mxu0 0.0
        %798 = vmatpush2.msra.mxu0 0.0
        %799 = vmatprep.subr.mxu0 0.0
        %800 = vmatpush2.msra.mxu0 0.0
        %801 = vmatprep.subr.mxu0 0.0
        %802 = vmatpush2.msra.mxu0 0.0
        %803 = vmatprep.subr.mxu0 0.0
        %804 = vmatpush2.msra.mxu0 0.0
        %805 = vmatprep.mubr.f32.mxu0 0.0
        %v806 = vand.u32 %v294, 4294901760
        %807 = vmatmul.mubr.f32.gmra.mxu0 %v806
        %v808 = vpop.f32.mrf.mxu0
        %v809 = vadd.f32 %v731, %v808
        %v810 = vpop.f32.mrf.mxu0
        %v811 = vadd.f32 %v733, %v810
        %812 = vdwg.mxu0
        %813 = vmatprep.subr.mxu0 0.0
        %814 = vmatpush1.msra.mxu0 0.0
        %815 = vmatprep.subr.mxu0 0.0
        %816 = vmatpush1.msra.mxu0 0.0
        %817 = vmatprep.subr.mxu0 0.0
        %818 = vmatpush1.msra.mxu0 0.0
        %819 = vmatprep.subr.mxu0 0.0
        %820 = vmatpush1.msra.mxu0 0.0
        %821 = vmatprep.subr.mxu0 0.0
        %822 = vmatpush1.msra.mxu0 0.0
        %823 = vmatprep.subr.mxu0 0.0
        %824 = vmatpush1.msra.mxu0 0.0
        %825 = vmatprep.subr.mxu0 0.0
        %826 = vmatpush1.msra.mxu0 0.0
        %827 = vmatprep.subr.mxu0 0.0
        %828 = vmatpush1.msra.mxu0 0.0
        %829 = vmatprep.subr.mxu0 0.0
        %830 = vmatpush1.msra.mxu0 0.0
        %831 = vmatprep.subr.mxu0 0.0
        %832 = vmatpush1.msra.mxu0 0.0
        %833 = vmatprep.subr.mxu0 0.0
        %834 = vmatpush1.msra.mxu0 0.0
        %835 = vmatprep.subr.mxu0 0.0
        %836 = vmatpush1.msra.mxu0 0.0
        %837 = vmatprep.subr.mxu0 0.0
        %838 = vmatpush1.msra.mxu0 0.0
        %v839 = vand.u32 %v290, 4294901760
        %840 = vmatprep.subr.mxu0 %v839
        %v841 = vand.u32 %v289, 4294901760
        %842 = vmatpush1.msra.mxu0 %v841
        %v843 = vand.u32 %v285, 4294901760
        %844 = vmatprep.subr.mxu0 %v843
        %v845 = vand.u32 %v284, 4294901760
        %846 = vmatpush1.msra.mxu0 %v845
        %v847 = vand.u32 %v280, 4294901760
        %848 = vmatprep.subr.mxu0 %v847
        %v849 = vand.u32 %v279, 4294901760
        %850 = vmatpush1.msra.mxu0 %v849
        %851 = vmatprep.subr.mxu0 0.0
        %852 = vmatpush2.msra.mxu0 0.0
        %853 = vmatprep.subr.mxu0 0.0
        %854 = vmatpush2.msra.mxu0 0.0
        %855 = vmatprep.subr.mxu0 0.0
        %856 = vmatpush2.msra.mxu0 0.0
        %857 = vmatprep.subr.mxu0 0.0
        %858 = vmatpush2.msra.mxu0 0.0
        %859 = vmatprep.subr.mxu0 0.0
        %860 = vmatpush2.msra.mxu0 0.0
        %861 = vmatprep.subr.mxu0 0.0
        %862 = vmatpush2.msra.mxu0 0.0
        %863 = vmatprep.subr.mxu0 0.0
        %864 = vmatpush2.msra.mxu0 0.0
        %865 = vmatprep.subr.mxu0 0.0
        %866 = vmatpush2.msra.mxu0 0.0
        %867 = vmatprep.subr.mxu0 0.0
        %868 = vmatpush2.msra.mxu0 0.0
        %869 = vmatprep.subr.mxu0 0.0
        %870 = vmatpush2.msra.mxu0 0.0
        %871 = vmatprep.subr.mxu0 0.0
        %872 = vmatpush2.msra.mxu0 0.0
        %873 = vmatprep.subr.mxu0 0.0
        %874 = vmatpush2.msra.mxu0 0.0
        %875 = vmatprep.subr.mxu0 0.0
        %876 = vmatpush2.msra.mxu0 0.0
        %877 = vmatprep.subr.mxu0 0.0
        %878 = vmatpush2.msra.mxu0 0.0
        %879 = vmatprep.subr.mxu0 0.0
        %880 = vmatpush2.msra.mxu0 0.0
        %881 = vmatprep.subr.mxu0 0.0
        %882 = vmatpush2.msra.mxu0 0.0
        %883 = vmatprep.mubr.f32.mxu0 0.0
        %v884 = vand.u32 %v294, 4294901760
        %v885 = vsub.f32 %v294, %v884
        %v886 = vand.u32 %v885, 4294901760
        %v887 = vsub.f32 %v885, %v886
        %v888 = vand.u32 %v887, 4294901760
        %889 = vmatmul.mubr.f32.gmra.mxu0 %v888
        %v890 = vpop.f32.mrf.mxu0
        %v891 = vadd.f32 0.0, %v890
        %v892 = vpop.f32.mrf.mxu0
        %v893 = vadd.f32 0.0, %v892
        %894 = vdwg.mxu0
        %895 = vmatprep.subr.mxu0 0.0
        %896 = vmatpush1.msra.mxu0 0.0
        %897 = vmatprep.subr.mxu0 0.0
        %898 = vmatpush1.msra.mxu0 0.0
        %899 = vmatprep.subr.mxu0 0.0
        %900 = vmatpush1.msra.mxu0 0.0
        %901 = vmatprep.subr.mxu0 0.0
        %902 = vmatpush1.msra.mxu0 0.0
        %903 = vmatprep.subr.mxu0 0.0
        %904 = vmatpush1.msra.mxu0 0.0
        %905 = vmatprep.subr.mxu0 0.0
        %906 = vmatpush1.msra.mxu0 0.0
        %907 = vmatprep.subr.mxu0 0.0
        %908 = vmatpush1.msra.mxu0 0.0
        %909 = vmatprep.subr.mxu0 0.0
        %910 = vmatpush1.msra.mxu0 0.0
        %911 = vmatprep.subr.mxu0 0.0
        %912 = vmatpush1.msra.mxu0 0.0
        %913 = vmatprep.subr.mxu0 0.0
        %914 = vmatpush1.msra.mxu0 0.0
        %915 = vmatprep.subr.mxu0 0.0
        %916 = vmatpush1.msra.mxu0 0.0
        %917 = vmatprep.subr.mxu0 0.0
        %918 = vmatpush1.msra.mxu0 0.0
        %919 = vmatprep.subr.mxu0 0.0
        %920 = vmatpush1.msra.mxu0 0.0
        %v921 = vand.u32 %v290, 4294901760
        %v922 = vsub.f32 %v290, %v921
        %v923 = vand.u32 %v922, 4294901760
        %v924 = vsub.f32 %v922, %v923
        %v925 = vand.u32 %v924, 4294901760
        %926 = vmatprep.subr.mxu0 %v925
        %v927 = vand.u32 %v289, 4294901760
        %v928 = vsub.f32 %v289, %v927
        %v929 = vand.u32 %v928, 4294901760
        %v930 = vsub.f32 %v928, %v929
        %v931 = vand.u32 %v930, 4294901760
        %932 = vmatpush1.msra.mxu0 %v931
        %v933 = vand.u32 %v285, 4294901760
        %v934 = vsub.f32 %v285, %v933
        %v935 = vand.u32 %v934, 4294901760
        %v936 = vsub.f32 %v934, %v935
        %v937 = vand.u32 %v936, 4294901760
        %938 = vmatprep.subr.mxu0 %v937
        %v939 = vand.u32 %v284, 4294901760
        %v940 = vsub.f32 %v284, %v939
        %v941 = vand.u32 %v940, 4294901760
        %v942 = vsub.f32 %v940, %v941
        %v943 = vand.u32 %v942, 4294901760
        %944 = vmatpush1.msra.mxu0 %v943
        %v945 = vand.u32 %v280, 4294901760
        %v946 = vsub.f32 %v280, %v945
        %v947 = vand.u32 %v946, 4294901760
        %v948 = vsub.f32 %v946, %v947
        %v949 = vand.u32 %v948, 4294901760
        %950 = vmatprep.subr.mxu0 %v949
        %v951 = vand.u32 %v279, 4294901760
        %v952 = vsub.f32 %v279, %v951
        %v953 = vand.u32 %v952, 4294901760
        %v954 = vsub.f32 %v952, %v953
        %v955 = vand.u32 %v954, 4294901760
        %956 = vmatpush1.msra.mxu0 %v955
        %957 = vmatprep.subr.mxu0 0.0
        %958 = vmatpush2.msra.mxu0 0.0
        %959 = vmatprep.subr.mxu0 0.0
        %960 = vmatpush2.msra.mxu0 0.0
        %961 = vmatprep.subr.mxu0 0.0
        %962 = vmatpush2.msra.mxu0 0.0
        %963 = vmatprep.subr.mxu0 0.0
        %964 = vmatpush2.msra.mxu0 0.0
        %965 = vmatprep.subr.mxu0 0.0
        %966 = vmatpush2.msra.mxu0 0.0
        %967 = vmatprep.subr.mxu0 0.0
        %968 = vmatpush2.msra.mxu0 0.0
        %969 = vmatprep.subr.mxu0 0.0
        %970 = vmatpush2.msra.mxu0 0.0
        %971 = vmatprep.subr.mxu0 0.0
        %972 = vmatpush2.msra.mxu0 0.0
        %973 = vmatprep.subr.mxu0 0.0
        %974 = vmatpush2.msra.mxu0 0.0
        %975 = vmatprep.subr.mxu0 0.0
        %976 = vmatpush2.msra.mxu0 0.0
        %977 = vmatprep.subr.mxu0 0.0
        %978 = vmatpush2.msra.mxu0 0.0
        %979 = vmatprep.subr.mxu0 0.0
        %980 = vmatpush2.msra.mxu0 0.0
        %981 = vmatprep.subr.mxu0 0.0
        %982 = vmatpush2.msra.mxu0 0.0
        %983 = vmatprep.subr.mxu0 0.0
        %984 = vmatpush2.msra.mxu0 0.0
        %985 = vmatprep.subr.mxu0 0.0
        %986 = vmatpush2.msra.mxu0 0.0
        %987 = vmatprep.subr.mxu0 0.0
        %988 = vmatpush2.msra.mxu0 0.0
        %989 = vmatprep.mubr.f32.mxu0 0.0
        %v990 = vand.u32 %v294, 4294901760
        %991 = vmatmul.mubr.f32.gmra.mxu0 %v990
        %v992 = vpop.f32.mrf.mxu0
        %v993 = vadd.f32 %v891, %v992
        %v994 = vpop.f32.mrf.mxu0
        %v995 = vadd.f32 %v893, %v994
        %996 = vdwg.mxu0
        %997 = vmatprep.subr.mxu0 0.0
        %998 = vmatpush1.msra.mxu0 0.0
        %999 = vmatprep.subr.mxu0 0.0
        %1000 = vmatpush1.msra.mxu0 0.0
        %1001 = vmatprep.subr.mxu0 0.0
        %1002 = vmatpush1.msra.mxu0 0.0
        %1003 = vmatprep.subr.mxu0 0.0
        %1004 = vmatpush1.msra.mxu0 0.0
        %1005 = vmatprep.subr.mxu0 0.0
        %1006 = vmatpush1.msra.mxu0 0.0
        %1007 = vmatprep.subr.mxu0 0.0
        %1008 = vmatpush1.msra.mxu0 0.0
        %1009 = vmatprep.subr.mxu0 0.0
        %1010 = vmatpush1.msra.mxu0 0.0
        %1011 = vmatprep.subr.mxu0 0.0
        %1012 = vmatpush1.msra.mxu0 0.0
        %1013 = vmatprep.subr.mxu0 0.0
        %1014 = vmatpush1.msra.mxu0 0.0
        %1015 = vmatprep.subr.mxu0 0.0
        %1016 = vmatpush1.msra.mxu0 0.0
        %1017 = vmatprep.subr.mxu0 0.0
        %1018 = vmatpush1.msra.mxu0 0.0
        %1019 = vmatprep.subr.mxu0 0.0
        %1020 = vmatpush1.msra.mxu0 0.0
        %1021 = vmatprep.subr.mxu0 0.0
        %1022 = vmatpush1.msra.mxu0 0.0
        %v1023 = vand.u32 %v290, 4294901760
        %v1024 = vsub.f32 %v290, %v1023
        %1025 = vmatprep.subr.mxu0 %v1024
        %v1026 = vand.u32 %v289, 4294901760
        %v1027 = vsub.f32 %v289, %v1026
        %1028 = vmatpush1.msra.mxu0 %v1027
        %v1029 = vand.u32 %v285, 4294901760
        %v1030 = vsub.f32 %v285, %v1029
        %1031 = vmatprep.subr.mxu0 %v1030
        %v1032 = vand.u32 %v284, 4294901760
        %v1033 = vsub.f32 %v284, %v1032
        %1034 = vmatpush1.msra.mxu0 %v1033
        %v1035 = vand.u32 %v280, 4294901760
        %v1036 = vsub.f32 %v280, %v1035
        %1037 = vmatprep.subr.mxu0 %v1036
        %v1038 = vand.u32 %v279, 4294901760
        %v1039 = vsub.f32 %v279, %v1038
        %1040 = vmatpush1.msra.mxu0 %v1039
        %1041 = vmatprep.subr.mxu0 0.0
        %1042 = vmatpush2.msra.mxu0 0.0
        %1043 = vmatprep.subr.mxu0 0.0
        %1044 = vmatpush2.msra.mxu0 0.0
        %1045 = vmatprep.subr.mxu0 0.0
        %1046 = vmatpush2.msra.mxu0 0.0
        %1047 = vmatprep.subr.mxu0 0.0
        %1048 = vmatpush2.msra.mxu0 0.0
        %1049 = vmatprep.subr.mxu0 0.0
        %1050 = vmatpush2.msra.mxu0 0.0
        %1051 = vmatprep.subr.mxu0 0.0
        %1052 = vmatpush2.msra.mxu0 0.0
        %1053 = vmatprep.subr.mxu0 0.0
        %1054 = vmatpush2.msra.mxu0 0.0
        %1055 = vmatprep.subr.mxu0 0.0
        %1056 = vmatpush2.msra.mxu0 0.0
        %1057 = vmatprep.subr.mxu0 0.0
        %1058 = vmatpush2.msra.mxu0 0.0
        %1059 = vmatprep.subr.mxu0 0.0
        %1060 = vmatpush2.msra.mxu0 0.0
        %1061 = vmatprep.subr.mxu0 0.0
        %1062 = vmatpush2.msra.mxu0 0.0
        %1063 = vmatprep.subr.mxu0 0.0
        %1064 = vmatpush2.msra.mxu0 0.0
        %1065 = vmatprep.subr.mxu0 0.0
        %1066 = vmatpush2.msra.mxu0 0.0
        %1067 = vmatprep.subr.mxu0 0.0
        %1068 = vmatpush2.msra.mxu0 0.0
        %1069 = vmatprep.subr.mxu0 0.0
        %1070 = vmatpush2.msra.mxu0 0.0
        %1071 = vmatprep.subr.mxu0 0.0
        %1072 = vmatpush2.msra.mxu0 0.0
        %1073 = vmatprep.mubr.f32.mxu0 0.0
        %v1074 = vand.u32 %v294, 4294901760
        %v1075 = vsub.f32 %v294, %v1074
        %1076 = vmatmul.mubr.f32.gmra.mxu0 %v1075
        %v1077 = vpop.f32.mrf.mxu0
        %v1078 = vadd.f32 %v993, %v1077
        %v1079 = vpop.f32.mrf.mxu0
        %v1080 = vadd.f32 %v995, %v1079
        %1081 = vdwg.mxu0
        %1082 = vmatprep.subr.mxu0 0.0
        %1083 = vmatpush1.msra.mxu0 0.0
        %1084 = vmatprep.subr.mxu0 0.0
        %1085 = vmatpush1.msra.mxu0 0.0
        %1086 = vmatprep.subr.mxu0 0.0
        %1087 = vmatpush1.msra.mxu0 0.0
        %1088 = vmatprep.subr.mxu0 0.0
        %1089 = vmatpush1.msra.mxu0 0.0
        %1090 = vmatprep.subr.mxu0 0.0
        %1091 = vmatpush1.msra.mxu0 0.0
        %1092 = vmatprep.subr.mxu0 0.0
        %1093 = vmatpush1.msra.mxu0 0.0
        %1094 = vmatprep.subr.mxu0 0.0
        %1095 = vmatpush1.msra.mxu0 0.0
        %1096 = vmatprep.subr.mxu0 0.0
        %1097 = vmatpush1.msra.mxu0 0.0
        %1098 = vmatprep.subr.mxu0 0.0
        %1099 = vmatpush1.msra.mxu0 0.0
        %1100 = vmatprep.subr.mxu0 0.0
        %1101 = vmatpush1.msra.mxu0 0.0
        %1102 = vmatprep.subr.mxu0 0.0
        %1103 = vmatpush1.msra.mxu0 0.0
        %1104 = vmatprep.subr.mxu0 0.0
        %1105 = vmatpush1.msra.mxu0 0.0
        %1106 = vmatprep.subr.mxu0 0.0
        %1107 = vmatpush1.msra.mxu0 0.0
        %v1108 = vand.u32 %v290, 4294901760
        %1109 = vmatprep.subr.mxu0 %v1108
        %v1110 = vand.u32 %v289, 4294901760
        %1111 = vmatpush1.msra.mxu0 %v1110
        %v1112 = vand.u32 %v285, 4294901760
        %1113 = vmatprep.subr.mxu0 %v1112
        %v1114 = vand.u32 %v284, 4294901760
        %1115 = vmatpush1.msra.mxu0 %v1114
        %v1116 = vand.u32 %v280, 4294901760
        %1117 = vmatprep.subr.mxu0 %v1116
        %v1118 = vand.u32 %v279, 4294901760
        %1119 = vmatpush1.msra.mxu0 %v1118
        %1120 = vmatprep.subr.mxu0 0.0
        %1121 = vmatpush2.msra.mxu0 0.0
        %1122 = vmatprep.subr.mxu0 0.0
        %1123 = vmatpush2.msra.mxu0 0.0
        %1124 = vmatprep.subr.mxu0 0.0
        %1125 = vmatpush2.msra.mxu0 0.0
        %1126 = vmatprep.subr.mxu0 0.0
        %1127 = vmatpush2.msra.mxu0 0.0
        %1128 = vmatprep.subr.mxu0 0.0
        %1129 = vmatpush2.msra.mxu0 0.0
        %1130 = vmatprep.subr.mxu0 0.0
        %1131 = vmatpush2.msra.mxu0 0.0
        %1132 = vmatprep.subr.mxu0 0.0
        %1133 = vmatpush2.msra.mxu0 0.0
        %1134 = vmatprep.subr.mxu0 0.0
        %1135 = vmatpush2.msra.mxu0 0.0
        %1136 = vmatprep.subr.mxu0 0.0
        %1137 = vmatpush2.msra.mxu0 0.0
        %1138 = vmatprep.subr.mxu0 0.0
        %1139 = vmatpush2.msra.mxu0 0.0
        %1140 = vmatprep.subr.mxu0 0.0
        %1141 = vmatpush2.msra.mxu0 0.0
        %1142 = vmatprep.subr.mxu0 0.0
        %1143 = vmatpush2.msra.mxu0 0.0
        %1144 = vmatprep.subr.mxu0 0.0
        %1145 = vmatpush2.msra.mxu0 0.0
        %1146 = vmatprep.subr.mxu0 0.0
        %1147 = vmatpush2.msra.mxu0 0.0
        %1148 = vmatprep.subr.mxu0 0.0
        %1149 = vmatpush2.msra.mxu0 0.0
        %1150 = vmatprep.subr.mxu0 0.0
        %1151 = vmatpush2.msra.mxu0 0.0
        %1152 = vmatprep.mubr.f32.mxu0 0.0
        %v1153 = vand.u32 %v294, 4294901760
        %v1154 = vsub.f32 %v294, %v1153
        %v1155 = vand.u32 %v1154, 4294901760
        %1156 = vmatmul.mubr.f32.gmra.mxu0 %v1155
        %v1157 = vpop.f32.mrf.mxu0
        %v1158 = vadd.f32 %v1078, %v1157
        %v1159 = vpop.f32.mrf.mxu0
        %v1160 = vadd.f32 %v1080, %v1159
        %1161 = vdwg.mxu0
        %1162 = vmatprep.subr.mxu0 0.0
        %1163 = vmatpush1.msra.mxu0 0.0
        %1164 = vmatprep.subr.mxu0 0.0
        %1165 = vmatpush1.msra.mxu0 0.0
        %1166 = vmatprep.subr.mxu0 0.0
        %1167 = vmatpush1.msra.mxu0 0.0
        %1168 = vmatprep.subr.mxu0 0.0
        %1169 = vmatpush1.msra.mxu0 0.0
        %1170 = vmatprep.subr.mxu0 0.0
        %1171 = vmatpush1.msra.mxu0 0.0
        %1172 = vmatprep.subr.mxu0 0.0
        %1173 = vmatpush1.msra.mxu0 0.0
        %1174 = vmatprep.subr.mxu0 0.0
        %1175 = vmatpush1.msra.mxu0 0.0
        %1176 = vmatprep.subr.mxu0 0.0
        %1177 = vmatpush1.msra.mxu0 0.0
        %1178 = vmatprep.subr.mxu0 0.0
        %1179 = vmatpush1.msra.mxu0 0.0
        %1180 = vmatprep.subr.mxu0 0.0
        %1181 = vmatpush1.msra.mxu0 0.0
        %1182 = vmatprep.subr.mxu0 0.0
        %1183 = vmatpush1.msra.mxu0 0.0
        %1184 = vmatprep.subr.mxu0 0.0
        %1185 = vmatpush1.msra.mxu0 0.0
        %1186 = vmatprep.subr.mxu0 0.0
        %1187 = vmatpush1.msra.mxu0 0.0
        %v1188 = vand.u32 %v290, 4294901760
        %v1189 = vsub.f32 %v290, %v1188
        %v1190 = vand.u32 %v1189, 4294901760
        %1191 = vmatprep.subr.mxu0 %v1190
        %v1192 = vand.u32 %v289, 4294901760
        %v1193 = vsub.f32 %v289, %v1192
        %v1194 = vand.u32 %v1193, 4294901760
        %1195 = vmatpush1.msra.mxu0 %v1194
        %v1196 = vand.u32 %v285, 4294901760
        %v1197 = vsub.f32 %v285, %v1196
        %v1198 = vand.u32 %v1197, 4294901760
        %1199 = vmatprep.subr.mxu0 %v1198
        %v1200 = vand.u32 %v284, 4294901760
        %v1201 = vsub.f32 %v284, %v1200
        %v1202 = vand.u32 %v1201, 4294901760
        %1203 = vmatpush1.msra.mxu0 %v1202
        %v1204 = vand.u32 %v280, 4294901760
        %v1205 = vsub.f32 %v280, %v1204
        %v1206 = vand.u32 %v1205, 4294901760
        %1207 = vmatprep.subr.mxu0 %v1206
        %v1208 = vand.u32 %v279, 4294901760
        %v1209 = vsub.f32 %v279, %v1208
        %v1210 = vand.u32 %v1209, 4294901760
        %1211 = vmatpush1.msra.mxu0 %v1210
        %1212 = vmatprep.subr.mxu0 0.0
        %1213 = vmatpush2.msra.mxu0 0.0
        %1214 = vmatprep.subr.mxu0 0.0
        %1215 = vmatpush2.msra.mxu0 0.0
        %1216 = vmatprep.subr.mxu0 0.0
        %1217 = vmatpush2.msra.mxu0 0.0
        %1218 = vmatprep.subr.mxu0 0.0
        %1219 = vmatpush2.msra.mxu0 0.0
        %1220 = vmatprep.subr.mxu0 0.0
        %1221 = vmatpush2.msra.mxu0 0.0
        %1222 = vmatprep.subr.mxu0 0.0
        %1223 = vmatpush2.msra.mxu0 0.0
        %1224 = vmatprep.subr.mxu0 0.0
        %1225 = vmatpush2.msra.mxu0 0.0
        %1226 = vmatprep.subr.mxu0 0.0
        %1227 = vmatpush2.msra.mxu0 0.0
        %1228 = vmatprep.subr.mxu0 0.0
        %1229 = vmatpush2.msra.mxu0 0.0
        %1230 = vmatprep.subr.mxu0 0.0
        %1231 = vmatpush2.msra.mxu0 0.0
        %1232 = vmatprep.subr.mxu0 0.0
        %1233 = vmatpush2.msra.mxu0 0.0
        %1234 = vmatprep.subr.mxu0 0.0
        %1235 = vmatpush2.msra.mxu0 0.0
        %1236 = vmatprep.subr.mxu0 0.0
        %1237 = vmatpush2.msra.mxu0 0.0
        %1238 = vmatprep.subr.mxu0 0.0
        %1239 = vmatpush2.msra.mxu0 0.0
        %1240 = vmatprep.subr.mxu0 0.0
        %1241 = vmatpush2.msra.mxu0 0.0
        %1242 = vmatprep.subr.mxu0 0.0
        %1243 = vmatpush2.msra.mxu0 0.0
        %1244 = vmatprep.mubr.f32.mxu0 0.0
        %v1245 = vand.u32 %v294, 4294901760
        %1246 = vmatmul.mubr.f32.gmra.mxu0 %v1245
        %v1247 = vpop.f32.mrf.mxu0
        %v1248 = vadd.f32 %v1158, %v1247
        %v1249 = vpop.f32.mrf.mxu0
        %v1250 = vadd.f32 %v1160, %v1249
        %1251 = vdwg.mxu0
        %1252 = vmatprep.subr.mxu0 0.0
        %1253 = vmatpush1.msra.mxu0 0.0
        %1254 = vmatprep.subr.mxu0 0.0
        %1255 = vmatpush1.msra.mxu0 0.0
        %1256 = vmatprep.subr.mxu0 0.0
        %1257 = vmatpush1.msra.mxu0 0.0
        %1258 = vmatprep.subr.mxu0 0.0
        %1259 = vmatpush1.msra.mxu0 0.0
        %1260 = vmatprep.subr.mxu0 0.0
        %1261 = vmatpush1.msra.mxu0 0.0
        %1262 = vmatprep.subr.mxu0 0.0
        %1263 = vmatpush1.msra.mxu0 0.0
        %1264 = vmatprep.subr.mxu0 0.0
        %1265 = vmatpush1.msra.mxu0 0.0
        %1266 = vmatprep.subr.mxu0 0.0
        %1267 = vmatpush1.msra.mxu0 0.0
        %1268 = vmatprep.subr.mxu0 0.0
        %1269 = vmatpush1.msra.mxu0 0.0
        %1270 = vmatprep.subr.mxu0 0.0
        %1271 = vmatpush1.msra.mxu0 0.0
        %1272 = vmatprep.subr.mxu0 0.0
        %1273 = vmatpush1.msra.mxu0 0.0
        %1274 = vmatprep.subr.mxu0 0.0
        %1275 = vmatpush1.msra.mxu0 0.0
        %1276 = vmatprep.subr.mxu0 0.0
        %1277 = vmatpush1.msra.mxu0 0.0
        %v1278 = vand.u32 %v290, 4294901760
        %1279 = vmatprep.subr.mxu0 %v1278
        %v1280 = vand.u32 %v289, 4294901760
        %1281 = vmatpush1.msra.mxu0 %v1280
        %v1282 = vand.u32 %v285, 4294901760
        %1283 = vmatprep.subr.mxu0 %v1282
        %v1284 = vand.u32 %v284, 4294901760
        %1285 = vmatpush1.msra.mxu0 %v1284
        %v1286 = vand.u32 %v280, 4294901760
        %1287 = vmatprep.subr.mxu0 %v1286
        %v1288 = vand.u32 %v279, 4294901760
        %1289 = vmatpush1.msra.mxu0 %v1288
        %1290 = vmatprep.subr.mxu0 0.0
        %1291 = vmatpush2.msra.mxu0 0.0
        %1292 = vmatprep.subr.mxu0 0.0
        %1293 = vmatpush2.msra.mxu0 0.0
        %1294 = vmatprep.subr.mxu0 0.0
        %1295 = vmatpush2.msra.mxu0 0.0
        %1296 = vmatprep.subr.mxu0 0.0
        %1297 = vmatpush2.msra.mxu0 0.0
        %1298 = vmatprep.subr.mxu0 0.0
        %1299 = vmatpush2.msra.mxu0 0.0
        %1300 = vmatprep.subr.mxu0 0.0
        %1301 = vmatpush2.msra.mxu0 0.0
        %1302 = vmatprep.subr.mxu0 0.0
        %1303 = vmatpush2.msra.mxu0 0.0
        %1304 = vmatprep.subr.mxu0 0.0
        %1305 = vmatpush2.msra.mxu0 0.0
        %1306 = vmatprep.subr.mxu0 0.0
        %1307 = vmatpush2.msra.mxu0 0.0
        %1308 = vmatprep.subr.mxu0 0.0
        %1309 = vmatpush2.msra.mxu0 0.0
        %1310 = vmatprep.subr.mxu0 0.0
        %1311 = vmatpush2.msra.mxu0 0.0
        %1312 = vmatprep.subr.mxu0 0.0
        %1313 = vmatpush2.msra.mxu0 0.0
        %1314 = vmatprep.subr.mxu0 0.0
        %1315 = vmatpush2.msra.mxu0 0.0
        %1316 = vmatprep.subr.mxu0 0.0
        %1317 = vmatpush2.msra.mxu0 0.0
        %1318 = vmatprep.subr.mxu0 0.0
        %1319 = vmatpush2.msra.mxu0 0.0
        %1320 = vmatprep.subr.mxu0 0.0
        %1321 = vmatpush2.msra.mxu0 0.0
        %1322 = vmatprep.mubr.f32.mxu0 0.0
        %v1323 = vand.u32 %v294, 4294901760
        %1324 = vmatmul.mubr.f32.gmra.mxu0 %v1323
        %v1325 = vpop.f32.mrf.mxu0
        %v1326 = vadd.f32 %v1248, %v1325
        %v1327 = vpop.f32.mrf.mxu0
        %v1328 = vadd.f32 %v1250, %v1327
        %1329 = vdwg.mxu0
        %1330 = vmatprep.subr.mxu0 0.0
        %1331 = vmatpush1.msra.mxu0 0.0
        %1332 = vmatprep.subr.mxu0 0.0
        %1333 = vmatpush1.msra.mxu0 0.0
        %1334 = vmatprep.subr.mxu0 0.0
        %1335 = vmatpush1.msra.mxu0 0.0
        %1336 = vmatprep.subr.mxu0 0.0
        %1337 = vmatpush1.msra.mxu0 0.0
        %1338 = vmatprep.subr.mxu0 0.0
        %1339 = vmatpush1.msra.mxu0 0.0
        %1340 = vmatprep.subr.mxu0 0.0
        %1341 = vmatpush1.msra.mxu0 0.0
        %1342 = vmatprep.subr.mxu0 0.0
        %1343 = vmatpush1.msra.mxu0 0.0
        %1344 = vmatprep.subr.mxu0 0.0
        %1345 = vmatpush1.msra.mxu0 0.0
        %1346 = vmatprep.subr.mxu0 0.0
        %1347 = vmatpush1.msra.mxu0 0.0
        %1348 = vmatprep.subr.mxu0 0.0
        %1349 = vmatpush1.msra.mxu0 0.0
        %1350 = vmatprep.subr.mxu0 0.0
        %1351 = vmatpush1.msra.mxu0 0.0
        %1352 = vmatprep.subr.mxu0 0.0
        %1353 = vmatpush1.msra.mxu0 0.0
        %1354 = vmatprep.subr.mxu0 0.0
        %1355 = vmatpush1.msra.mxu0 0.0
        %1356 = vmatprep.subr.mxu0 0.0
        %v1357 = vand.u32 %v291, 4294901760
        %1358 = vmatpush1.msra.mxu0 %v1357
        %1359 = vmatprep.subr.mxu0 0.0
        %v1360 = vand.u32 %v286, 4294901760
        %1361 = vmatpush1.msra.mxu0 %v1360
        %1362 = vmatprep.subr.mxu0 0.0
        %v1363 = vand.u32 %v281, 4294901760
        %1364 = vmatpush1.msra.mxu0 %v1363
        %1365 = vmatprep.subr.mxu0 0.0
        %1366 = vmatpush2.msra.mxu0 0.0
        %1367 = vmatprep.subr.mxu0 0.0
        %1368 = vmatpush2.msra.mxu0 0.0
        %1369 = vmatprep.subr.mxu0 0.0
        %1370 = vmatpush2.msra.mxu0 0.0
        %1371 = vmatprep.subr.mxu0 0.0
        %1372 = vmatpush2.msra.mxu0 0.0
        %1373 = vmatprep.subr.mxu0 0.0
        %1374 = vmatpush2.msra.mxu0 0.0
        %1375 = vmatprep.subr.mxu0 0.0
        %1376 = vmatpush2.msra.mxu0 0.0
        %1377 = vmatprep.subr.mxu0 0.0
        %1378 = vmatpush2.msra.mxu0 0.0
        %1379 = vmatprep.subr.mxu0 0.0
        %1380 = vmatpush2.msra.mxu0 0.0
        %1381 = vmatprep.subr.mxu0 0.0
        %1382 = vmatpush2.msra.mxu0 0.0
        %1383 = vmatprep.subr.mxu0 0.0
        %1384 = vmatpush2.msra.mxu0 0.0
        %1385 = vmatprep.subr.mxu0 0.0
        %1386 = vmatpush2.msra.mxu0 0.0
        %1387 = vmatprep.subr.mxu0 0.0
        %1388 = vmatpush2.msra.mxu0 0.0
        %1389 = vmatprep.subr.mxu0 0.0
        %1390 = vmatpush2.msra.mxu0 0.0
        %1391 = vmatprep.subr.mxu0 0.0
        %1392 = vmatpush2.msra.mxu0 0.0
        %1393 = vmatprep.subr.mxu0 0.0
        %1394 = vmatpush2.msra.mxu0 0.0
        %1395 = vmatprep.subr.mxu0 0.0
        %1396 = vmatpush2.msra.mxu0 0.0
        %1397 = vmatprep.mubr.f32.mxu0 0.0
        %v1398 = vand.u32 %v294, 4294901760
        %v1399 = vsub.f32 %v294, %v1398
        %v1400 = vand.u32 %v1399, 4294901760
        %v1401 = vsub.f32 %v1399, %v1400
        %v1402 = vand.u32 %v1401, 4294901760
        %1403 = vmatmul.mubr.f32.gmra.mxu0 %v1402
        %v1404 = vpop.f32.mrf.mxu0
        %v1405 = vadd.f32 0.0, %v1404
        %v1406 = vpop.f32.mrf.mxu0
        %1407 = vdwg.mxu0
        %1408 = vmatprep.subr.mxu0 0.0
        %1409 = vmatpush1.msra.mxu0 0.0
        %1410 = vmatprep.subr.mxu0 0.0
        %1411 = vmatpush1.msra.mxu0 0.0
        %1412 = vmatprep.subr.mxu0 0.0
        %1413 = vmatpush1.msra.mxu0 0.0
        %1414 = vmatprep.subr.mxu0 0.0
        %1415 = vmatpush1.msra.mxu0 0.0
        %1416 = vmatprep.subr.mxu0 0.0
        %1417 = vmatpush1.msra.mxu0 0.0
        %1418 = vmatprep.subr.mxu0 0.0
        %1419 = vmatpush1.msra.mxu0 0.0
        %1420 = vmatprep.subr.mxu0 0.0
        %1421 = vmatpush1.msra.mxu0 0.0
        %1422 = vmatprep.subr.mxu0 0.0
        %1423 = vmatpush1.msra.mxu0 0.0
        %1424 = vmatprep.subr.mxu0 0.0
        %1425 = vmatpush1.msra.mxu0 0.0
        %1426 = vmatprep.subr.mxu0 0.0
        %1427 = vmatpush1.msra.mxu0 0.0
        %1428 = vmatprep.subr.mxu0 0.0
        %1429 = vmatpush1.msra.mxu0 0.0
        %1430 = vmatprep.subr.mxu0 0.0
        %1431 = vmatpush1.msra.mxu0 0.0
        %1432 = vmatprep.subr.mxu0 0.0
        %1433 = vmatpush1.msra.mxu0 0.0
        %1434 = vmatprep.subr.mxu0 0.0
        %v1435 = vand.u32 %v291, 4294901760
        %v1436 = vsub.f32 %v291, %v1435
        %v1437 = vand.u32 %v1436, 4294901760
        %v1438 = vsub.f32 %v1436, %v1437
        %v1439 = vand.u32 %v1438, 4294901760
        %1440 = vmatpush1.msra.mxu0 %v1439
        %1441 = vmatprep.subr.mxu0 0.0
        %v1442 = vand.u32 %v286, 4294901760
        %v1443 = vsub.f32 %v286, %v1442
        %v1444 = vand.u32 %v1443, 4294901760
        %v1445 = vsub.f32 %v1443, %v1444
        %v1446 = vand.u32 %v1445, 4294901760
        %1447 = vmatpush1.msra.mxu0 %v1446
        %1448 = vmatprep.subr.mxu0 0.0
        %v1449 = vand.u32 %v281, 4294901760
        %v1450 = vsub.f32 %v281, %v1449
        %v1451 = vand.u32 %v1450, 4294901760
        %v1452 = vsub.f32 %v1450, %v1451
        %v1453 = vand.u32 %v1452, 4294901760
        %1454 = vmatpush1.msra.mxu0 %v1453
        %1455 = vmatprep.subr.mxu0 0.0
        %1456 = vmatpush2.msra.mxu0 0.0
        %1457 = vmatprep.subr.mxu0 0.0
        %1458 = vmatpush2.msra.mxu0 0.0
        %1459 = vmatprep.subr.mxu0 0.0
        %1460 = vmatpush2.msra.mxu0 0.0
        %1461 = vmatprep.subr.mxu0 0.0
        %1462 = vmatpush2.msra.mxu0 0.0
        %1463 = vmatprep.subr.mxu0 0.0
        %1464 = vmatpush2.msra.mxu0 0.0
        %1465 = vmatprep.subr.mxu0 0.0
        %1466 = vmatpush2.msra.mxu0 0.0
        %1467 = vmatprep.subr.mxu0 0.0
        %1468 = vmatpush2.msra.mxu0 0.0
        %1469 = vmatprep.subr.mxu0 0.0
        %1470 = vmatpush2.msra.mxu0 0.0
        %1471 = vmatprep.subr.mxu0 0.0
        %1472 = vmatpush2.msra.mxu0 0.0
        %1473 = vmatprep.subr.mxu0 0.0
        %1474 = vmatpush2.msra.mxu0 0.0
        %1475 = vmatprep.subr.mxu0 0.0
        %1476 = vmatpush2.msra.mxu0 0.0
        %1477 = vmatprep.subr.mxu0 0.0
        %1478 = vmatpush2.msra.mxu0 0.0
        %1479 = vmatprep.subr.mxu0 0.0
        %1480 = vmatpush2.msra.mxu0 0.0
        %1481 = vmatprep.subr.mxu0 0.0
        %1482 = vmatpush2.msra.mxu0 0.0
        %1483 = vmatprep.subr.mxu0 0.0
        %1484 = vmatpush2.msra.mxu0 0.0
        %1485 = vmatprep.subr.mxu0 0.0
        %1486 = vmatpush2.msra.mxu0 0.0
        %1487 = vmatprep.mubr.f32.mxu0 0.0
        %v1488 = vand.u32 %v294, 4294901760
        %1489 = vmatmul.mubr.f32.gmra.mxu0 %v1488
        %v1490 = vpop.f32.mrf.mxu0
        %v1491 = vadd.f32 %v1405, %v1490
        %v1492 = vpop.f32.mrf.mxu0
        %1493 = vdwg.mxu0
        %1494 = vmatprep.subr.mxu0 0.0
        %1495 = vmatpush1.msra.mxu0 0.0
        %1496 = vmatprep.subr.mxu0 0.0
        %1497 = vmatpush1.msra.mxu0 0.0
        %1498 = vmatprep.subr.mxu0 0.0
        %1499 = vmatpush1.msra.mxu0 0.0
        %1500 = vmatprep.subr.mxu0 0.0
        %1501 = vmatpush1.msra.mxu0 0.0
        %1502 = vmatprep.subr.mxu0 0.0
        %1503 = vmatpush1.msra.mxu0 0.0
        %1504 = vmatprep.subr.mxu0 0.0
        %1505 = vmatpush1.msra.mxu0 0.0
        %1506 = vmatprep.subr.mxu0 0.0
        %1507 = vmatpush1.msra.mxu0 0.0
        %1508 = vmatprep.subr.mxu0 0.0
        %1509 = vmatpush1.msra.mxu0 0.0
        %1510 = vmatprep.subr.mxu0 0.0
        %1511 = vmatpush1.msra.mxu0 0.0
        %1512 = vmatprep.subr.mxu0 0.0
        %1513 = vmatpush1.msra.mxu0 0.0
        %1514 = vmatprep.subr.mxu0 0.0
        %1515 = vmatpush1.msra.mxu0 0.0
        %1516 = vmatprep.subr.mxu0 0.0
        %1517 = vmatpush1.msra.mxu0 0.0
        %1518 = vmatprep.subr.mxu0 0.0
        %1519 = vmatpush1.msra.mxu0 0.0
        %1520 = vmatprep.subr.mxu0 0.0
        %v1521 = vand.u32 %v291, 4294901760
        %v1522 = vsub.f32 %v291, %v1521
        %1523 = vmatpush1.msra.mxu0 %v1522
        %1524 = vmatprep.subr.mxu0 0.0
        %v1525 = vand.u32 %v286, 4294901760
        %v1526 = vsub.f32 %v286, %v1525
        %1527 = vmatpush1.msra.mxu0 %v1526
        %1528 = vmatprep.subr.mxu0 0.0
        %v1529 = vand.u32 %v281, 4294901760
        %v1530 = vsub.f32 %v281, %v1529
        %1531 = vmatpush1.msra.mxu0 %v1530
        %1532 = vmatprep.subr.mxu0 0.0
        %1533 = vmatpush2.msra.mxu0 0.0
        %1534 = vmatprep.subr.mxu0 0.0
        %1535 = vmatpush2.msra.mxu0 0.0
        %1536 = vmatprep.subr.mxu0 0.0
        %1537 = vmatpush2.msra.mxu0 0.0
        %1538 = vmatprep.subr.mxu0 0.0
        %1539 = vmatpush2.msra.mxu0 0.0
        %1540 = vmatprep.subr.mxu0 0.0
        %1541 = vmatpush2.msra.mxu0 0.0
        %1542 = vmatprep.subr.mxu0 0.0
        %1543 = vmatpush2.msra.mxu0 0.0
        %1544 = vmatprep.subr.mxu0 0.0
        %1545 = vmatpush2.msra.mxu0 0.0
        %1546 = vmatprep.subr.mxu0 0.0
        %1547 = vmatpush2.msra.mxu0 0.0
        %1548 = vmatprep.subr.mxu0 0.0
        %1549 = vmatpush2.msra.mxu0 0.0
        %1550 = vmatprep.subr.mxu0 0.0
        %1551 = vmatpush2.msra.mxu0 0.0
        %1552 = vmatprep.subr.mxu0 0.0
        %1553 = vmatpush2.msra.mxu0 0.0
        %1554 = vmatprep.subr.mxu0 0.0
        %1555 = vmatpush2.msra.mxu0 0.0
        %1556 = vmatprep.subr.mxu0 0.0
        %1557 = vmatpush2.msra.mxu0 0.0
        %1558 = vmatprep.subr.mxu0 0.0
        %1559 = vmatpush2.msra.mxu0 0.0
        %1560 = vmatprep.subr.mxu0 0.0
        %1561 = vmatpush2.msra.mxu0 0.0
        %1562 = vmatprep.subr.mxu0 0.0
        %1563 = vmatpush2.msra.mxu0 0.0
        %1564 = vmatprep.mubr.f32.mxu0 0.0
        %v1565 = vand.u32 %v294, 4294901760
        %v1566 = vsub.f32 %v294, %v1565
        %1567 = vmatmul.mubr.f32.gmra.mxu0 %v1566
        %v1568 = vpop.f32.mrf.mxu0
        %v1569 = vadd.f32 %v1491, %v1568
        %v1570 = vpop.f32.mrf.mxu0
        %1571 = vdwg.mxu0
        %1572 = vmatprep.subr.mxu0 0.0
        %1573 = vmatpush1.msra.mxu0 0.0
        %1574 = vmatprep.subr.mxu0 0.0
        %1575 = vmatpush1.msra.mxu0 0.0
        %1576 = vmatprep.subr.mxu0 0.0
        %1577 = vmatpush1.msra.mxu0 0.0
        %1578 = vmatprep.subr.mxu0 0.0
        %1579 = vmatpush1.msra.mxu0 0.0
        %1580 = vmatprep.subr.mxu0 0.0
        %1581 = vmatpush1.msra.mxu0 0.0
        %1582 = vmatprep.subr.mxu0 0.0
        %1583 = vmatpush1.msra.mxu0 0.0
        %1584 = vmatprep.subr.mxu0 0.0
        %1585 = vmatpush1.msra.mxu0 0.0
        %1586 = vmatprep.subr.mxu0 0.0
        %1587 = vmatpush1.msra.mxu0 0.0
        %1588 = vmatprep.subr.mxu0 0.0
        %1589 = vmatpush1.msra.mxu0 0.0
        %1590 = vmatprep.subr.mxu0 0.0
        %1591 = vmatpush1.msra.mxu0 0.0
        %1592 = vmatprep.subr.mxu0 0.0
        %1593 = vmatpush1.msra.mxu0 0.0
        %1594 = vmatprep.subr.mxu0 0.0
        %1595 = vmatpush1.msra.mxu0 0.0
        %1596 = vmatprep.subr.mxu0 0.0
        %1597 = vmatpush1.msra.mxu0 0.0
        %1598 = vmatprep.subr.mxu0 0.0
        %v1599 = vand.u32 %v291, 4294901760
        %1600 = vmatpush1.msra.mxu0 %v1599
        %1601 = vmatprep.subr.mxu0 0.0
        %v1602 = vand.u32 %v286, 4294901760
        %1603 = vmatpush1.msra.mxu0 %v1602
        %1604 = vmatprep.subr.mxu0 0.0
        %v1605 = vand.u32 %v281, 4294901760
        %1606 = vmatpush1.msra.mxu0 %v1605
        %1607 = vmatprep.subr.mxu0 0.0
        %1608 = vmatpush2.msra.mxu0 0.0
        %1609 = vmatprep.subr.mxu0 0.0
        %1610 = vmatpush2.msra.mxu0 0.0
        %1611 = vmatprep.subr.mxu0 0.0
        %1612 = vmatpush2.msra.mxu0 0.0
        %1613 = vmatprep.subr.mxu0 0.0
        %1614 = vmatpush2.msra.mxu0 0.0
        %1615 = vmatprep.subr.mxu0 0.0
        %1616 = vmatpush2.msra.mxu0 0.0
        %1617 = vmatprep.subr.mxu0 0.0
        %1618 = vmatpush2.msra.mxu0 0.0
        %1619 = vmatprep.subr.mxu0 0.0
        %1620 = vmatpush2.msra.mxu0 0.0
        %1621 = vmatprep.subr.mxu0 0.0
        %1622 = vmatpush2.msra.mxu0 0.0
        %1623 = vmatprep.subr.mxu0 0.0
        %1624 = vmatpush2.msra.mxu0 0.0
        %1625 = vmatprep.subr.mxu0 0.0
        %1626 = vmatpush2.msra.mxu0 0.0
        %1627 = vmatprep.subr.mxu0 0.0
        %1628 = vmatpush2.msra.mxu0 0.0
        %1629 = vmatprep.subr.mxu0 0.0
        %1630 = vmatpush2.msra.mxu0 0.0
        %1631 = vmatprep.subr.mxu0 0.0
        %1632 = vmatpush2.msra.mxu0 0.0
        %1633 = vmatprep.subr.mxu0 0.0
        %1634 = vmatpush2.msra.mxu0 0.0
        %1635 = vmatprep.subr.mxu0 0.0
        %1636 = vmatpush2.msra.mxu0 0.0
        %1637 = vmatprep.subr.mxu0 0.0
        %1638 = vmatpush2.msra.mxu0 0.0
        %1639 = vmatprep.mubr.f32.mxu0 0.0
        %v1640 = vand.u32 %v294, 4294901760
        %v1641 = vsub.f32 %v294, %v1640
        %v1642 = vand.u32 %v1641, 4294901760
        %1643 = vmatmul.mubr.f32.gmra.mxu0 %v1642
        %v1644 = vpop.f32.mrf.mxu0
        %v1645 = vadd.f32 %v1569, %v1644
        %v1646 = vpop.f32.mrf.mxu0
        %1647 = vdwg.mxu0
        %1648 = vmatprep.subr.mxu0 0.0
        %1649 = vmatpush1.msra.mxu0 0.0
        %1650 = vmatprep.subr.mxu0 0.0
        %1651 = vmatpush1.msra.mxu0 0.0
        %1652 = vmatprep.subr.mxu0 0.0
        %1653 = vmatpush1.msra.mxu0 0.0
        %1654 = vmatprep.subr.mxu0 0.0
        %1655 = vmatpush1.msra.mxu0 0.0
        %1656 = vmatprep.subr.mxu0 0.0
        %1657 = vmatpush1.msra.mxu0 0.0
        %1658 = vmatprep.subr.mxu0 0.0
        %1659 = vmatpush1.msra.mxu0 0.0
        %1660 = vmatprep.subr.mxu0 0.0
        %1661 = vmatpush1.msra.mxu0 0.0
        %1662 = vmatprep.subr.mxu0 0.0
        %1663 = vmatpush1.msra.mxu0 0.0
        %1664 = vmatprep.subr.mxu0 0.0
        %1665 = vmatpush1.msra.mxu0 0.0
        %1666 = vmatprep.subr.mxu0 0.0
        %1667 = vmatpush1.msra.mxu0 0.0
        %1668 = vmatprep.subr.mxu0 0.0
        %1669 = vmatpush1.msra.mxu0 0.0
        %1670 = vmatprep.subr.mxu0 0.0
        %1671 = vmatpush1.msra.mxu0 0.0
        %1672 = vmatprep.subr.mxu0 0.0
        %1673 = vmatpush1.msra.mxu0 0.0
        %1674 = vmatprep.subr.mxu0 0.0
        %v1675 = vand.u32 %v291, 4294901760
        %v1676 = vsub.f32 %v291, %v1675
        %v1677 = vand.u32 %v1676, 4294901760
        %1678 = vmatpush1.msra.mxu0 %v1677
        %1679 = vmatprep.subr.mxu0 0.0
        %v1680 = vand.u32 %v286, 4294901760
        %v1681 = vsub.f32 %v286, %v1680
        %v1682 = vand.u32 %v1681, 4294901760
        %1683 = vmatpush1.msra.mxu0 %v1682
        %1684 = vmatprep.subr.mxu0 0.0
        %v1685 = vand.u32 %v281, 4294901760
        %v1686 = vsub.f32 %v281, %v1685
        %v1687 = vand.u32 %v1686, 4294901760
        %1688 = vmatpush1.msra.mxu0 %v1687
        %1689 = vmatprep.subr.mxu0 0.0
        %1690 = vmatpush2.msra.mxu0 0.0
        %1691 = vmatprep.subr.mxu0 0.0
        %1692 = vmatpush2.msra.mxu0 0.0
        %1693 = vmatprep.subr.mxu0 0.0
        %1694 = vmatpush2.msra.mxu0 0.0
        %1695 = vmatprep.subr.mxu0 0.0
        %1696 = vmatpush2.msra.mxu0 0.0
        %1697 = vmatprep.subr.mxu0 0.0
        %1698 = vmatpush2.msra.mxu0 0.0
        %1699 = vmatprep.subr.mxu0 0.0
        %1700 = vmatpush2.msra.mxu0 0.0
        %1701 = vmatprep.subr.mxu0 0.0
        %1702 = vmatpush2.msra.mxu0 0.0
        %1703 = vmatprep.subr.mxu0 0.0
        %1704 = vmatpush2.msra.mxu0 0.0
        %1705 = vmatprep.subr.mxu0 0.0
        %1706 = vmatpush2.msra.mxu0 0.0
        %1707 = vmatprep.subr.mxu0 0.0
        %1708 = vmatpush2.msra.mxu0 0.0
        %1709 = vmatprep.subr.mxu0 0.0
        %1710 = vmatpush2.msra.mxu0 0.0
        %1711 = vmatprep.subr.mxu0 0.0
        %1712 = vmatpush2.msra.mxu0 0.0
        %1713 = vmatprep.subr.mxu0 0.0
        %1714 = vmatpush2.msra.mxu0 0.0
        %1715 = vmatprep.subr.mxu0 0.0
        %1716 = vmatpush2.msra.mxu0 0.0
        %1717 = vmatprep.subr.mxu0 0.0
        %1718 = vmatpush2.msra.mxu0 0.0
        %1719 = vmatprep.subr.mxu0 0.0
        %1720 = vmatpush2.msra.mxu0 0.0
        %1721 = vmatprep.mubr.f32.mxu0 0.0
        %v1722 = vand.u32 %v294, 4294901760
        %1723 = vmatmul.mubr.f32.gmra.mxu0 %v1722
        %v1724 = vpop.f32.mrf.mxu0
        %v1725 = vadd.f32 %v1645, %v1724
        %v1726 = vpop.f32.mrf.mxu0
        %1727 = vdwg.mxu0
        %1728 = vmatprep.subr.mxu0 0.0
        %1729 = vmatpush1.msra.mxu0 0.0
        %1730 = vmatprep.subr.mxu0 0.0
        %1731 = vmatpush1.msra.mxu0 0.0
        %1732 = vmatprep.subr.mxu0 0.0
        %1733 = vmatpush1.msra.mxu0 0.0
        %1734 = vmatprep.subr.mxu0 0.0
        %1735 = vmatpush1.msra.mxu0 0.0
        %1736 = vmatprep.subr.mxu0 0.0
        %1737 = vmatpush1.msra.mxu0 0.0
        %1738 = vmatprep.subr.mxu0 0.0
        %1739 = vmatpush1.msra.mxu0 0.0
        %1740 = vmatprep.subr.mxu0 0.0
        %1741 = vmatpush1.msra.mxu0 0.0
        %1742 = vmatprep.subr.mxu0 0.0
        %1743 = vmatpush1.msra.mxu0 0.0
        %1744 = vmatprep.subr.mxu0 0.0
        %1745 = vmatpush1.msra.mxu0 0.0
        %1746 = vmatprep.subr.mxu0 0.0
        %1747 = vmatpush1.msra.mxu0 0.0
        %1748 = vmatprep.subr.mxu0 0.0
        %1749 = vmatpush1.msra.mxu0 0.0
        %1750 = vmatprep.subr.mxu0 0.0
        %1751 = vmatpush1.msra.mxu0 0.0
        %1752 = vmatprep.subr.mxu0 0.0
        %1753 = vmatpush1.msra.mxu0 0.0
        %1754 = vmatprep.subr.mxu0 0.0
        %v1755 = vand.u32 %v291, 4294901760
        %1756 = vmatpush1.msra.mxu0 %v1755
        %1757 = vmatprep.subr.mxu0 0.0
        %v1758 = vand.u32 %v286, 4294901760
        %1759 = vmatpush1.msra.mxu0 %v1758
        %1760 = vmatprep.subr.mxu0 0.0
        %v1761 = vand.u32 %v281, 4294901760
        %1762 = vmatpush1.msra.mxu0 %v1761
        %1763 = vmatprep.subr.mxu0 0.0
        %1764 = vmatpush2.msra.mxu0 0.0
        %1765 = vmatprep.subr.mxu0 0.0
        %1766 = vmatpush2.msra.mxu0 0.0
        %1767 = vmatprep.subr.mxu0 0.0
        %1768 = vmatpush2.msra.mxu0 0.0
        %1769 = vmatprep.subr.mxu0 0.0
        %1770 = vmatpush2.msra.mxu0 0.0
        %1771 = vmatprep.subr.mxu0 0.0
        %1772 = vmatpush2.msra.mxu0 0.0
        %1773 = vmatprep.subr.mxu0 0.0
        %1774 = vmatpush2.msra.mxu0 0.0
        %1775 = vmatprep.subr.mxu0 0.0
        %1776 = vmatpush2.msra.mxu0 0.0
        %1777 = vmatprep.subr.mxu0 0.0
        %1778 = vmatpush2.msra.mxu0 0.0
        %1779 = vmatprep.subr.mxu0 0.0
        %1780 = vmatpush2.msra.mxu0 0.0
        %1781 = vmatprep.subr.mxu0 0.0
        %1782 = vmatpush2.msra.mxu0 0.0
        %1783 = vmatprep.subr.mxu0 0.0
        %1784 = vmatpush2.msra.mxu0 0.0
        %1785 = vmatprep.subr.mxu0 0.0
        %1786 = vmatpush2.msra.mxu0 0.0
        %1787 = vmatprep.subr.mxu0 0.0
        %1788 = vmatpush2.msra.mxu0 0.0
        %1789 = vmatprep.subr.mxu0 0.0
        %1790 = vmatpush2.msra.mxu0 0.0
        %1791 = vmatprep.subr.mxu0 0.0
        %1792 = vmatpush2.msra.mxu0 0.0
        %1793 = vmatprep.subr.mxu0 0.0
        %1794 = vmatpush2.msra.mxu0 0.0
        %1795 = vmatprep.mubr.f32.mxu0 0.0
        %v1796 = vand.u32 %v294, 4294901760
        %1797 = vmatmul.mubr.f32.gmra.mxu0 %v1796
        %v1798 = vpop.f32.mrf.mxu0
        %v1799 = vadd.f32 %v1725, %v1798
        %v1800 = vpop.f32.mrf.mxu0
        %1801 = vdwg.mxu0
        %v1802 = vand.u32 2147483647, %v809
        %vm1803 = vcmp.le.f32.partialorder %v1802, 0.7853982
        %vm1804 = vcmp.lt.s32.totalorder %v809, 0
        %v1805 = vand.u32 %v809, 2139095040
        %v1806 = vshrl.u32 %v1805, 23
        %v1807 = vsub.s32 %v1806, 127
        %v1808 = vand.u32 2147483647, %v809
        %v1809 = vand.u32 %v1808, 8388607
        %v1810 = vor.u32 %v1809, 8388608
        %v1811 = vsub.s32 0, %v1810
        %v1812 = vadd.s32 %v1807, 1
        %vm1813 = vcmp.gt.s32.totalorder %v1812, 0
        %v1814 = vsel %vm1813, %v1812, 0
        %v1815 = vshrl.u32 %v1814, 5
        %v1816 = vand.u32 %v1814, 31
        %v1817 = vsub.s32 32, %v1816
        %v1818 = vshrl.u32 683565275, %v1817
        %v1819 = vshll.u32 683565275, %v1816
        %v1820 = vshrl.u32 2475754826, %v1817
        %v1821 = vor.u32 %v1819, %v1820
        %v1822 = vshll.u32 2475754826, %v1816
        %v1823 = vshrl.u32 2131351028, %v1817
        %v1824 = vor.u32 %v1822, %v1823
        %v1825 = vshll.u32 2131351028, %v1816
        %v1826 = vshrl.u32 2102212464, %v1817
        %v1827 = vor.u32 %v1825, %v1826
        %v1828 = vshll.u32 2102212464, %v1816
        %v1829 = vshrl.u32 920167782, %v1817
        %v1830 = vor.u32 %v1828, %v1829
        %v1831 = vshll.u32 920167782, %v1816
        %v1832 = vshrl.u32 1326507024, %v1817
        %v1833 = vor.u32 %v1831, %v1832
        %vm1834 = vcmp.lt.s32.totalorder %v1815, 1
        %vm1835 = vcmp.lt.s32.totalorder %v1815, 2
        %vm1836 = vcmp.lt.s32.totalorder %v1815, 3
        %vm1837 = vcmp.lt.s32.totalorder %v1815, 4
        %v1838 = vsel %vm1834, %v1818, %v1821
        %v1839 = vsel %vm1837, %v1827, 2102212464
        %v1840 = vsel %vm1836, %v1824, %v1839
        %v1841 = vsel %vm1835, %v1838, %v1840
        %v1842 = vsel %vm1834, %v1821, %v1824
        %v1843 = vsel %vm1837, %v1830, 920167782
        %v1844 = vsel %vm1836, %v1827, %v1843
        %v1845 = vsel %vm1835, %v1842, %v1844
        %v1846 = vsel %vm1834, %v1824, %v1827
        %v1847 = vsel %vm1837, %v1833, 1326507024
        %v1848 = vsel %vm1836, %v1830, %v1847
        %v1849 = vsel %vm1835, %v1846, %v1848
        %v1850 = vshll.u32 %v1810, 8
        %v1851 = vmul.u32.u64.compose %v1850, %v1849
        %v1852 = vextract.low.u32 %v1851
        %v1853 = vextract.high.u32 %v1851
        %v1854 = vmul.u32.u64.compose %v1850, %v1845
        %v1855 = vextract.low.u32 %v1854
        %v1856 = vextract.high.u32 %v1854
        %v1857 = vmul.u32 %v1850, %v1841
        %v1858 = vadd.s32 %v1853, %v1855
        %vm1859 = vc.u32 %v1853, %v1855
        %v1860 = vadd.s32 %v1856, 1
        %v1861 = vsel %vm1859, %v1860, %v1856
        %v1862 = vadd.s32 %v1857, %v1861
        %v1863 = vadd.s32 %v1862, 536870912
        %v1864 = vshrl.u32 %v1863, 30
        %v1865 = vshll.u32 %v1864, 30
        %v1866 = vsub.s32 %v1862, %v1865
        %vm1867 = vcmp.lt.s32.totalorder %v1866, 0
        %v1868 = vsub.s32 0, %v1866
        %v1869 = vsel %vm1867, %v1868, %v1866
        %v1870 = vclz %v1869
        %v1871 = vsub.s32 %v1870, 2
        %vm1872 = vcmp.gt.s32.totalorder 0, %v1871
        %v1873 = vsel %vm1872, 0, %v1871
        %v1874 = vsub.s32 32, %v1873
        %v1875 = vshll.u32 %v1866, %v1873
        %v1876 = vshrl.u32 %v1858, %v1874
        %v1877 = vor.u32 %v1875, %v1876
        %v1878 = vsub.s32 4294967266, %v1873
        %v1879 = vadd.s32 %v1878, 127
        %v1880 = vshll.u32 %v1879, 23
        %v1881 = vor.u32 4788187, %v1880
        %v1882 = vand.u32 2147483647, %v1881
        %v1884 = vcvt.s32.f32 %v1877
        %v1885 = vmul.f32 %v1884, %v1882
        %v1886 = vxor.u32 %v1885, 2147483648
        %v1887 = vsel %vm1804, %v1886, %v1885
        %v1888 = vsub.s32 4, %v1864
        %v1889 = vsel %vm1804, %v1888, %v1864
        %v1890 = vsel %vm1803, %v809, %v1887
        %v1891 = vsel %vm1803, 0, %v1889
        %v1892 = vcosq.f32.pop %v1890
        %v1893 = vsinq.f32.pop %v1890
        %vm1894 = vweird.f32 %v809
        %v1895 = vadd.s32 %v1891, 3
        %v1896 = vand.u32 %v1895, 3
        %vm1897 = vcmp.lt.s32.totalorder %v1896, 2
        %vm1898 = vcmp.eq.s32.totalorder %v1896, 0
        %v1899 = vxor.u32 %v1893, 2147483648
        %v1900 = vsel %vm1898, %v1892, %v1899
        %vm1901 = vcmp.eq.s32.totalorder %v1896, 2
        %v1902 = vxor.u32 %v1892, 2147483648
        %v1903 = vsel %vm1901, %v1902, %v1893
        %v1904 = vsel %vm1897, %v1900, %v1903
        %v1905 = vsel %vm1894, nan, %v1904
        %v1906 = vand.u32 2147483647, %v811
        %vm1907 = vcmp.le.f32.partialorder %v1906, 0.7853982
        %vm1908 = vcmp.lt.s32.totalorder %v811, 0
        %v1909 = vand.u32 %v811, 2139095040
        %v1910 = vshrl.u32 %v1909, 23
        %v1911 = vsub.s32 %v1910, 127
        %v1912 = vand.u32 2147483647, %v811
        %v1913 = vand.u32 %v1912, 8388607
        %v1914 = vor.u32 %v1913, 8388608
        %v1915 = vsub.s32 0, %v1914
        %v1916 = vadd.s32 %v1911, 1
        %vm1917 = vcmp.gt.s32.totalorder %v1916, 0
        %v1918 = vsel %vm1917, %v1916, 0
        %v1919 = vshrl.u32 %v1918, 5
        %v1920 = vand.u32 %v1918, 31
        %v1921 = vsub.s32 32, %v1920
        %v1922 = vshrl.u32 683565275, %v1921
        %v1923 = vshll.u32 683565275, %v1920
        %v1924 = vshrl.u32 2475754826, %v1921
        %v1925 = vor.u32 %v1923, %v1924
        %v1926 = vshll.u32 2475754826, %v1920
        %v1927 = vshrl.u32 2131351028, %v1921
        %v1928 = vor.u32 %v1926, %v1927
        %v1929 = vshll.u32 2131351028, %v1920
        %v1930 = vshrl.u32 2102212464, %v1921
        %v1931 = vor.u32 %v1929, %v1930
        %v1932 = vshll.u32 2102212464, %v1920
        %v1933 = vshrl.u32 920167782, %v1921
        %v1934 = vor.u32 %v1932, %v1933
        %v1935 = vshll.u32 920167782, %v1920
        %v1936 = vshrl.u32 1326507024, %v1921
        %v1937 = vor.u32 %v1935, %v1936
        %vm1938 = vcmp.lt.s32.totalorder %v1919, 1
        %vm1939 = vcmp.lt.s32.totalorder %v1919, 2
        %vm1940 = vcmp.lt.s32.totalorder %v1919, 3
        %vm1941 = vcmp.lt.s32.totalorder %v1919, 4
        %v1942 = vsel %vm1938, %v1922, %v1925
        %v1943 = vsel %vm1941, %v1931, 2102212464
        %v1944 = vsel %vm1940, %v1928, %v1943
        %v1945 = vsel %vm1939, %v1942, %v1944
        %v1946 = vsel %vm1938, %v1925, %v1928
        %v1947 = vsel %vm1941, %v1934, 920167782
        %v1948 = vsel %vm1940, %v1931, %v1947
        %v1949 = vsel %vm1939, %v1946, %v1948
        %v1950 = vsel %vm1938, %v1928, %v1931
        %v1951 = vsel %vm1941, %v1937, 1326507024
        %v1952 = vsel %vm1940, %v1934, %v1951
        %v1953 = vsel %vm1939, %v1950, %v1952
        %v1954 = vshll.u32 %v1914, 8
        %v1955 = vmul.u32.u64.compose %v1954, %v1953
        %v1956 = vextract.low.u32 %v1955
        %v1957 = vextract.high.u32 %v1955
        %v1958 = vmul.u32.u64.compose %v1954, %v1949
        %v1959 = vextract.low.u32 %v1958
        %v1960 = vextract.high.u32 %v1958
        %v1961 = vmul.u32 %v1954, %v1945
        %v1962 = vadd.s32 %v1957, %v1959
        %vm1963 = vc.u32 %v1957, %v1959
        %v1964 = vadd.s32 %v1960, 1
        %v1965 = vsel %vm1963, %v1964, %v1960
        %v1966 = vadd.s32 %v1961, %v1965
        %v1967 = vadd.s32 %v1966, 536870912
        %v1968 = vshrl.u32 %v1967, 30
        %v1969 = vshll.u32 %v1968, 30
        %v1970 = vsub.s32 %v1966, %v1969
        %vm1971 = vcmp.lt.s32.totalorder %v1970, 0
        %v1972 = vsub.s32 0, %v1970
        %v1973 = vsel %vm1971, %v1972, %v1970
        %v1974 = vclz %v1973
        %v1975 = vsub.s32 %v1974, 2
        %vm1976 = vcmp.gt.s32.totalorder 0, %v1975
        %v1977 = vsel %vm1976, 0, %v1975
        %v1978 = vsub.s32 32, %v1977
        %v1979 = vshll.u32 %v1970, %v1977
        %v1980 = vshrl.u32 %v1962, %v1978
        %v1981 = vor.u32 %v1979, %v1980
        %v1982 = vsub.s32 4294967266, %v1977
        %v1983 = vadd.s32 %v1982, 127
        %v1984 = vshll.u32 %v1983, 23
        %v1985 = vor.u32 4788187, %v1984
        %v1986 = vand.u32 2147483647, %v1985
        %v1988 = vcvt.s32.f32 %v1981
        %v1989 = vmul.f32 %v1988, %v1986
        %v1990 = vxor.u32 %v1989, 2147483648
        %v1991 = vsel %vm1908, %v1990, %v1989
        %v1992 = vsub.s32 4, %v1968
        %v1993 = vsel %vm1908, %v1992, %v1968
        %v1994 = vsel %vm1907, %v811, %v1991
        %v1995 = vsel %vm1907, 0, %v1993
        %v1996 = vcosq.f32.pop %v1994
        %v1997 = vsinq.f32.pop %v1994
        %vm1998 = vweird.f32 %v811
        %v1999 = vadd.s32 %v1995, 3
        %v2000 = vand.u32 %v1999, 3
        %vm2001 = vcmp.lt.s32.totalorder %v2000, 2
        %vm2002 = vcmp.eq.s32.totalorder %v2000, 0
        %v2003 = vxor.u32 %v1997, 2147483648
        %v2004 = vsel %vm2002, %v1996, %v2003
        %vm2005 = vcmp.eq.s32.totalorder %v2000, 2
        %v2006 = vxor.u32 %v1996, 2147483648
        %v2007 = vsel %vm2005, %v2006, %v1997
        %v2008 = vsel %vm2001, %v2004, %v2007
        %v2009 = vsel %vm1998, nan, %v2008
        %v2010 = vand.u32 2147483647, %v1326
        %vm2011 = vcmp.le.f32.partialorder %v2010, 0.7853982
        %vm2012 = vcmp.lt.s32.totalorder %v1326, 0
        %v2013 = vand.u32 %v1326, 2139095040
        %v2014 = vshrl.u32 %v2013, 23
        %v2015 = vsub.s32 %v2014, 127
        %v2016 = vand.u32 2147483647, %v1326
        %v2017 = vand.u32 %v2016, 8388607
        %v2018 = vor.u32 %v2017, 8388608
        %v2019 = vsub.s32 0, %v2018
        %v2020 = vadd.s32 %v2015, 1
        %vm2021 = vcmp.gt.s32.totalorder %v2020, 0
        %v2022 = vsel %vm2021, %v2020, 0
        %v2023 = vshrl.u32 %v2022, 5
        %v2024 = vand.u32 %v2022, 31
        %v2025 = vsub.s32 32, %v2024
        %v2026 = vshrl.u32 683565275, %v2025
        %v2027 = vshll.u32 683565275, %v2024
        %v2028 = vshrl.u32 2475754826, %v2025
        %v2029 = vor.u32 %v2027, %v2028
        %v2030 = vshll.u32 2475754826, %v2024
        %v2031 = vshrl.u32 2131351028, %v2025
        %v2032 = vor.u32 %v2030, %v2031
        %v2033 = vshll.u32 2131351028, %v2024
        %v2034 = vshrl.u32 2102212464, %v2025
        %v2035 = vor.u32 %v2033, %v2034
        %v2036 = vshll.u32 2102212464, %v2024
        %v2037 = vshrl.u32 920167782, %v2025
        %v2038 = vor.u32 %v2036, %v2037
        %v2039 = vshll.u32 920167782, %v2024
        %v2040 = vshrl.u32 1326507024, %v2025
        %v2041 = vor.u32 %v2039, %v2040
        %vm2042 = vcmp.lt.s32.totalorder %v2023, 1
        %vm2043 = vcmp.lt.s32.totalorder %v2023, 2
        %vm2044 = vcmp.lt.s32.totalorder %v2023, 3
        %vm2045 = vcmp.lt.s32.totalorder %v2023, 4
        %v2046 = vsel %vm2042, %v2026, %v2029
        %v2047 = vsel %vm2045, %v2035, 2102212464
        %v2048 = vsel %vm2044, %v2032, %v2047
        %v2049 = vsel %vm2043, %v2046, %v2048
        %v2050 = vsel %vm2042, %v2029, %v2032
        %v2051 = vsel %vm2045, %v2038, 920167782
        %v2052 = vsel %vm2044, %v2035, %v2051
        %v2053 = vsel %vm2043, %v2050, %v2052
        %v2054 = vsel %vm2042, %v2032, %v2035
        %v2055 = vsel %vm2045, %v2041, 1326507024
        %v2056 = vsel %vm2044, %v2038, %v2055
        %v2057 = vsel %vm2043, %v2054, %v2056
        %v2058 = vshll.u32 %v2018, 8
        %v2059 = vmul.u32.u64.compose %v2058, %v2057
        %v2060 = vextract.low.u32 %v2059
        %v2061 = vextract.high.u32 %v2059
        %v2062 = vmul.u32.u64.compose %v2058, %v2053
        %v2063 = vextract.low.u32 %v2062
        %v2064 = vextract.high.u32 %v2062
        %v2065 = vmul.u32 %v2058, %v2049
        %v2066 = vadd.s32 %v2061, %v2063
        %vm2067 = vc.u32 %v2061, %v2063
        %v2068 = vadd.s32 %v2064, 1
        %v2069 = vsel %vm2067, %v2068, %v2064
        %v2070 = vadd.s32 %v2065, %v2069
        %v2071 = vadd.s32 %v2070, 536870912
        %v2072 = vshrl.u32 %v2071, 30
        %v2073 = vshll.u32 %v2072, 30
        %v2074 = vsub.s32 %v2070, %v2073
        %vm2075 = vcmp.lt.s32.totalorder %v2074, 0
        %v2076 = vsub.s32 0, %v2074
        %v2077 = vsel %vm2075, %v2076, %v2074
        %v2078 = vclz %v2077
        %v2079 = vsub.s32 %v2078, 2
        %vm2080 = vcmp.gt.s32.totalorder 0, %v2079
        %v2081 = vsel %vm2080, 0, %v2079
        %v2082 = vsub.s32 32, %v2081
        %v2083 = vshll.u32 %v2074, %v2081
        %v2084 = vshrl.u32 %v2066, %v2082
        %v2085 = vor.u32 %v2083, %v2084
        %v2086 = vsub.s32 4294967266, %v2081
        %v2087 = vadd.s32 %v2086, 127
        %v2088 = vshll.u32 %v2087, 23
        %v2089 = vor.u32 4788187, %v2088
        %v2090 = vand.u32 2147483647, %v2089
        %v2092 = vcvt.s32.f32 %v2085
        %v2093 = vmul.f32 %v2092, %v2090
        %v2094 = vxor.u32 %v2093, 2147483648
        %v2095 = vsel %vm2012, %v2094, %v2093
        %v2096 = vsub.s32 4, %v2072
        %v2097 = vsel %vm2012, %v2096, %v2072
        %v2098 = vsel %vm2011, %v1326, %v2095
        %v2099 = vsel %vm2011, 0, %v2097
        %v2100 = vcosq.f32.pop %v2098
        %v2101 = vsinq.f32.pop %v2098
        %vm2102 = vweird.f32 %v1326
        %v2103 = vadd.s32 %v2099, 3
        %v2104 = vand.u32 %v2103, 3
        %vm2105 = vcmp.lt.s32.totalorder %v2104, 2
        %vm2106 = vcmp.eq.s32.totalorder %v2104, 0
        %v2107 = vxor.u32 %v2101, 2147483648
        %v2108 = vsel %vm2106, %v2100, %v2107
        %vm2109 = vcmp.eq.s32.totalorder %v2104, 2
        %v2110 = vxor.u32 %v2100, 2147483648
        %v2111 = vsel %vm2109, %v2110, %v2101
        %v2112 = vsel %vm2105, %v2108, %v2111
        %v2113 = vsel %vm2102, nan, %v2112
        %v2114 = vand.u32 2147483647, %v1328
        %vm2115 = vcmp.le.f32.partialorder %v2114, 0.7853982
        %vm2116 = vcmp.lt.s32.totalorder %v1328, 0
        %v2117 = vand.u32 %v1328, 2139095040
        %v2118 = vshrl.u32 %v2117, 23
        %v2119 = vsub.s32 %v2118, 127
        %v2120 = vand.u32 2147483647, %v1328
        %v2121 = vand.u32 %v2120, 8388607
        %v2122 = vor.u32 %v2121, 8388608
        %v2123 = vsub.s32 0, %v2122
        %v2124 = vadd.s32 %v2119, 1
        %vm2125 = vcmp.gt.s32.totalorder %v2124, 0
        %v2126 = vsel %vm2125, %v2124, 0
        %v2127 = vshrl.u32 %v2126, 5
        %v2128 = vand.u32 %v2126, 31
        %v2129 = vsub.s32 32, %v2128
        %v2130 = vshrl.u32 683565275, %v2129
        %v2131 = vshll.u32 683565275, %v2128
        %v2132 = vshrl.u32 2475754826, %v2129
        %v2133 = vor.u32 %v2131, %v2132
        %v2134 = vshll.u32 2475754826, %v2128
        %v2135 = vshrl.u32 2131351028, %v2129
        %v2136 = vor.u32 %v2134, %v2135
        %v2137 = vshll.u32 2131351028, %v2128
        %v2138 = vshrl.u32 2102212464, %v2129
        %v2139 = vor.u32 %v2137, %v2138
        %v2140 = vshll.u32 2102212464, %v2128
        %v2141 = vshrl.u32 920167782, %v2129
        %v2142 = vor.u32 %v2140, %v2141
        %v2143 = vshll.u32 920167782, %v2128
        %v2144 = vshrl.u32 1326507024, %v2129
        %v2145 = vor.u32 %v2143, %v2144
        %vm2146 = vcmp.lt.s32.totalorder %v2127, 1
        %vm2147 = vcmp.lt.s32.totalorder %v2127, 2
        %vm2148 = vcmp.lt.s32.totalorder %v2127, 3
        %vm2149 = vcmp.lt.s32.totalorder %v2127, 4
        %v2150 = vsel %vm2146, %v2130, %v2133
        %v2151 = vsel %vm2149, %v2139, 2102212464
        %v2152 = vsel %vm2148, %v2136, %v2151
        %v2153 = vsel %vm2147, %v2150, %v2152
        %v2154 = vsel %vm2146, %v2133, %v2136
        %v2155 = vsel %vm2149, %v2142, 920167782
        %v2156 = vsel %vm2148, %v2139, %v2155
        %v2157 = vsel %vm2147, %v2154, %v2156
        %v2158 = vsel %vm2146, %v2136, %v2139
        %v2159 = vsel %vm2149, %v2145, 1326507024
        %v2160 = vsel %vm2148, %v2142, %v2159
        %v2161 = vsel %vm2147, %v2158, %v2160
        %v2162 = vshll.u32 %v2122, 8
        %v2163 = vmul.u32.u64.compose %v2162, %v2161
        %v2164 = vextract.low.u32 %v2163
        %v2165 = vextract.high.u32 %v2163
        %v2166 = vmul.u32.u64.compose %v2162, %v2157
        %v2167 = vextract.low.u32 %v2166
        %v2168 = vextract.high.u32 %v2166
        %v2169 = vmul.u32 %v2162, %v2153
        %v2170 = vadd.s32 %v2165, %v2167
        %vm2171 = vc.u32 %v2165, %v2167
        %v2172 = vadd.s32 %v2168, 1
        %v2173 = vsel %vm2171, %v2172, %v2168
        %v2174 = vadd.s32 %v2169, %v2173
        %v2175 = vadd.s32 %v2174, 536870912
        %v2176 = vshrl.u32 %v2175, 30
        %v2177 = vshll.u32 %v2176, 30
        %v2178 = vsub.s32 %v2174, %v2177
        %vm2179 = vcmp.lt.s32.totalorder %v2178, 0
        %v2180 = vsub.s32 0, %v2178
        %v2181 = vsel %vm2179, %v2180, %v2178
        %v2182 = vclz %v2181
        %v2183 = vsub.s32 %v2182, 2
        %vm2184 = vcmp.gt.s32.totalorder 0, %v2183
        %v2185 = vsel %vm2184, 0, %v2183
        %v2186 = vsub.s32 32, %v2185
        %v2187 = vshll.u32 %v2178, %v2185
        %v2188 = vshrl.u32 %v2170, %v2186
        %v2189 = vor.u32 %v2187, %v2188
        %v2190 = vsub.s32 4294967266, %v2185
        %v2191 = vadd.s32 %v2190, 127
        %v2192 = vshll.u32 %v2191, 23
        %v2193 = vor.u32 4788187, %v2192
        %v2194 = vand.u32 2147483647, %v2193
        %v2196 = vcvt.s32.f32 %v2189
        %v2197 = vmul.f32 %v2196, %v2194
        %v2198 = vxor.u32 %v2197, 2147483648
        %v2199 = vsel %vm2116, %v2198, %v2197
        %v2200 = vsub.s32 4, %v2176
        %v2201 = vsel %vm2116, %v2200, %v2176
        %v2202 = vsel %vm2115, %v1328, %v2199
        %v2203 = vsel %vm2115, 0, %v2201
        %v2204 = vcosq.f32.pop %v2202
        %v2205 = vsinq.f32.pop %v2202
        %vm2206 = vweird.f32 %v1328
        %v2207 = vadd.s32 %v2203, 3
        %v2208 = vand.u32 %v2207, 3
        %vm2209 = vcmp.lt.s32.totalorder %v2208, 2
        %vm2210 = vcmp.eq.s32.totalorder %v2208, 0
        %v2211 = vxor.u32 %v2205, 2147483648
        %v2212 = vsel %vm2210, %v2204, %v2211
        %vm2213 = vcmp.eq.s32.totalorder %v2208, 2
        %v2214 = vxor.u32 %v2204, 2147483648
        %v2215 = vsel %vm2213, %v2214, %v2205
        %v2216 = vsel %vm2209, %v2212, %v2215
        %v2217 = vsel %vm2206, nan, %v2216
        %v2218 = vand.u32 2147483647, %v1799
        %vm2219 = vcmp.le.f32.partialorder %v2218, 0.7853982
        %vm2220 = vcmp.lt.s32.totalorder %v1799, 0
        %v2221 = vand.u32 %v1799, 2139095040
        %v2222 = vshrl.u32 %v2221, 23
        %v2223 = vsub.s32 %v2222, 127
        %v2224 = vand.u32 2147483647, %v1799
        %v2225 = vand.u32 %v2224, 8388607
        %v2226 = vor.u32 %v2225, 8388608
        %v2227 = vsub.s32 0, %v2226
        %v2228 = vadd.s32 %v2223, 1
        %vm2229 = vcmp.gt.s32.totalorder %v2228, 0
        %v2230 = vsel %vm2229, %v2228, 0
        %v2231 = vshrl.u32 %v2230, 5
        %v2232 = vand.u32 %v2230, 31
        %v2233 = vsub.s32 32, %v2232
        %v2234 = vshrl.u32 683565275, %v2233
        %v2235 = vshll.u32 683565275, %v2232
        %v2236 = vshrl.u32 2475754826, %v2233
        %v2237 = vor.u32 %v2235, %v2236
        %v2238 = vshll.u32 2475754826, %v2232
        %v2239 = vshrl.u32 2131351028, %v2233
        %v2240 = vor.u32 %v2238, %v2239
        %v2241 = vshll.u32 2131351028, %v2232
        %v2242 = vshrl.u32 2102212464, %v2233
        %v2243 = vor.u32 %v2241, %v2242
        %v2244 = vshll.u32 2102212464, %v2232
        %v2245 = vshrl.u32 920167782, %v2233
        %v2246 = vor.u32 %v2244, %v2245
        %v2247 = vshll.u32 920167782, %v2232
        %v2248 = vshrl.u32 1326507024, %v2233
        %v2249 = vor.u32 %v2247, %v2248
        %vm2250 = vcmp.lt.s32.totalorder %v2231, 1
        %vm2251 = vcmp.lt.s32.totalorder %v2231, 2
        %vm2252 = vcmp.lt.s32.totalorder %v2231, 3
        %vm2253 = vcmp.lt.s32.totalorder %v2231, 4
        %v2254 = vsel %vm2250, %v2234, %v2237
        %v2255 = vsel %vm2253, %v2243, 2102212464
        %v2256 = vsel %vm2252, %v2240, %v2255
        %v2257 = vsel %vm2251, %v2254, %v2256
        %v2258 = vsel %vm2250, %v2237, %v2240
        %v2259 = vsel %vm2253, %v2246, 920167782
        %v2260 = vsel %vm2252, %v2243, %v2259
        %v2261 = vsel %vm2251, %v2258, %v2260
        %v2262 = vsel %vm2250, %v2240, %v2243
        %v2263 = vsel %vm2253, %v2249, 1326507024
        %v2264 = vsel %vm2252, %v2246, %v2263
        %v2265 = vsel %vm2251, %v2262, %v2264
        %v2266 = vshll.u32 %v2226, 8
        %v2267 = vmul.u32.u64.compose %v2266, %v2265
        %v2268 = vextract.low.u32 %v2267
        %v2269 = vextract.high.u32 %v2267
        %v2270 = vmul.u32.u64.compose %v2266, %v2261
        %v2271 = vextract.low.u32 %v2270
        %v2272 = vextract.high.u32 %v2270
        %v2273 = vmul.u32 %v2266, %v2257
        %v2274 = vadd.s32 %v2269, %v2271
        %vm2275 = vc.u32 %v2269, %v2271
        %v2276 = vadd.s32 %v2272, 1
        %v2277 = vsel %vm2275, %v2276, %v2272
        %v2278 = vadd.s32 %v2273, %v2277
        %v2279 = vadd.s32 %v2278, 536870912
        %v2280 = vshrl.u32 %v2279, 30
        %v2281 = vshll.u32 %v2280, 30
        %v2282 = vsub.s32 %v2278, %v2281
        %vm2283 = vcmp.lt.s32.totalorder %v2282, 0
        %v2284 = vsub.s32 0, %v2282
        %v2285 = vsel %vm2283, %v2284, %v2282
        %v2286 = vclz %v2285
        %v2287 = vsub.s32 %v2286, 2
        %vm2288 = vcmp.gt.s32.totalorder 0, %v2287
        %v2289 = vsel %vm2288, 0, %v2287
        %v2290 = vsub.s32 32, %v2289
        %v2291 = vshll.u32 %v2282, %v2289
        %v2292 = vshrl.u32 %v2274, %v2290
        %v2293 = vor.u32 %v2291, %v2292
        %v2294 = vsub.s32 4294967266, %v2289
        %v2295 = vadd.s32 %v2294, 127
        %v2296 = vshll.u32 %v2295, 23
        %v2297 = vor.u32 4788187, %v2296
        %v2298 = vand.u32 2147483647, %v2297
        %v2300 = vcvt.s32.f32 %v2293
        %v2301 = vmul.f32 %v2300, %v2298
        %v2302 = vxor.u32 %v2301, 2147483648
        %v2303 = vsel %vm2220, %v2302, %v2301
        %v2304 = vsub.s32 4, %v2280
        %v2305 = vsel %vm2220, %v2304, %v2280
        %v2306 = vsel %vm2219, %v1799, %v2303
        %v2307 = vsel %vm2219, 0, %v2305
        %v2308 = vcosq.f32.pop %v2306
        %v2309 = vsinq.f32.pop %v2306
        %vm2310 = vweird.f32 %v1799
        %v2311 = vadd.s32 %v2307, 3
        %v2312 = vand.u32 %v2311, 3
        %vm2313 = vcmp.lt.s32.totalorder %v2312, 2
        %vm2314 = vcmp.eq.s32.totalorder %v2312, 0
        %v2315 = vxor.u32 %v2309, 2147483648
        %v2316 = vsel %vm2314, %v2308, %v2315
        %vm2317 = vcmp.eq.s32.totalorder %v2312, 2
        %v2318 = vxor.u32 %v2308, 2147483648
        %v2319 = vsel %vm2317, %v2318, %v2309
        %v2320 = vsel %vm2313, %v2316, %v2319
        %v2321 = vsel %vm2310, nan, %v2320
        %2322 = vst [vmem:[%s260] sm:$0xff] %v1905
        %2323 = vst [vmem:[%s260 + $0x8] sm:$0xff] %v2009
        %2324 = vst [vmem:[%s260 + $0x10] sm:$0xff] %v2113
        %2325 = vst [vmem:[%s260 + $0x18] sm:$0xff] %v2217
        %2326 = vst [vmem:[%s260 + $0x20] sm:$0xff] %v2321
        %v2327 = vld [vmem:[%s275] sm:$0xff]
        %v2328 = vld [vmem:[#allocation5] sm:$0xff]
        %v2329 = vld [vmem:[#allocation5 + $0x8] sm:$0xff]
        %vm2330 = vcmask 64512
        %v2332 = vsel %vm2330, %v2327, 0
        %2334 = vmatprep.subr.mxu0 0.0
        %2335 = vmatpush1.msra.mxu0 0.0
        %2336 = vmatprep.subr.mxu0 0.0
        %2337 = vmatpush1.msra.mxu0 0.0
        %2338 = vmatprep.subr.mxu0 0.0
        %2339 = vmatpush1.msra.mxu0 0.0
        %2340 = vmatprep.subr.mxu0 0.0
        %2341 = vmatpush1.msra.mxu0 0.0
        %2342 = vmatprep.subr.mxu0 0.0
        %2343 = vmatpush1.msra.mxu0 0.0
        %2344 = vmatprep.subr.mxu0 0.0
        %2345 = vmatpush1.msra.mxu0 0.0
        %2346 = vmatprep.subr.mxu0 0.0
        %2347 = vmatpush1.msra.mxu0 0.0
        %2348 = vmatprep.subr.mxu0 0.0
        %2349 = vmatpush1.msra.mxu0 0.0
        %2350 = vmatprep.subr.mxu0 0.0
        %2351 = vmatpush1.msra.mxu0 0.0
        %2352 = vmatprep.subr.mxu0 0.0
        %2353 = vmatpush1.msra.mxu0 0.0
        %2354 = vmatprep.subr.mxu0 0.0
        %2355 = vmatpush1.msra.mxu0 0.0
        %2356 = vmatprep.subr.mxu0 0.0
        %2357 = vmatpush1.msra.mxu0 0.0
        %2358 = vmatprep.subr.mxu0 0.0
        %2359 = vmatpush1.msra.mxu0 0.0
        %2360 = vmatprep.subr.mxu0 0.0
        %2361 = vmatpush1.msra.mxu0 0.0
        %2362 = vmatprep.subr.mxu0 0.0
        %2363 = vmatpush1.msra.mxu0 0.0
        %v2364 = vand.u32 %v2329, 4294901760
        %2365 = vmatprep.subr.mxu0 %v2364
        %v2366 = vand.u32 %v2328, 4294901760
        %2367 = vmatpush1.msra.mxu0 %v2366
        %2368 = vmatprep.subr.mxu0 0.0
        %2369 = vmatpush2.msra.mxu0 0.0
        %2370 = vmatprep.subr.mxu0 0.0
        %2371 = vmatpush2.msra.mxu0 0.0
        %2372 = vmatprep.subr.mxu0 0.0
        %2373 = vmatpush2.msra.mxu0 0.0
        %2374 = vmatprep.subr.mxu0 0.0
        %2375 = vmatpush2.msra.mxu0 0.0
        %2376 = vmatprep.subr.mxu0 0.0
        %2377 = vmatpush2.msra.mxu0 0.0
        %2378 = vmatprep.subr.mxu0 0.0
        %2379 = vmatpush2.msra.mxu0 0.0
        %2380 = vmatprep.subr.mxu0 0.0
        %2381 = vmatpush2.msra.mxu0 0.0
        %2382 = vmatprep.subr.mxu0 0.0
        %2383 = vmatpush2.msra.mxu0 0.0
        %2384 = vmatprep.subr.mxu0 0.0
        %2385 = vmatpush2.msra.mxu0 0.0
        %2386 = vmatprep.subr.mxu0 0.0
        %2387 = vmatpush2.msra.mxu0 0.0
        %2388 = vmatprep.subr.mxu0 0.0
        %2389 = vmatpush2.msra.mxu0 0.0
        %2390 = vmatprep.subr.mxu0 0.0
        %2391 = vmatpush2.msra.mxu0 0.0
        %2392 = vmatprep.subr.mxu0 0.0
        %2393 = vmatpush2.msra.mxu0 0.0
        %2394 = vmatprep.subr.mxu0 0.0
        %2395 = vmatpush2.msra.mxu0 0.0
        %2396 = vmatprep.subr.mxu0 0.0
        %2397 = vmatpush2.msra.mxu0 0.0
        %2398 = vmatprep.subr.mxu0 0.0
        %2399 = vmatpush2.msra.mxu0 0.0
        %2400 = vmatprep.mubr.f32.mxu0 0.0
        %v2401 = vand.u32 %v2332, 4294901760
        %v2402 = vsub.f32 %v2332, %v2401
        %v2403 = vand.u32 %v2402, 4294901760
        %v2404 = vsub.f32 %v2402, %v2403
        %v2405 = vand.u32 %v2404, 4294901760
        %2406 = vmatmul.mubr.f32.gmra.mxu0 %v2405
        %v2407 = vpop.f32.mrf.mxu0
        %v2408 = vadd.f32 0.0, %v2407
        %v2409 = vpop.f32.mrf.mxu0
        %v2410 = vadd.f32 0.0, %v2409
        %2411 = vdwg.mxu0
        %2412 = vmatprep.subr.mxu0 0.0
        %2413 = vmatpush1.msra.mxu0 0.0
        %2414 = vmatprep.subr.mxu0 0.0
        %2415 = vmatpush1.msra.mxu0 0.0
        %2416 = vmatprep.subr.mxu0 0.0
        %2417 = vmatpush1.msra.mxu0 0.0
        %2418 = vmatprep.subr.mxu0 0.0
        %2419 = vmatpush1.msra.mxu0 0.0
        %2420 = vmatprep.subr.mxu0 0.0
        %2421 = vmatpush1.msra.mxu0 0.0
        %2422 = vmatprep.subr.mxu0 0.0
        %2423 = vmatpush1.msra.mxu0 0.0
        %2424 = vmatprep.subr.mxu0 0.0
        %2425 = vmatpush1.msra.mxu0 0.0
        %2426 = vmatprep.subr.mxu0 0.0
        %2427 = vmatpush1.msra.mxu0 0.0
        %2428 = vmatprep.subr.mxu0 0.0
        %2429 = vmatpush1.msra.mxu0 0.0
        %2430 = vmatprep.subr.mxu0 0.0
        %2431 = vmatpush1.msra.mxu0 0.0
        %2432 = vmatprep.subr.mxu0 0.0
        %2433 = vmatpush1.msra.mxu0 0.0
        %2434 = vmatprep.subr.mxu0 0.0
        %2435 = vmatpush1.msra.mxu0 0.0
        %2436 = vmatprep.subr.mxu0 0.0
        %2437 = vmatpush1.msra.mxu0 0.0
        %2438 = vmatprep.subr.mxu0 0.0
        %2439 = vmatpush1.msra.mxu0 0.0
        %2440 = vmatprep.subr.mxu0 0.0
        %2441 = vmatpush1.msra.mxu0 0.0
        %v2442 = vand.u32 %v2329, 4294901760
        %v2443 = vsub.f32 %v2329, %v2442
        %v2444 = vand.u32 %v2443, 4294901760
        %v2445 = vsub.f32 %v2443, %v2444
        %v2446 = vand.u32 %v2445, 4294901760
        %2447 = vmatprep.subr.mxu0 %v2446
        %v2448 = vand.u32 %v2328, 4294901760
        %v2449 = vsub.f32 %v2328, %v2448
        %v2450 = vand.u32 %v2449, 4294901760
        %v2451 = vsub.f32 %v2449, %v2450
        %v2452 = vand.u32 %v2451, 4294901760
        %2453 = vmatpush1.msra.mxu0 %v2452
        %2454 = vmatprep.subr.mxu0 0.0
        %2455 = vmatpush2.msra.mxu0 0.0
        %2456 = vmatprep.subr.mxu0 0.0
        %2457 = vmatpush2.msra.mxu0 0.0
        %2458 = vmatprep.subr.mxu0 0.0
        %2459 = vmatpush2.msra.mxu0 0.0
        %2460 = vmatprep.subr.mxu0 0.0
        %2461 = vmatpush2.msra.mxu0 0.0
        %2462 = vmatprep.subr.mxu0 0.0
        %2463 = vmatpush2.msra.mxu0 0.0
        %2464 = vmatprep.subr.mxu0 0.0
        %2465 = vmatpush2.msra.mxu0 0.0
        %2466 = vmatprep.subr.mxu0 0.0
        %2467 = vmatpush2.msra.mxu0 0.0
        %2468 = vmatprep.subr.mxu0 0.0
        %2469 = vmatpush2.msra.mxu0 0.0
        %2470 = vmatprep.subr.mxu0 0.0
        %2471 = vmatpush2.msra.mxu0 0.0
        %2472 = vmatprep.subr.mxu0 0.0
        %2473 = vmatpush2.msra.mxu0 0.0
        %2474 = vmatprep.subr.mxu0 0.0
        %2475 = vmatpush2.msra.mxu0 0.0
        %2476 = vmatprep.subr.mxu0 0.0
        %2477 = vmatpush2.msra.mxu0 0.0
        %2478 = vmatprep.subr.mxu0 0.0
        %2479 = vmatpush2.msra.mxu0 0.0
        %2480 = vmatprep.subr.mxu0 0.0
        %2481 = vmatpush2.msra.mxu0 0.0
        %2482 = vmatprep.subr.mxu0 0.0
        %2483 = vmatpush2.msra.mxu0 0.0
        %2484 = vmatprep.subr.mxu0 0.0
        %2485 = vmatpush2.msra.mxu0 0.0
        %2486 = vmatprep.mubr.f32.mxu0 0.0
        %v2487 = vand.u32 %v2332, 4294901760
        %2488 = vmatmul.mubr.f32.gmra.mxu0 %v2487
        %v2489 = vpop.f32.mrf.mxu0
        %v2490 = vadd.f32 %v2408, %v2489
        %v2491 = vpop.f32.mrf.mxu0
        %v2492 = vadd.f32 %v2410, %v2491
        %2493 = vdwg.mxu0
        %2494 = vmatprep.subr.mxu0 0.0
        %2495 = vmatpush1.msra.mxu0 0.0
        %2496 = vmatprep.subr.mxu0 0.0
        %2497 = vmatpush1.msra.mxu0 0.0
        %2498 = vmatprep.subr.mxu0 0.0
        %2499 = vmatpush1.msra.mxu0 0.0
        %2500 = vmatprep.subr.mxu0 0.0
        %2501 = vmatpush1.msra.mxu0 0.0
        %2502 = vmatprep.subr.mxu0 0.0
        %2503 = vmatpush1.msra.mxu0 0.0
        %2504 = vmatprep.subr.mxu0 0.0
        %2505 = vmatpush1.msra.mxu0 0.0
        %2506 = vmatprep.subr.mxu0 0.0
        %2507 = vmatpush1.msra.mxu0 0.0
        %2508 = vmatprep.subr.mxu0 0.0
        %2509 = vmatpush1.msra.mxu0 0.0
        %2510 = vmatprep.subr.mxu0 0.0
        %2511 = vmatpush1.msra.mxu0 0.0
        %2512 = vmatprep.subr.mxu0 0.0
        %2513 = vmatpush1.msra.mxu0 0.0
        %2514 = vmatprep.subr.mxu0 0.0
        %2515 = vmatpush1.msra.mxu0 0.0
        %2516 = vmatprep.subr.mxu0 0.0
        %2517 = vmatpush1.msra.mxu0 0.0
        %2518 = vmatprep.subr.mxu0 0.0
        %2519 = vmatpush1.msra.mxu0 0.0
        %2520 = vmatprep.subr.mxu0 0.0
        %2521 = vmatpush1.msra.mxu0 0.0
        %2522 = vmatprep.subr.mxu0 0.0
        %2523 = vmatpush1.msra.mxu0 0.0
        %v2524 = vand.u32 %v2329, 4294901760
        %v2525 = vsub.f32 %v2329, %v2524
        %2526 = vmatprep.subr.mxu0 %v2525
        %v2527 = vand.u32 %v2328, 4294901760
        %v2528 = vsub.f32 %v2328, %v2527
        %2529 = vmatpush1.msra.mxu0 %v2528
        %2530 = vmatprep.subr.mxu0 0.0
        %2531 = vmatpush2.msra.mxu0 0.0
        %2532 = vmatprep.subr.mxu0 0.0
        %2533 = vmatpush2.msra.mxu0 0.0
        %2534 = vmatprep.subr.mxu0 0.0
        %2535 = vmatpush2.msra.mxu0 0.0
        %2536 = vmatprep.subr.mxu0 0.0
        %2537 = vmatpush2.msra.mxu0 0.0
        %2538 = vmatprep.subr.mxu0 0.0
        %2539 = vmatpush2.msra.mxu0 0.0
        %2540 = vmatprep.subr.mxu0 0.0
        %2541 = vmatpush2.msra.mxu0 0.0
        %2542 = vmatprep.subr.mxu0 0.0
        %2543 = vmatpush2.msra.mxu0 0.0
        %2544 = vmatprep.subr.mxu0 0.0
        %2545 = vmatpush2.msra.mxu0 0.0
        %2546 = vmatprep.subr.mxu0 0.0
        %2547 = vmatpush2.msra.mxu0 0.0
        %2548 = vmatprep.subr.mxu0 0.0
        %2549 = vmatpush2.msra.mxu0 0.0
        %2550 = vmatprep.subr.mxu0 0.0
        %2551 = vmatpush2.msra.mxu0 0.0
        %2552 = vmatprep.subr.mxu0 0.0
        %2553 = vmatpush2.msra.mxu0 0.0
        %2554 = vmatprep.subr.mxu0 0.0
        %2555 = vmatpush2.msra.mxu0 0.0
        %2556 = vmatprep.subr.mxu0 0.0
        %2557 = vmatpush2.msra.mxu0 0.0
        %2558 = vmatprep.subr.mxu0 0.0
        %2559 = vmatpush2.msra.mxu0 0.0
        %2560 = vmatprep.subr.mxu0 0.0
        %2561 = vmatpush2.msra.mxu0 0.0
        %2562 = vmatprep.mubr.f32.mxu0 0.0
        %v2563 = vand.u32 %v2332, 4294901760
        %v2564 = vsub.f32 %v2332, %v2563
        %2565 = vmatmul.mubr.f32.gmra.mxu0 %v2564
        %v2566 = vpop.f32.mrf.mxu0
        %v2567 = vadd.f32 %v2490, %v2566
        %v2568 = vpop.f32.mrf.mxu0
        %v2569 = vadd.f32 %v2492, %v2568
        %2570 = vdwg.mxu0
        %2571 = vmatprep.subr.mxu0 0.0
        %2572 = vmatpush1.msra.mxu0 0.0
        %2573 = vmatprep.subr.mxu0 0.0
        %2574 = vmatpush1.msra.mxu0 0.0
        %2575 = vmatprep.subr.mxu0 0.0
        %2576 = vmatpush1.msra.mxu0 0.0
        %2577 = vmatprep.subr.mxu0 0.0
        %2578 = vmatpush1.msra.mxu0 0.0
        %2579 = vmatprep.subr.mxu0 0.0
        %2580 = vmatpush1.msra.mxu0 0.0
        %2581 = vmatprep.subr.mxu0 0.0
        %2582 = vmatpush1.msra.mxu0 0.0
        %2583 = vmatprep.subr.mxu0 0.0
        %2584 = vmatpush1.msra.mxu0 0.0
        %2585 = vmatprep.subr.mxu0 0.0
        %2586 = vmatpush1.msra.mxu0 0.0
        %2587 = vmatprep.subr.mxu0 0.0
        %2588 = vmatpush1.msra.mxu0 0.0
        %2589 = vmatprep.subr.mxu0 0.0
        %2590 = vmatpush1.msra.mxu0 0.0
        %2591 = vmatprep.subr.mxu0 0.0
        %2592 = vmatpush1.msra.mxu0 0.0
        %2593 = vmatprep.subr.mxu0 0.0
        %2594 = vmatpush1.msra.mxu0 0.0
        %2595 = vmatprep.subr.mxu0 0.0
        %2596 = vmatpush1.msra.mxu0 0.0
        %2597 = vmatprep.subr.mxu0 0.0
        %2598 = vmatpush1.msra.mxu0 0.0
        %2599 = vmatprep.subr.mxu0 0.0
        %2600 = vmatpush1.msra.mxu0 0.0
        %v2601 = vand.u32 %v2329, 4294901760
        %2602 = vmatprep.subr.mxu0 %v2601
        %v2603 = vand.u32 %v2328, 4294901760
        %2604 = vmatpush1.msra.mxu0 %v2603
        %2605 = vmatprep.subr.mxu0 0.0
        %2606 = vmatpush2.msra.mxu0 0.0
        %2607 = vmatprep.subr.mxu0 0.0
        %2608 = vmatpush2.msra.mxu0 0.0
        %2609 = vmatprep.subr.mxu0 0.0
        %2610 = vmatpush2.msra.mxu0 0.0
        %2611 = vmatprep.subr.mxu0 0.0
        %2612 = vmatpush2.msra.mxu0 0.0
        %2613 = vmatprep.subr.mxu0 0.0
        %2614 = vmatpush2.msra.mxu0 0.0
        %2615 = vmatprep.subr.mxu0 0.0
        %2616 = vmatpush2.msra.mxu0 0.0
        %2617 = vmatprep.subr.mxu0 0.0
        %2618 = vmatpush2.msra.mxu0 0.0
        %2619 = vmatprep.subr.mxu0 0.0
        %2620 = vmatpush2.msra.mxu0 0.0
        %2621 = vmatprep.subr.mxu0 0.0
        %2622 = vmatpush2.msra.mxu0 0.0
        %2623 = vmatprep.subr.mxu0 0.0
        %2624 = vmatpush2.msra.mxu0 0.0
        %2625 = vmatprep.subr.mxu0 0.0
        %2626 = vmatpush2.msra.mxu0 0.0
        %2627 = vmatprep.subr.mxu0 0.0
        %2628 = vmatpush2.msra.mxu0 0.0
        %2629 = vmatprep.subr.mxu0 0.0
        %2630 = vmatpush2.msra.mxu0 0.0
        %2631 = vmatprep.subr.mxu0 0.0
        %2632 = vmatpush2.msra.mxu0 0.0
        %2633 = vmatprep.subr.mxu0 0.0
        %2634 = vmatpush2.msra.mxu0 0.0
        %2635 = vmatprep.subr.mxu0 0.0
        %2636 = vmatpush2.msra.mxu0 0.0
        %2637 = vmatprep.mubr.f32.mxu0 0.0
        %v2638 = vand.u32 %v2332, 4294901760
        %v2639 = vsub.f32 %v2332, %v2638
        %v2640 = vand.u32 %v2639, 4294901760
        %2641 = vmatmul.mubr.f32.gmra.mxu0 %v2640
        %v2642 = vpop.f32.mrf.mxu0
        %v2643 = vadd.f32 %v2567, %v2642
        %v2644 = vpop.f32.mrf.mxu0
        %v2645 = vadd.f32 %v2569, %v2644
        %2646 = vdwg.mxu0
        %2647 = vmatprep.subr.mxu0 0.0
        %2648 = vmatpush1.msra.mxu0 0.0
        %2649 = vmatprep.subr.mxu0 0.0
        %2650 = vmatpush1.msra.mxu0 0.0
        %2651 = vmatprep.subr.mxu0 0.0
        %2652 = vmatpush1.msra.mxu0 0.0
        %2653 = vmatprep.subr.mxu0 0.0
        %2654 = vmatpush1.msra.mxu0 0.0
        %2655 = vmatprep.subr.mxu0 0.0
        %2656 = vmatpush1.msra.mxu0 0.0
        %2657 = vmatprep.subr.mxu0 0.0
        %2658 = vmatpush1.msra.mxu0 0.0
        %2659 = vmatprep.subr.mxu0 0.0
        %2660 = vmatpush1.msra.mxu0 0.0
        %2661 = vmatprep.subr.mxu0 0.0
        %2662 = vmatpush1.msra.mxu0 0.0
        %2663 = vmatprep.subr.mxu0 0.0
        %2664 = vmatpush1.msra.mxu0 0.0
        %2665 = vmatprep.subr.mxu0 0.0
        %2666 = vmatpush1.msra.mxu0 0.0
        %2667 = vmatprep.subr.mxu0 0.0
        %2668 = vmatpush1.msra.mxu0 0.0
        %2669 = vmatprep.subr.mxu0 0.0
        %2670 = vmatpush1.msra.mxu0 0.0
        %2671 = vmatprep.subr.mxu0 0.0
        %2672 = vmatpush1.msra.mxu0 0.0
        %2673 = vmatprep.subr.mxu0 0.0
        %2674 = vmatpush1.msra.mxu0 0.0
        %2675 = vmatprep.subr.mxu0 0.0
        %2676 = vmatpush1.msra.mxu0 0.0
        %v2677 = vand.u32 %v2329, 4294901760
        %v2678 = vsub.f32 %v2329, %v2677
        %v2679 = vand.u32 %v2678, 4294901760
        %2680 = vmatprep.subr.mxu0 %v2679
        %v2681 = vand.u32 %v2328, 4294901760
        %v2682 = vsub.f32 %v2328, %v2681
        %v2683 = vand.u32 %v2682, 4294901760
        %2684 = vmatpush1.msra.mxu0 %v2683
        %2685 = vmatprep.subr.mxu0 0.0
        %2686 = vmatpush2.msra.mxu0 0.0
        %2687 = vmatprep.subr.mxu0 0.0
        %2688 = vmatpush2.msra.mxu0 0.0
        %2689 = vmatprep.subr.mxu0 0.0
        %2690 = vmatpush2.msra.mxu0 0.0
        %2691 = vmatprep.subr.mxu0 0.0
        %2692 = vmatpush2.msra.mxu0 0.0
        %2693 = vmatprep.subr.mxu0 0.0
        %2694 = vmatpush2.msra.mxu0 0.0
        %2695 = vmatprep.subr.mxu0 0.0
        %2696 = vmatpush2.msra.mxu0 0.0
        %2697 = vmatprep.subr.mxu0 0.0
        %2698 = vmatpush2.msra.mxu0 0.0
        %2699 = vmatprep.subr.mxu0 0.0
        %2700 = vmatpush2.msra.mxu0 0.0
        %2701 = vmatprep.subr.mxu0 0.0
        %2702 = vmatpush2.msra.mxu0 0.0
        %2703 = vmatprep.subr.mxu0 0.0
        %2704 = vmatpush2.msra.mxu0 0.0
        %2705 = vmatprep.subr.mxu0 0.0
        %2706 = vmatpush2.msra.mxu0 0.0
        %2707 = vmatprep.subr.mxu0 0.0
        %2708 = vmatpush2.msra.mxu0 0.0
        %2709 = vmatprep.subr.mxu0 0.0
        %2710 = vmatpush2.msra.mxu0 0.0
        %2711 = vmatprep.subr.mxu0 0.0
        %2712 = vmatpush2.msra.mxu0 0.0
        %2713 = vmatprep.subr.mxu0 0.0
        %2714 = vmatpush2.msra.mxu0 0.0
        %2715 = vmatprep.subr.mxu0 0.0
        %2716 = vmatpush2.msra.mxu0 0.0
        %2717 = vmatprep.mubr.f32.mxu0 0.0
        %v2718 = vand.u32 %v2332, 4294901760
        %2719 = vmatmul.mubr.f32.gmra.mxu0 %v2718
        %v2720 = vpop.f32.mrf.mxu0
        %v2721 = vadd.f32 %v2643, %v2720
        %v2722 = vpop.f32.mrf.mxu0
        %v2723 = vadd.f32 %v2645, %v2722
        %2724 = vdwg.mxu0
        %2725 = vmatprep.subr.mxu0 0.0
        %2726 = vmatpush1.msra.mxu0 0.0
        %2727 = vmatprep.subr.mxu0 0.0
        %2728 = vmatpush1.msra.mxu0 0.0
        %2729 = vmatprep.subr.mxu0 0.0
        %2730 = vmatpush1.msra.mxu0 0.0
        %2731 = vmatprep.subr.mxu0 0.0
        %2732 = vmatpush1.msra.mxu0 0.0
        %2733 = vmatprep.subr.mxu0 0.0
        %2734 = vmatpush1.msra.mxu0 0.0
        %2735 = vmatprep.subr.mxu0 0.0
        %2736 = vmatpush1.msra.mxu0 0.0
        %2737 = vmatprep.subr.mxu0 0.0
        %2738 = vmatpush1.msra.mxu0 0.0
        %2739 = vmatprep.subr.mxu0 0.0
        %2740 = vmatpush1.msra.mxu0 0.0
        %2741 = vmatprep.subr.mxu0 0.0
        %2742 = vmatpush1.msra.mxu0 0.0
        %2743 = vmatprep.subr.mxu0 0.0
        %2744 = vmatpush1.msra.mxu0 0.0
        %2745 = vmatprep.subr.mxu0 0.0
        %2746 = vmatpush1.msra.mxu0 0.0
        %2747 = vmatprep.subr.mxu0 0.0
        %2748 = vmatpush1.msra.mxu0 0.0
        %2749 = vmatprep.subr.mxu0 0.0
        %2750 = vmatpush1.msra.mxu0 0.0
        %2751 = vmatprep.subr.mxu0 0.0
        %2752 = vmatpush1.msra.mxu0 0.0
        %2753 = vmatprep.subr.mxu0 0.0
        %2754 = vmatpush1.msra.mxu0 0.0
        %v2755 = vand.u32 %v2329, 4294901760
        %2756 = vmatprep.subr.mxu0 %v2755
        %v2757 = vand.u32 %v2328, 4294901760
        %2758 = vmatpush1.msra.mxu0 %v2757
        %2759 = vmatprep.subr.mxu0 0.0
        %2760 = vmatpush2.msra.mxu0 0.0
        %2761 = vmatprep.subr.mxu0 0.0
        %2762 = vmatpush2.msra.mxu0 0.0
        %2763 = vmatprep.subr.mxu0 0.0
        %2764 = vmatpush2.msra.mxu0 0.0
        %2765 = vmatprep.subr.mxu0 0.0
        %2766 = vmatpush2.msra.mxu0 0.0
        %2767 = vmatprep.subr.mxu0 0.0
        %2768 = vmatpush2.msra.mxu0 0.0
        %2769 = vmatprep.subr.mxu0 0.0
        %2770 = vmatpush2.msra.mxu0 0.0
        %2771 = vmatprep.subr.mxu0 0.0
        %2772 = vmatpush2.msra.mxu0 0.0
        %2773 = vmatprep.subr.mxu0 0.0
        %2774 = vmatpush2.msra.mxu0 0.0
        %2775 = vmatprep.subr.mxu0 0.0
        %2776 = vmatpush2.msra.mxu0 0.0
        %2777 = vmatprep.subr.mxu0 0.0
        %2778 = vmatpush2.msra.mxu0 0.0
        %2779 = vmatprep.subr.mxu0 0.0
        %2780 = vmatpush2.msra.mxu0 0.0
        %2781 = vmatprep.subr.mxu0 0.0
        %2782 = vmatpush2.msra.mxu0 0.0
        %2783 = vmatprep.subr.mxu0 0.0
        %2784 = vmatpush2.msra.mxu0 0.0
        %2785 = vmatprep.subr.mxu0 0.0
        %2786 = vmatpush2.msra.mxu0 0.0
        %2787 = vmatprep.subr.mxu0 0.0
        %2788 = vmatpush2.msra.mxu0 0.0
        %2789 = vmatprep.subr.mxu0 0.0
        %2790 = vmatpush2.msra.mxu0 0.0
        %2791 = vmatprep.mubr.f32.mxu0 0.0
        %v2792 = vand.u32 %v2332, 4294901760
        %2793 = vmatmul.mubr.f32.gmra.mxu0 %v2792
        %v2794 = vpop.f32.mrf.mxu0
        %v2795 = vadd.f32 %v2721, %v2794
        %v2796 = vpop.f32.mrf.mxu0
        %v2797 = vadd.f32 %v2723, %v2796
        %2798 = vdwg.mxu0
        %v2799 = vand.u32 2147483647, %v2795
        %vm2800 = vcmp.le.f32.partialorder %v2799, 0.7853982
        %vm2801 = vcmp.lt.s32.totalorder %v2795, 0
        %v2802 = vand.u32 %v2795, 2139095040
        %v2803 = vshrl.u32 %v2802, 23
        %v2804 = vsub.s32 %v2803, 127
        %v2805 = vand.u32 2147483647, %v2795
        %v2806 = vand.u32 %v2805, 8388607
        %v2807 = vor.u32 %v2806, 8388608
        %v2808 = vsub.s32 0, %v2807
        %v2809 = vadd.s32 %v2804, 1
        %vm2810 = vcmp.gt.s32.totalorder %v2809, 0
        %v2811 = vsel %vm2810, %v2809, 0
        %v2812 = vshrl.u32 %v2811, 5
        %v2813 = vand.u32 %v2811, 31
        %v2814 = vsub.s32 32, %v2813
        %v2815 = vshrl.u32 683565275, %v2814
        %v2816 = vshll.u32 683565275, %v2813
        %v2817 = vshrl.u32 2475754826, %v2814
        %v2818 = vor.u32 %v2816, %v2817
        %v2819 = vshll.u32 2475754826, %v2813
        %v2820 = vshrl.u32 2131351028, %v2814
        %v2821 = vor.u32 %v2819, %v2820
        %v2822 = vshll.u32 2131351028, %v2813
        %v2823 = vshrl.u32 2102212464, %v2814
        %v2824 = vor.u32 %v2822, %v2823
        %v2825 = vshll.u32 2102212464, %v2813
        %v2826 = vshrl.u32 920167782, %v2814
        %v2827 = vor.u32 %v2825, %v2826
        %v2828 = vshll.u32 920167782, %v2813
        %v2829 = vshrl.u32 1326507024, %v2814
        %v2830 = vor.u32 %v2828, %v2829
        %vm2831 = vcmp.lt.s32.totalorder %v2812, 1
        %vm2832 = vcmp.lt.s32.totalorder %v2812, 2
        %vm2833 = vcmp.lt.s32.totalorder %v2812, 3
        %vm2834 = vcmp.lt.s32.totalorder %v2812, 4
        %v2835 = vsel %vm2831, %v2815, %v2818
        %v2836 = vsel %vm2834, %v2824, 2102212464
        %v2837 = vsel %vm2833, %v2821, %v2836
        %v2838 = vsel %vm2832, %v2835, %v2837
        %v2839 = vsel %vm2831, %v2818, %v2821
        %v2840 = vsel %vm2834, %v2827, 920167782
        %v2841 = vsel %vm2833, %v2824, %v2840
        %v2842 = vsel %vm2832, %v2839, %v2841
        %v2843 = vsel %vm2831, %v2821, %v2824
        %v2844 = vsel %vm2834, %v2830, 1326507024
        %v2845 = vsel %vm2833, %v2827, %v2844
        %v2846 = vsel %vm2832, %v2843, %v2845
        %v2847 = vshll.u32 %v2807, 8
        %v2848 = vmul.u32.u64.compose %v2847, %v2846
        %v2849 = vextract.low.u32 %v2848
        %v2850 = vextract.high.u32 %v2848
        %v2851 = vmul.u32.u64.compose %v2847, %v2842
        %v2852 = vextract.low.u32 %v2851
        %v2853 = vextract.high.u32 %v2851
        %v2854 = vmul.u32 %v2847, %v2838
        %v2855 = vadd.s32 %v2850, %v2852
        %vm2856 = vc.u32 %v2850, %v2852
        %v2857 = vadd.s32 %v2853, 1
        %v2858 = vsel %vm2856, %v2857, %v2853
        %v2859 = vadd.s32 %v2854, %v2858
        %v2860 = vadd.s32 %v2859, 536870912
        %v2861 = vshrl.u32 %v2860, 30
        %v2862 = vshll.u32 %v2861, 30
        %v2863 = vsub.s32 %v2859, %v2862
        %vm2864 = vcmp.lt.s32.totalorder %v2863, 0
        %v2865 = vsub.s32 0, %v2863
        %v2866 = vsel %vm2864, %v2865, %v2863
        %v2867 = vclz %v2866
        %v2868 = vsub.s32 %v2867, 2
        %vm2869 = vcmp.gt.s32.totalorder 0, %v2868
        %v2870 = vsel %vm2869, 0, %v2868
        %v2871 = vsub.s32 32, %v2870
        %v2872 = vshll.u32 %v2863, %v2870
        %v2873 = vshrl.u32 %v2855, %v2871
        %v2874 = vor.u32 %v2872, %v2873
        %v2875 = vsub.s32 4294967266, %v2870
        %v2876 = vadd.s32 %v2875, 127
        %v2877 = vshll.u32 %v2876, 23
        %v2878 = vor.u32 4788187, %v2877
        %v2879 = vand.u32 2147483647, %v2878
        %v2881 = vcvt.s32.f32 %v2874
        %v2882 = vmul.f32 %v2881, %v2879
        %v2883 = vxor.u32 %v2882, 2147483648
        %v2884 = vsel %vm2801, %v2883, %v2882
        %v2885 = vsub.s32 4, %v2861
        %v2886 = vsel %vm2801, %v2885, %v2861
        %v2887 = vsel %vm2800, %v2795, %v2884
        %v2888 = vsel %vm2800, 0, %v2886
        %v2889 = vcosq.f32.pop %v2887
        %v2890 = vsinq.f32.pop %v2887
        %vm2891 = vweird.f32 %v2795
        %v2892 = vadd.s32 %v2888, 3
        %v2893 = vand.u32 %v2892, 3
        %vm2894 = vcmp.lt.s32.totalorder %v2893, 2
        %vm2895 = vcmp.eq.s32.totalorder %v2893, 0
        %v2896 = vxor.u32 %v2890, 2147483648
        %v2897 = vsel %vm2895, %v2889, %v2896
        %vm2898 = vcmp.eq.s32.totalorder %v2893, 2
        %v2899 = vxor.u32 %v2889, 2147483648
        %v2900 = vsel %vm2898, %v2899, %v2890
        %v2901 = vsel %vm2894, %v2897, %v2900
        %v2902 = vsel %vm2891, nan, %v2901
        %v2903 = vand.u32 2147483647, %v2797
        %vm2904 = vcmp.le.f32.partialorder %v2903, 0.7853982
        %vm2905 = vcmp.lt.s32.totalorder %v2797, 0
        %v2906 = vand.u32 %v2797, 2139095040
        %v2907 = vshrl.u32 %v2906, 23
        %v2908 = vsub.s32 %v2907, 127
        %v2909 = vand.u32 2147483647, %v2797
        %v2910 = vand.u32 %v2909, 8388607
        %v2911 = vor.u32 %v2910, 8388608
        %v2912 = vsub.s32 0, %v2911
        %v2913 = vadd.s32 %v2908, 1
        %vm2914 = vcmp.gt.s32.totalorder %v2913, 0
        %v2915 = vsel %vm2914, %v2913, 0
        %v2916 = vshrl.u32 %v2915, 5
        %v2917 = vand.u32 %v2915, 31
        %v2918 = vsub.s32 32, %v2917
        %v2919 = vshrl.u32 683565275, %v2918
        %v2920 = vshll.u32 683565275, %v2917
        %v2921 = vshrl.u32 2475754826, %v2918
        %v2922 = vor.u32 %v2920, %v2921
        %v2923 = vshll.u32 2475754826, %v2917
        %v2924 = vshrl.u32 2131351028, %v2918
        %v2925 = vor.u32 %v2923, %v2924
        %v2926 = vshll.u32 2131351028, %v2917
        %v2927 = vshrl.u32 2102212464, %v2918
        %v2928 = vor.u32 %v2926, %v2927
        %v2929 = vshll.u32 2102212464, %v2917
        %v2930 = vshrl.u32 920167782, %v2918
        %v2931 = vor.u32 %v2929, %v2930
        %v2932 = vshll.u32 920167782, %v2917
        %v2933 = vshrl.u32 1326507024, %v2918
        %v2934 = vor.u32 %v2932, %v2933
        %vm2935 = vcmp.lt.s32.totalorder %v2916, 1
        %vm2936 = vcmp.lt.s32.totalorder %v2916, 2
        %vm2937 = vcmp.lt.s32.totalorder %v2916, 3
        %vm2938 = vcmp.lt.s32.totalorder %v2916, 4
        %v2939 = vsel %vm2935, %v2919, %v2922
        %v2940 = vsel %vm2938, %v2928, 2102212464
        %v2941 = vsel %vm2937, %v2925, %v2940
        %v2942 = vsel %vm2936, %v2939, %v2941
        %v2943 = vsel %vm2935, %v2922, %v2925
        %v2944 = vsel %vm2938, %v2931, 920167782
        %v2945 = vsel %vm2937, %v2928, %v2944
        %v2946 = vsel %vm2936, %v2943, %v2945
        %v2947 = vsel %vm2935, %v2925, %v2928
        %v2948 = vsel %vm2938, %v2934, 1326507024
        %v2949 = vsel %vm2937, %v2931, %v2948
        %v2950 = vsel %vm2936, %v2947, %v2949
        %v2951 = vshll.u32 %v2911, 8
        %v2952 = vmul.u32.u64.compose %v2951, %v2950
        %v2953 = vextract.low.u32 %v2952
        %v2954 = vextract.high.u32 %v2952
        %v2955 = vmul.u32.u64.compose %v2951, %v2946
        %v2956 = vextract.low.u32 %v2955
        %v2957 = vextract.high.u32 %v2955
        %v2958 = vmul.u32 %v2951, %v2942
        %v2959 = vadd.s32 %v2954, %v2956
        %vm2960 = vc.u32 %v2954, %v2956
        %v2961 = vadd.s32 %v2957, 1
        %v2962 = vsel %vm2960, %v2961, %v2957
        %v2963 = vadd.s32 %v2958, %v2962
        %v2964 = vadd.s32 %v2963, 536870912
        %v2965 = vshrl.u32 %v2964, 30
        %v2966 = vshll.u32 %v2965, 30
        %v2967 = vsub.s32 %v2963, %v2966
        %vm2968 = vcmp.lt.s32.totalorder %v2967, 0
        %v2969 = vsub.s32 0, %v2967
        %v2970 = vsel %vm2968, %v2969, %v2967
        %v2971 = vclz %v2970
        %v2972 = vsub.s32 %v2971, 2
        %vm2973 = vcmp.gt.s32.totalorder 0, %v2972
        %v2974 = vsel %vm2973, 0, %v2972
        %v2975 = vsub.s32 32, %v2974
        %v2976 = vshll.u32 %v2967, %v2974
        %v2977 = vshrl.u32 %v2959, %v2975
        %v2978 = vor.u32 %v2976, %v2977
        %v2979 = vsub.s32 4294967266, %v2974
        %v2980 = vadd.s32 %v2979, 127
        %v2981 = vshll.u32 %v2980, 23
        %v2982 = vor.u32 4788187, %v2981
        %v2983 = vand.u32 2147483647, %v2982
        %v2985 = vcvt.s32.f32 %v2978
        %v2986 = vmul.f32 %v2985, %v2983
        %v2987 = vxor.u32 %v2986, 2147483648
        %v2988 = vsel %vm2905, %v2987, %v2986
        %v2989 = vsub.s32 4, %v2965
        %v2990 = vsel %vm2905, %v2989, %v2965
        %v2991 = vsel %vm2904, %v2797, %v2988
        %v2992 = vsel %vm2904, 0, %v2990
        %v2993 = vcosq.f32.pop %v2991
        %v2994 = vsinq.f32.pop %v2991
        %vm2995 = vweird.f32 %v2797
        %v2996 = vadd.s32 %v2992, 3
        %v2997 = vand.u32 %v2996, 3
        %vm2998 = vcmp.lt.s32.totalorder %v2997, 2
        %vm2999 = vcmp.eq.s32.totalorder %v2997, 0
        %v3000 = vxor.u32 %v2994, 2147483648
        %v3001 = vsel %vm2999, %v2993, %v3000
        %vm3002 = vcmp.eq.s32.totalorder %v2997, 2
        %v3003 = vxor.u32 %v2993, 2147483648
        %v3004 = vsel %vm3002, %v3003, %v2994
        %v3005 = vsel %vm2998, %v3001, %v3004
        %v3006 = vsel %vm2995, nan, %v3005
        %3007 = vst [vmem:[%s267] sm:$0xff] %v2902
        %3008 = vst [vmem:[%s267 + $0x8] sm:$0xff] %v3006
        %s3009 = sand.u32 %s127, 1
        %s3010 = scalar_lea.sflag [#allocation4], %s3009
        %s3011 = sand.u32 %s127, 1
        %s3012 = smul.addr %s3011, 40
        %s3013 = scalar_lea.vmem [#allocation7], %s3012
        %s3014 = sand.u32 %s153, 1
        %s3015 = scalar_lea.sflag [#allocation9], %s3014
        %s3016 = sand.u32 %s153, 1
        %s3017 = smul.addr %s3016, 16
        %s3018 = scalar_lea.vmem [#allocation8], %s3017
        // Predicated region
        $region45: #{tpu_custom_call.1} parent=35 // pred_check
          %p3019 = pneg %p137
        $region46: #{tpu_custom_call.1} parent=35 // pred_check_branch
          %3021 = sbr.rel (%p3019) target = $region48
        $region47: #{tpu_custom_call.1} parent=35 // pred_region
          %s3023 = ssub.s32 640, 640
          %3024 = vsyncadd %s3010, %s3023
          %s3025 = smul.addr %s25, 5
          %s3026 = smul.addr %s3025, 128
          %s3027 = scalar_lea.hbm %s4, %s3026
          %s3029 = sshll.u32 %s3013, 4
          %s3030 = int_to_ptr.vmem [resolvable:$true] %s3029
          %3032 = dma.vmem_to_hbm [thread:$0]  %s3030, 640, %s3027, %s3010
        $region48: #{tpu_custom_call.1} parent=35 // pred_fallthru
          _
        // Predicated region
        $region49: #{tpu_custom_call.1} parent=35 // pred_check
          %p3033 = pneg %p163
        $region50: #{tpu_custom_call.1} parent=35 // pred_check_branch
          %3035 = sbr.rel (%p3033) target = $region52
        $region51: #{tpu_custom_call.1} parent=35 // pred_region
          %s3037 = ssub.s32 256, 256
          %3038 = vsyncadd %s3015, %s3037
          %s3039 = smul.addr %s25, 2
          %s3040 = smul.addr %s3039, 128
          %s3041 = scalar_lea.hbm %s5, %s3040
          %s3043 = sshll.u32 %s3018, 4
          %s3044 = int_to_ptr.vmem [resolvable:$true] %s3043
          %3046 = dma.vmem_to_hbm [thread:$0]  %s3044, 256, %s3041, %s3015
        $region52: #{tpu_custom_call.1} parent=35 // pred_fallthru
          _
      $region36: #{tpu_custom_call.1} parent=5 // pred_fallthru
        _
      %p3047 = scmp.le.s32.totalorder 2, %s20
      // Predicated region
      $region53: #{tpu_custom_call.1} parent=5 // pred_check
        %p3048 = pneg %p3047
      $region54: #{tpu_custom_call.1} parent=5 // pred_check_branch
        %3050 = sbr.rel (%p3048) target = $region56
      $region55: #{tpu_custom_call.1} parent=5 // pred_region
        %s3051 = ssub.s32 %s20, 2
        // Predicated region
        $region57: #{tpu_custom_call.1} parent=55 // pred_check
          %p3052 = pneg %p143
        $region58: #{tpu_custom_call.1} parent=55 // pred_check_branch
          %3054 = sbr.rel (%p3052) target = $region60
        $region59: #{tpu_custom_call.1} parent=55 // pred_region
          %s3055 = sand.u32 %s128, 1
          %s3056 = scalar_lea.sflag [#allocation4], %s3055
          %s3057 = sand.u32 %s128, 1
          %s3058 = smul.addr %s3057, 40
          %s3059 = scalar_lea.vmem [#allocation7], %s3058
          %3060 = dma.done %s3056, 640
        $region60: #{tpu_custom_call.1} parent=55 // pred_fallthru
          _
        // Predicated region
        $region61: #{tpu_custom_call.1} parent=55 // pred_check
          %p3061 = pneg %p169
        $region62: #{tpu_custom_call.1} parent=55 // pred_check_branch
          %3063 = sbr.rel (%p3061) target = $region64
        $region63: #{tpu_custom_call.1} parent=55 // pred_region
          %s3064 = sand.u32 %s154, 1
          %s3065 = scalar_lea.sflag [#allocation9], %s3064
          %s3066 = sand.u32 %s154, 1
          %s3067 = smul.addr %s3066, 16
          %s3068 = scalar_lea.vmem [#allocation8], %s3067
          %3069 = dma.done %s3065, 256
        $region64: #{tpu_custom_call.1} parent=55 // pred_fallthru
          _
      $region56: #{tpu_custom_call.1} parent=5 // pred_fallthru
        _
    $region6: #{tpu_custom_call.1} parent=1 // loop_footer
      %s24 = sadd.s32 1, %s20
    $region7: #{tpu_custom_call.1} parent=1 // loop_footer_branch
      %19 = sbr.rel target = $region3
    $region8: #{tpu_custom_call.1} parent=1 // loop_exit
      _
    %3070 = vsyncpa [#allocation3], 1
    %s3071 = scalar_lea.sflag [#allocation3], 1
    %3072 = vsyncpa %s3071, 1
    %3073 = vsyncpa [#allocation6], 1
    %3074 = vsyncpa [#allocation4], 1
    %s3075 = scalar_lea.sflag [#allocation4], 1
    %3076 = vsyncpa %s3075, 1
    %3077 = vsyncpa [#allocation9], 1
    %s3078 = scalar_lea.sflag [#allocation9], 1
    %3079 = vsyncpa %s3078, 1

</llo_original>
